<compile_context>
chip_gen: v6e
topology: v6e:2x2x1
jax: 0.10.0
libtpu: 0.0.40
codegen_flags: <defaults>
</compile_context>

<pallas_src>
import functools

import jax
import jax.numpy as jnp
import numpy as np
from jax.experimental import pallas as pl
from jax.experimental.pallas import tpu as pltpu

HID = 3                  # OUT_LAYER_SIZE[0]
ERR_C = 2 * HID          # ERR_LAYER_SIZE[0] = 6
GATE_IN = ERR_C + HID    # ConvLSTM input channels = error(6) + hidden(3) = 9
GATE_OUT = 4 * HID       # 4 gates * hidden = 12

# MXU/VMEM-friendly padded sizes (multiples of 8 sublanes).
K_PAD = 16               # padded input-channel rows of the conv scratch
GATE_OUT_PAD = 16        # padded gate output channels (12 -> 16)
DISC_OUT_PAD = 8         # padded discriminative output channels (3 -> 8)
LANE_PAD = 128           # zero halo (in flat pixels) on each side of the image


def _conv3x3(pad_ref, w_ref, b_ref, col, *, W, N):
    """3x3 'SAME' conv as 9 per-tap MXU matmuls over a flat [K_PAD, N] image.

    pad_ref : [K_PAD, LANE_PAD + N + LANE_PAD] zero-haloed flat input (row-major y*W+x)
    w_ref   : [9, C_out_pad, K_PAD] tap-major weights (tap = ky*3 + kx); unused rows/cols are 0
    b_ref   : [C_out_pad, 1]
    col     : [1, N] int32 x-coordinate of every flat pixel
    """
    c_out = w_ref.shape[1]
    acc = jnp.zeros((c_out, N), jnp.float32)
    for ky in range(3):
        for kx in range(3):
            dy, dx = ky - 1, kx - 1
            s = dy * W + dx                                      # flat-pixel shift
            tap = pad_ref[:, LANE_PAD + s: LANE_PAD + s + N]     # [K_PAD, N], loaded once per tap
            if dx != 0:
                # the vertical (dy) overflow lands in the zero halo; the horizontal (dx)
                # overflow wraps to the neighbouring image row and must be masked out.
                valid = (col + dx >= 0) & (col + dx < W)
                tap = jnp.where(valid, tap, 0.0)
            acc = acc + jnp.dot(w_ref[ky * 3 + kx], tap,
                                preferred_element_type=jnp.float32)
    return acc + b_ref[...]                                      # single bias broadcast


def _fused_prednet_kernel(err_in, hid_in, cell_in, bott_in,
                          wg_ref, bg_ref, wd_ref, bd_ref,
                          err_out, hid_out, cell_out,
                          pad_ref, *, H, W):
    N = H * W
    col = jax.lax.broadcasted_iota(jnp.int32, (1, N), 1) % W

    # Stage cat(prev_error, prev_hidden) into the zero-haloed scratch (in-kernel padding).
    pad_ref[...] = jnp.zeros_like(pad_ref)
    pad_ref[0:ERR_C, LANE_PAD:LANE_PAD + N] = err_in[...]
    pad_ref[ERR_C:GATE_IN, LANE_PAD:LANE_PAD + N] = hid_in[...]

    # ---- GenerativeCell / ConvLSTMCell --------------------------------------
    gates = _conv3x3(pad_ref, wg_ref, bg_ref, col, W=W, N=N)     # [GATE_OUT_PAD, N]
    sig = jax.nn.sigmoid(gates[0:3 * HID])                       # batched sigmoid (in, remember, out)
    in_g = sig[0:HID]
    rem_g = sig[HID:2 * HID]
    out_g = sig[2 * HID:3 * HID]
    cell_g = jnp.tanh(gates[3 * HID:4 * HID])
    cell = rem_g * cell_in[...] + in_g * cell_g
    hidden = out_g * jnp.tanh(cell)
    cell_out[...] = cell
    hid_out[...] = hidden

    # ---- DiscriminativeCell (first=True) ------------------------------------
    # Reuse the haloed scratch: overwrite rows 0:HID with the new hidden state; stale
    # rows >= HID are killed by the zero columns of the padded discriminative weights.
    pad_ref[0:HID, LANE_PAD:LANE_PAD + N] = hidden
    proj = _conv3x3(pad_ref, wd_ref, bd_ref, col, W=W, N=N)[0:HID]
    proj = jnp.maximum(proj, 0.0)
    bott = bott_in[...]
    err_out[0:HID, :] = jnp.maximum(bott - proj, 0.0)
    err_out[HID:ERR_C, :] = jnp.maximum(proj - bott, 0.0)


def build_one_layer_forward(bottom_up, prev_error, state, params):
    """Equivalent of _BuildOneLayerModel.forward(bottom_up_input, prev_error, state)."""
    B, _, H, W = bottom_up.shape
    N = H * W
    if prev_error is None:                                       # error_init_size handling
        prev_error = jnp.zeros((B, ERR_C, H, W), jnp.float32)
    if state is None:
        state = (jnp.zeros((B, HID, H, W), jnp.float32),
                 jnp.zeros((B, HID, H, W), jnp.float32))
    prev_hidden, prev_cell = state

    # Layout plumbing: channel-major, lane-dense [C, B*H*W].
    def to_flat(x):
        return x.transpose(1, 0, 2, 3).reshape(x.shape[1], B * N)

    def from_flat(x):
        return x.reshape(x.shape[0], B, H, W).transpose(1, 0, 2, 3)

    err_f = to_flat(prev_error)
    hid_f = to_flat(prev_hidden)
    cell_f = to_flat(prev_cell)
    bott_f = to_flat(bottom_up)

    # Weights -> tap-major [9, C_out_pad, K_PAD] (zero padded to 8-aligned MXU tiles).
    wg = jnp.zeros((9, GATE_OUT_PAD, K_PAD), jnp.float32)
    wg = wg.at[:, :GATE_OUT, :GATE_IN].set(
        params["gates_w"].transpose(2, 3, 0, 1).reshape(9, GATE_OUT, GATE_IN))
    bg = jnp.zeros((GATE_OUT_PAD, 1), jnp.float32).at[:GATE_OUT, 0].set(params["gates_b"])
    wd = jnp.zeros((9, DISC_OUT_PAD, K_PAD), jnp.float32)
    wd = wd.at[:, :HID, :HID].set(
        params["disc_w"].transpose(2, 3, 0, 1).reshape(9, HID, HID))
    bd = jnp.zeros((DISC_OUT_PAD, 1), jnp.float32).at[:HID, 0].set(params["disc_b"])

    kernel = functools.partial(_fused_prednet_kernel, H=H, W=W)

    def data_spec(c):
        return pl.BlockSpec((c, N), lambda b: (0, b))

    def full_spec(shape):
        return pl.BlockSpec(shape, lambda b: (0,) * len(shape))

    err_o, hid_o, cell_o = pl.pallas_call(
        kernel,
        grid=(B,),
        out_shape=(jax.ShapeDtypeStruct((ERR_C, B * N), jnp.float32),
                   jax.ShapeDtypeStruct((HID, B * N), jnp.float32),
                   jax.ShapeDtypeStruct((HID, B * N), jnp.float32)),
        in_specs=[data_spec(ERR_C), data_spec(HID), data_spec(HID), data_spec(HID),
                  full_spec((9, GATE_OUT_PAD, K_PAD)), full_spec((GATE_OUT_PAD, 1)),
                  full_spec((9, DISC_OUT_PAD, K_PAD)), full_spec((DISC_OUT_PAD, 1))],
        out_specs=(data_spec(ERR_C), data_spec(HID), data_spec(HID)),
        scratch_shapes=[pltpu.VMEM((K_PAD, N + 2 * LANE_PAD), jnp.float32)],
        compiler_params=pltpu.CompilerParams(
            dimension_semantics=("parallel",)),
    )(err_f, hid_f, cell_f, bott_f, wg, bg, wd, bd)

    return from_flat(err_o), (from_flat(hid_o), from_flat(cell_o))


def init_params(key):
    """Deterministic synthetic parameters (shapes follow the nn.Conv2d layers)."""
    k1, k2, k3, k4 = jax.random.split(key, 4)
    bound_g = 1.0 / float(np.sqrt(GATE_IN * 9))   # ConvLSTM Gates: Conv2d(9, 12, 3, pad=1)
    bound_d = 1.0 / float(np.sqrt(HID * 9))       # Discriminator from_state: Conv2d(3, 3, 3, pad=1)
    return dict(
        gates_w=jax.random.uniform(k1, (GATE_OUT, GATE_IN, 3, 3), jnp.float32, -bound_g, bound_g),
        gates_b=jax.random.uniform(k2, (GATE_OUT,), jnp.float32, -bound_g, bound_g),
        disc_w=jax.random.uniform(k3, (HID, HID, 3, 3), jnp.float32, -bound_d, bound_d),
        disc_b=jax.random.uniform(k4, (HID,), jnp.float32, -bound_d, bound_d),
    )


def _reference_forward(bottom_up, prev_error, state, params):
    """Pure-JAX reference mirroring the PyTorch module semantics."""
    prev_hidden, prev_cell = state
    stacked = jnp.concatenate([prev_error, prev_hidden], axis=1)
    gates = jax.lax.conv_general_dilated(
        stacked, params["gates_w"], (1, 1), "SAME",
        dimension_numbers=("NCHW", "OIHW", "NCHW"),
        precision=jax.lax.Precision.HIGHEST) + params["gates_b"][None, :, None, None]
    i_g, r_g, o_g, c_g = jnp.split(gates, 4, axis=1)
    cell = jax.nn.sigmoid(r_g) * prev_cell + jax.nn.sigmoid(i_g) * jnp.tanh(c_g)
    hidden = jax.nn.sigmoid(o_g) * jnp.tanh(cell)
    sp = jax.nn.relu(jax.lax.conv_general_dilated(
        hidden, params["disc_w"], (1, 1), "SAME",
        dimension_numbers=("NCHW", "OIHW", "NCHW"),
        precision=jax.lax.Precision.HIGHEST) + params["disc_b"][None, :, None, None])
    error = jax.nn.relu(jnp.concatenate([bottom_up - sp, sp - bottom_up], axis=1))
    return error, (hidden, cell)


if __name__ == "__main__":
    key = jax.random.PRNGKey(0)
    kp, kx, ke, kh, kc = jax.random.split(key, 5)
    B, H, W = 2, 16, 16

    params = init_params(kp)
    bottom_up = jax.random.normal(kx, (B, HID, H, W), jnp.float32)
    prev_error = jax.random.normal(ke, (B, ERR_C, H, W), jnp.float32)
    state = (jax.random.normal(kh, (B, HID, H, W), jnp.float32),
             jax.random.normal(kc, (B, HID, H, W), jnp.float32))

    fwd = jax.jit(build_one_layer_forward)
    error, new_state = fwd(bottom_up, prev_error, state, params)
    jax.block_until_ready((error, new_state))

    # correctness check against a pure-JAX reference (tolerance allows for MXU accumulation order)
    err_ref, (hid_ref, cell_ref) = _reference_forward(bottom_up, prev_error, state, params)
    np.testing.assert_allclose(np.asarray(error), np.asarray(err_ref), rtol=2e-3, atol=2e-3)
    np.testing.assert_allclose(np.asarray(new_state[0]), np.asarray(hid_ref), rtol=2e-3, atol=2e-3)
    np.testing.assert_allclose(np.asarray(new_state[1]), np.asarray(cell_ref), rtol=2e-3, atol=2e-3)

    print("KERNEL_OK")
</pallas_src>

<mosaic_0001>
module attributes {stable_mosaic.version = 11 : i64} {
  func.func @_fused_prednet_kernel(%arg0: i32, %arg1: memref<6x256xf32, #tpu.memory_space<vmem>>, %arg2: memref<3x256xf32, #tpu.memory_space<vmem>>, %arg3: memref<3x256xf32, #tpu.memory_space<vmem>>, %arg4: memref<3x256xf32, #tpu.memory_space<vmem>>, %arg5: memref<9x16x16xf32, #tpu.memory_space<vmem>>, %arg6: memref<16x1xf32, #tpu.memory_space<vmem>>, %arg7: memref<9x8x16xf32, #tpu.memory_space<vmem>>, %arg8: memref<8x1xf32, #tpu.memory_space<vmem>>, %arg9: memref<6x256xf32, #tpu.memory_space<vmem>>, %arg10: memref<3x256xf32, #tpu.memory_space<vmem>>, %arg11: memref<3x256xf32, #tpu.memory_space<vmem>>, %arg12: memref<16x512xf32, #tpu.memory_space<vmem>>) attributes {dimension_semantics = [#tpu.dimension_semantics<parallel>], iteration_bounds = array<i64: 2>, scalar_prefetch = 0 : i64, scratch_operands = 1 : i64, tpu.core_type = #tpu.core_type<tc>, window_params = [{transform_indices = @transform_0, window_bounds = array<i64: 6, 256>}, {transform_indices = @transform_1, window_bounds = array<i64: 3, 256>}, {transform_indices = @transform_2, window_bounds = array<i64: 3, 256>}, {transform_indices = @transform_3, window_bounds = array<i64: 3, 256>}, {pipeline_mode = #tpu.pipeline_mode<synchronous>, transform_indices = @transform_4, window_bounds = array<i64: 9, 16, 16>}, {pipeline_mode = #tpu.pipeline_mode<synchronous>, transform_indices = @transform_5, window_bounds = array<i64: 16, 1>}, {pipeline_mode = #tpu.pipeline_mode<synchronous>, transform_indices = @transform_6, window_bounds = array<i64: 9, 8, 16>}, {pipeline_mode = #tpu.pipeline_mode<synchronous>, transform_indices = @transform_7, window_bounds = array<i64: 8, 1>}, {transform_indices = @transform_8, window_bounds = array<i64: 6, 256>}, {transform_indices = @transform_9, window_bounds = array<i64: 3, 256>}, {transform_indices = @transform_10, window_bounds = array<i64: 3, 256>}]} {
    %0 = tpu.iota {dimensions = array<i32: 1>} : vector<1x256xi32>
    %c16_i32 = arith.constant 16 : i32
    %c0_i32 = arith.constant 0 : i32
    %1 = arith.cmpi eq, %c16_i32, %c0_i32 : i32
    %c1_i32 = arith.constant 1 : i32
    %2 = arith.select %1, %c1_i32, %c16_i32 : i32
    %3 = vector.broadcast %2 : i32 to vector<1x256xi32>
    %4 = arith.remsi %0, %3 : vector<1x256xi32>
    %c0_i32_0 = arith.constant 0 : i32
    %5 = vector.broadcast %c0_i32_0 : i32 to vector<1x256xi32>
    %6 = arith.cmpi ne, %4, %5 : vector<1x256xi32>
    %c0_i32_1 = arith.constant 0 : i32
    %7 = vector.broadcast %c0_i32_1 : i32 to vector<1x256xi32>
    %8 = arith.cmpi slt, %4, %7 : vector<1x256xi32>
    %c0_i32_2 = arith.constant 0 : i32
    %9 = arith.cmpi slt, %2, %c0_i32_2 : i32
    %10 = vector.broadcast %9 : i1 to vector<1x256xi1>
    %11 = vector.broadcast %10 : vector<1x256xi1> to vector<1x256xi1>
    %12 = arith.xori %8, %11 : vector<1x256xi1>
    %13 = arith.andi %12, %6 : vector<1x256xi1>
    %14 = vector.broadcast %2 : i32 to vector<1x256xi32>
    %15 = arith.addi %4, %14 : vector<1x256xi32>
    %16 = arith.select %13, %15, %4 : vector<1x256xi1>, vector<1x256xi32>
    %cst = arith.constant 0.000000e+00 : f32
    %17 = vector.broadcast %cst : f32 to vector<16x512xf32>
    %c0 = arith.constant 0 : index
    %c0_3 = arith.constant 0 : index
    %18 = vector.load %arg12[%c0, %c0_3] : memref<16x512xf32, #tpu.memory_space<vmem>>, vector<16x512xf32>
    tpu.vector_store %arg12[%c0, %c0_3], %17 {strides = array<i32>} : memref<16x512xf32, #tpu.memory_space<vmem>>, vector<16x512xf32>,
    %c0_4 = arith.constant 0 : index
    %c0_5 = arith.constant 0 : index
    %19 = vector.load %arg1[%c0_4, %c0_5] : memref<6x256xf32, #tpu.memory_space<vmem>>, vector<6x256xf32>
    %c0_6 = arith.constant 0 : index
    %c128 = arith.constant 128 : index
    %20 = vector.load %arg12[%c0_6, %c128] : memref<16x512xf32, #tpu.memory_space<vmem>>, vector<6x256xf32>
    tpu.vector_store %arg12[%c0_6, %c128], %19 {strides = array<i32>} : memref<16x512xf32, #tpu.memory_space<vmem>>, vector<6x256xf32>,
    %c0_7 = arith.constant 0 : index
    %c0_8 = arith.constant 0 : index
    %21 = vector.load %arg2[%c0_7, %c0_8] : memref<3x256xf32, #tpu.memory_space<vmem>>, vector<3x256xf32>
    %c6 = arith.constant 6 : index
    %c128_9 = arith.constant 128 : index
    %22 = vector.load %arg12[%c6, %c128_9] : memref<16x512xf32, #tpu.memory_space<vmem>>, vector<3x256xf32>
    tpu.vector_store %arg12[%c6, %c128_9], %21 {strides = array<i32>} : memref<16x512xf32, #tpu.memory_space<vmem>>, vector<3x256xf32>,
    %cst_10 = arith.constant 0.000000e+00 : f32
    %23 = vector.broadcast %cst_10 : f32 to vector<16x256xf32>
    %c0_11 = arith.constant 0 : index
    %c111 = arith.constant 111 : index
    %24 = vector.load %arg12[%c0_11, %c111] : memref<16x512xf32, #tpu.memory_space<vmem>>, vector<16x256xf32>
    %c-1_i32 = arith.constant -1 : i32
    %25 = vector.broadcast %c-1_i32 : i32 to vector<1x256xi32>
    %26 = arith.addi %16, %25 : vector<1x256xi32>
    %c0_i32_12 = arith.constant 0 : i32
    %27 = vector.broadcast %c0_i32_12 : i32 to vector<1x256xi32>
    %28 = arith.cmpi sge, %26, %27 : vector<1x256xi32>
    %c-1_i32_13 = arith.constant -1 : i32
    %29 = vector.broadcast %c-1_i32_13 : i32 to vector<1x256xi32>
    %30 = arith.addi %16, %29 : vector<1x256xi32>
    %c16_i32_14 = arith.constant 16 : i32
    %31 = vector.broadcast %c16_i32_14 : i32 to vector<1x256xi32>
    %32 = arith.cmpi slt, %30, %31 : vector<1x256xi32>
    %33 = arith.andi %28, %32 : vector<1x256xi1>
    %cst_15 = arith.constant 0.000000e+00 : f32
    %34 = vector.shape_cast %33 : vector<1x256xi1> to vector<1x256xi1>
    %35 = vector.broadcast %34 : vector<1x256xi1> to vector<16x256xi1>
    %36 = vector.broadcast %cst_15 : f32 to vector<16x256xf32>
    %37 = arith.select %35, %24, %36 : vector<16x256xi1>, vector<16x256xf32>
    %c0_16 = arith.constant 0 : index
    %c0_17 = arith.constant 0 : index
    %c0_18 = arith.constant 0 : index
    %38 = vector.load %arg5[%c0_16, %c0_17, %c0_18] : memref<9x16x16xf32, #tpu.memory_space<vmem>>, vector<1x16x16xf32>
    %39 = vector.shape_cast %38 : vector<1x16x16xf32> to vector<16x16xf32>
    %cst_19 = arith.constant dense<0.000000e+00> : vector<16x256xf32>
    %40 = tpu.matmul %39, %37, %cst_19 {dimension_numbers = #tpu.dot_dimension_numbers<[1], [0], [0], [1], [0, 0, 1, 1], [], []>} : vector<16x16xf32>, vector<16x256xf32>, vector<16x256xf32> -> vector<16x256xf32>
    %41 = arith.addf %23, %40 : vector<16x256xf32>
    %c0_20 = arith.constant 0 : index
    %c112 = arith.constant 112 : index
    %42 = vector.load %arg12[%c0_20, %c112] : memref<16x512xf32, #tpu.memory_space<vmem>>, vector<16x256xf32>
    %c1 = arith.constant 1 : index
    %c0_21 = arith.constant 0 : index
    %c0_22 = arith.constant 0 : index
    %43 = vector.load %arg5[%c1, %c0_21, %c0_22] : memref<9x16x16xf32, #tpu.memory_space<vmem>>, vector<1x16x16xf32>
    %44 = vector.shape_cast %43 : vector<1x16x16xf32> to vector<16x16xf32>
    %cst_23 = arith.constant dense<0.000000e+00> : vector<16x256xf32>
    %45 = tpu.matmul %44, %42, %cst_23 {dimension_numbers = #tpu.dot_dimension_numbers<[1], [0], [0], [1], [0, 0, 1, 1], [], []>} : vector<16x16xf32>, vector<16x256xf32>, vector<16x256xf32> -> vector<16x256xf32>
    %46 = arith.addf %41, %45 : vector<16x256xf32>
    %c0_24 = arith.constant 0 : index
    %c113 = arith.constant 113 : index
    %47 = vector.load %arg12[%c0_24, %c113] : memref<16x512xf32, #tpu.memory_space<vmem>>, vector<16x256xf32>
    %c1_i32_25 = arith.constant 1 : i32
    %48 = vector.broadcast %c1_i32_25 : i32 to vector<1x256xi32>
    %49 = arith.addi %16, %48 : vector<1x256xi32>
    %c0_i32_26 = arith.constant 0 : i32
    %50 = vector.broadcast %c0_i32_26 : i32 to vector<1x256xi32>
    %51 = arith.cmpi sge, %49, %50 : vector<1x256xi32>
    %c1_i32_27 = arith.constant 1 : i32
    %52 = vector.broadcast %c1_i32_27 : i32 to vector<1x256xi32>
    %53 = arith.addi %16, %52 : vector<1x256xi32>
    %c16_i32_28 = arith.constant 16 : i32
    %54 = vector.broadcast %c16_i32_28 : i32 to vector<1x256xi32>
    %55 = arith.cmpi slt, %53, %54 : vector<1x256xi32>
    %56 = arith.andi %51, %55 : vector<1x256xi1>
    %cst_29 = arith.constant 0.000000e+00 : f32
    %57 = vector.shape_cast %56 : vector<1x256xi1> to vector<1x256xi1>
    %58 = vector.broadcast %57 : vector<1x256xi1> to vector<16x256xi1>
    %59 = vector.broadcast %cst_29 : f32 to vector<16x256xf32>
    %60 = arith.select %58, %47, %59 : vector<16x256xi1>, vector<16x256xf32>
    %c2 = arith.constant 2 : index
    %c0_30 = arith.constant 0 : index
    %c0_31 = arith.constant 0 : index
    %61 = vector.load %arg5[%c2, %c0_30, %c0_31] : memref<9x16x16xf32, #tpu.memory_space<vmem>>, vector<1x16x16xf32>
    %62 = vector.shape_cast %61 : vector<1x16x16xf32> to vector<16x16xf32>
    %cst_32 = arith.constant dense<0.000000e+00> : vector<16x256xf32>
    %63 = tpu.matmul %62, %60, %cst_32 {dimension_numbers = #tpu.dot_dimension_numbers<[1], [0], [0], [1], [0, 0, 1, 1], [], []>} : vector<16x16xf32>, vector<16x256xf32>, vector<16x256xf32> -> vector<16x256xf32>
    %64 = arith.addf %46, %63 : vector<16x256xf32>
    %c0_33 = arith.constant 0 : index
    %c127 = arith.constant 127 : index
    %65 = vector.load %arg12[%c0_33, %c127] : memref<16x512xf32, #tpu.memory_space<vmem>>, vector<16x256xf32>
    %c-1_i32_34 = arith.constant -1 : i32
    %66 = vector.broadcast %c-1_i32_34 : i32 to vector<1x256xi32>
    %67 = arith.addi %16, %66 : vector<1x256xi32>
    %c0_i32_35 = arith.constant 0 : i32
    %68 = vector.broadcast %c0_i32_35 : i32 to vector<1x256xi32>
    %69 = arith.cmpi sge, %67, %68 : vector<1x256xi32>
    %c-1_i32_36 = arith.constant -1 : i32
    %70 = vector.broadcast %c-1_i32_36 : i32 to vector<1x256xi32>
    %71 = arith.addi %16, %70 : vector<1x256xi32>
    %c16_i32_37 = arith.constant 16 : i32
    %72 = vector.broadcast %c16_i32_37 : i32 to vector<1x256xi32>
    %73 = arith.cmpi slt, %71, %72 : vector<1x256xi32>
    %74 = arith.andi %69, %73 : vector<1x256xi1>
    %cst_38 = arith.constant 0.000000e+00 : f32
    %75 = vector.shape_cast %74 : vector<1x256xi1> to vector<1x256xi1>
    %76 = vector.broadcast %75 : vector<1x256xi1> to vector<16x256xi1>
    %77 = vector.broadcast %cst_38 : f32 to vector<16x256xf32>
    %78 = arith.select %76, %65, %77 : vector<16x256xi1>, vector<16x256xf32>
    %c3 = arith.constant 3 : index
    %c0_39 = arith.constant 0 : index
    %c0_40 = arith.constant 0 : index
    %79 = vector.load %arg5[%c3, %c0_39, %c0_40] : memref<9x16x16xf32, #tpu.memory_space<vmem>>, vector<1x16x16xf32>
    %80 = vector.shape_cast %79 : vector<1x16x16xf32> to vector<16x16xf32>
    %cst_41 = arith.constant dense<0.000000e+00> : vector<16x256xf32>
    %81 = tpu.matmul %80, %78, %cst_41 {dimension_numbers = #tpu.dot_dimension_numbers<[1], [0], [0], [1], [0, 0, 1, 1], [], []>} : vector<16x16xf32>, vector<16x256xf32>, vector<16x256xf32> -> vector<16x256xf32>
    %82 = arith.addf %64, %81 : vector<16x256xf32>
    %c0_42 = arith.constant 0 : index
    %c128_43 = arith.constant 128 : index
    %83 = vector.load %arg12[%c0_42, %c128_43] : memref<16x512xf32, #tpu.memory_space<vmem>>, vector<16x256xf32>
    %c4 = arith.constant 4 : index
    %c0_44 = arith.constant 0 : index
    %c0_45 = arith.constant 0 : index
    %84 = vector.load %arg5[%c4, %c0_44, %c0_45] : memref<9x16x16xf32, #tpu.memory_space<vmem>>, vector<1x16x16xf32>
    %85 = vector.shape_cast %84 : vector<1x16x16xf32> to vector<16x16xf32>
    %cst_46 = arith.constant dense<0.000000e+00> : vector<16x256xf32>
    %86 = tpu.matmul %85, %83, %cst_46 {dimension_numbers = #tpu.dot_dimension_numbers<[1], [0], [0], [1], [0, 0, 1, 1], [], []>} : vector<16x16xf32>, vector<16x256xf32>, vector<16x256xf32> -> vector<16x256xf32>
    %87 = arith.addf %82, %86 : vector<16x256xf32>
    %c0_47 = arith.constant 0 : index
    %c129 = arith.constant 129 : index
    %88 = vector.load %arg12[%c0_47, %c129] : memref<16x512xf32, #tpu.memory_space<vmem>>, vector<16x256xf32>
    %c1_i32_48 = arith.constant 1 : i32
    %89 = vector.broadcast %c1_i32_48 : i32 to vector<1x256xi32>
    %90 = arith.addi %16, %89 : vector<1x256xi32>
    %c0_i32_49 = arith.constant 0 : i32
    %91 = vector.broadcast %c0_i32_49 : i32 to vector<1x256xi32>
    %92 = arith.cmpi sge, %90, %91 : vector<1x256xi32>
    %c1_i32_50 = arith.constant 1 : i32
    %93 = vector.broadcast %c1_i32_50 : i32 to vector<1x256xi32>
    %94 = arith.addi %16, %93 : vector<1x256xi32>
    %c16_i32_51 = arith.constant 16 : i32
    %95 = vector.broadcast %c16_i32_51 : i32 to vector<1x256xi32>
    %96 = arith.cmpi slt, %94, %95 : vector<1x256xi32>
    %97 = arith.andi %92, %96 : vector<1x256xi1>
    %cst_52 = arith.constant 0.000000e+00 : f32
    %98 = vector.shape_cast %97 : vector<1x256xi1> to vector<1x256xi1>
    %99 = vector.broadcast %98 : vector<1x256xi1> to vector<16x256xi1>
    %100 = vector.broadcast %cst_52 : f32 to vector<16x256xf32>
    %101 = arith.select %99, %88, %100 : vector<16x256xi1>, vector<16x256xf32>
    %c5 = arith.constant 5 : index
    %c0_53 = arith.constant 0 : index
    %c0_54 = arith.constant 0 : index
    %102 = vector.load %arg5[%c5, %c0_53, %c0_54] : memref<9x16x16xf32, #tpu.memory_space<vmem>>, vector<1x16x16xf32>
    %103 = vector.shape_cast %102 : vector<1x16x16xf32> to vector<16x16xf32>
    %cst_55 = arith.constant dense<0.000000e+00> : vector<16x256xf32>
    %104 = tpu.matmul %103, %101, %cst_55 {dimension_numbers = #tpu.dot_dimension_numbers<[1], [0], [0], [1], [0, 0, 1, 1], [], []>} : vector<16x16xf32>, vector<16x256xf32>, vector<16x256xf32> -> vector<16x256xf32>
    %105 = arith.addf %87, %104 : vector<16x256xf32>
    %c0_56 = arith.constant 0 : index
    %c143 = arith.constant 143 : index
    %106 = vector.load %arg12[%c0_56, %c143] : memref<16x512xf32, #tpu.memory_space<vmem>>, vector<16x256xf32>
    %c-1_i32_57 = arith.constant -1 : i32
    %107 = vector.broadcast %c-1_i32_57 : i32 to vector<1x256xi32>
    %108 = arith.addi %16, %107 : vector<1x256xi32>
    %c0_i32_58 = arith.constant 0 : i32
    %109 = vector.broadcast %c0_i32_58 : i32 to vector<1x256xi32>
    %110 = arith.cmpi sge, %108, %109 : vector<1x256xi32>
    %c-1_i32_59 = arith.constant -1 : i32
    %111 = vector.broadcast %c-1_i32_59 : i32 to vector<1x256xi32>
    %112 = arith.addi %16, %111 : vector<1x256xi32>
    %c16_i32_60 = arith.constant 16 : i32
    %113 = vector.broadcast %c16_i32_60 : i32 to vector<1x256xi32>
    %114 = arith.cmpi slt, %112, %113 : vector<1x256xi32>
    %115 = arith.andi %110, %114 : vector<1x256xi1>
    %cst_61 = arith.constant 0.000000e+00 : f32
    %116 = vector.shape_cast %115 : vector<1x256xi1> to vector<1x256xi1>
    %117 = vector.broadcast %116 : vector<1x256xi1> to vector<16x256xi1>
    %118 = vector.broadcast %cst_61 : f32 to vector<16x256xf32>
    %119 = arith.select %117, %106, %118 : vector<16x256xi1>, vector<16x256xf32>
    %c6_62 = arith.constant 6 : index
    %c0_63 = arith.constant 0 : index
    %c0_64 = arith.constant 0 : index
    %120 = vector.load %arg5[%c6_62, %c0_63, %c0_64] : memref<9x16x16xf32, #tpu.memory_space<vmem>>, vector<1x16x16xf32>
    %121 = vector.shape_cast %120 : vector<1x16x16xf32> to vector<16x16xf32>
    %cst_65 = arith.constant dense<0.000000e+00> : vector<16x256xf32>
    %122 = tpu.matmul %121, %119, %cst_65 {dimension_numbers = #tpu.dot_dimension_numbers<[1], [0], [0], [1], [0, 0, 1, 1], [], []>} : vector<16x16xf32>, vector<16x256xf32>, vector<16x256xf32> -> vector<16x256xf32>
    %123 = arith.addf %105, %122 : vector<16x256xf32>
    %c0_66 = arith.constant 0 : index
    %c144 = arith.constant 144 : index
    %124 = vector.load %arg12[%c0_66, %c144] : memref<16x512xf32, #tpu.memory_space<vmem>>, vector<16x256xf32>
    %c7 = arith.constant 7 : index
    %c0_67 = arith.constant 0 : index
    %c0_68 = arith.constant 0 : index
    %125 = vector.load %arg5[%c7, %c0_67, %c0_68] : memref<9x16x16xf32, #tpu.memory_space<vmem>>, vector<1x16x16xf32>
    %126 = vector.shape_cast %125 : vector<1x16x16xf32> to vector<16x16xf32>
    %cst_69 = arith.constant dense<0.000000e+00> : vector<16x256xf32>
    %127 = tpu.matmul %126, %124, %cst_69 {dimension_numbers = #tpu.dot_dimension_numbers<[1], [0], [0], [1], [0, 0, 1, 1], [], []>} : vector<16x16xf32>, vector<16x256xf32>, vector<16x256xf32> -> vector<16x256xf32>
    %128 = arith.addf %123, %127 : vector<16x256xf32>
    %c0_70 = arith.constant 0 : index
    %c145 = arith.constant 145 : index
    %129 = vector.load %arg12[%c0_70, %c145] : memref<16x512xf32, #tpu.memory_space<vmem>>, vector<16x256xf32>
    %c1_i32_71 = arith.constant 1 : i32
    %130 = vector.broadcast %c1_i32_71 : i32 to vector<1x256xi32>
    %131 = arith.addi %16, %130 : vector<1x256xi32>
    %c0_i32_72 = arith.constant 0 : i32
    %132 = vector.broadcast %c0_i32_72 : i32 to vector<1x256xi32>
    %133 = arith.cmpi sge, %131, %132 : vector<1x256xi32>
    %c1_i32_73 = arith.constant 1 : i32
    %134 = vector.broadcast %c1_i32_73 : i32 to vector<1x256xi32>
    %135 = arith.addi %16, %134 : vector<1x256xi32>
    %c16_i32_74 = arith.constant 16 : i32
    %136 = vector.broadcast %c16_i32_74 : i32 to vector<1x256xi32>
    %137 = arith.cmpi slt, %135, %136 : vector<1x256xi32>
    %138 = arith.andi %133, %137 : vector<1x256xi1>
    %cst_75 = arith.constant 0.000000e+00 : f32
    %139 = vector.shape_cast %138 : vector<1x256xi1> to vector<1x256xi1>
    %140 = vector.broadcast %139 : vector<1x256xi1> to vector<16x256xi1>
    %141 = vector.broadcast %cst_75 : f32 to vector<16x256xf32>
    %142 = arith.select %140, %129, %141 : vector<16x256xi1>, vector<16x256xf32>
    %c8 = arith.constant 8 : index
    %c0_76 = arith.constant 0 : index
    %c0_77 = arith.constant 0 : index
    %143 = vector.load %arg5[%c8, %c0_76, %c0_77] : memref<9x16x16xf32, #tpu.memory_space<vmem>>, vector<1x16x16xf32>
    %144 = vector.shape_cast %143 : vector<1x16x16xf32> to vector<16x16xf32>
    %cst_78 = arith.constant dense<0.000000e+00> : vector<16x256xf32>
    %145 = tpu.matmul %144, %142, %cst_78 {dimension_numbers = #tpu.dot_dimension_numbers<[1], [0], [0], [1], [0, 0, 1, 1], [], []>} : vector<16x16xf32>, vector<16x256xf32>, vector<16x256xf32> -> vector<16x256xf32>
    %146 = arith.addf %128, %145 : vector<16x256xf32>
    %c0_79 = arith.constant 0 : index
    %c0_80 = arith.constant 0 : index
    %147 = vector.load %arg6[%c0_79, %c0_80] : memref<16x1xf32, #tpu.memory_space<vmem>>, vector<16x1xf32>
    %148 = vector.broadcast %147 : vector<16x1xf32> to vector<16x256xf32>
    %149 = arith.addf %146, %148 : vector<16x256xf32>
    %150 = vector.extract_strided_slice %149 {offsets = [0, 0], sizes = [9, 256], strides = [1, 1]} : vector<16x256xf32> to vector<9x256xf32>
    %151 = arith.negf %150 : vector<9x256xf32>
    %152 = math.exp %151 : vector<9x256xf32>
    %cst_81 = arith.constant 1.000000e+00 : f32
    %153 = vector.broadcast %cst_81 : f32 to vector<9x256xf32>
    %154 = arith.addf %153, %152 : vector<9x256xf32>
    %155 = arith.divf %153, %154 : vector<9x256xf32>
    %156 = vector.extract_strided_slice %155 {offsets = [0, 0], sizes = [3, 256], strides = [1, 1]} : vector<9x256xf32> to vector<3x256xf32>
    %157 = vector.extract_strided_slice %155 {offsets = [3, 0], sizes = [3, 256], strides = [1, 1]} : vector<9x256xf32> to vector<3x256xf32>
    %158 = vector.extract_strided_slice %155 {offsets = [6, 0], sizes = [3, 256], strides = [1, 1]} : vector<9x256xf32> to vector<3x256xf32>
    %159 = vector.extract_strided_slice %149 {offsets = [9, 0], sizes = [3, 256], strides = [1, 1]} : vector<16x256xf32> to vector<3x256xf32>
    %160 = math.tanh %159 : vector<3x256xf32>
    %c0_82 = arith.constant 0 : index
    %c0_83 = arith.constant 0 : index
    %161 = vector.load %arg3[%c0_82, %c0_83] : memref<3x256xf32, #tpu.memory_space<vmem>>, vector<3x256xf32>
    %162 = arith.mulf %157, %161 : vector<3x256xf32>
    %163 = arith.mulf %156, %160 : vector<3x256xf32>
    %164 = arith.addf %162, %163 : vector<3x256xf32>
    %165 = math.tanh %164 : vector<3x256xf32>
    %166 = arith.mulf %158, %165 : vector<3x256xf32>
    %c0_84 = arith.constant 0 : index
    %c0_85 = arith.constant 0 : index
    %167 = vector.load %arg11[%c0_84, %c0_85] : memref<3x256xf32, #tpu.memory_space<vmem>>, vector<3x256xf32>
    tpu.vector_store %arg11[%c0_84, %c0_85], %164 {strides = array<i32>} : memref<3x256xf32, #tpu.memory_space<vmem>>, vector<3x256xf32>,
    %c0_86 = arith.constant 0 : index
    %c0_87 = arith.constant 0 : index
    %168 = vector.load %arg10[%c0_86, %c0_87] : memref<3x256xf32, #tpu.memory_space<vmem>>, vector<3x256xf32>
    tpu.vector_store %arg10[%c0_86, %c0_87], %166 {strides = array<i32>} : memref<3x256xf32, #tpu.memory_space<vmem>>, vector<3x256xf32>,
    %c0_88 = arith.constant 0 : index
    %c128_89 = arith.constant 128 : index
    %169 = vector.load %arg12[%c0_88, %c128_89] : memref<16x512xf32, #tpu.memory_space<vmem>>, vector<3x256xf32>
    tpu.vector_store %arg12[%c0_88, %c128_89], %166 {strides = array<i32>} : memref<16x512xf32, #tpu.memory_space<vmem>>, vector<3x256xf32>,
    %cst_90 = arith.constant 0.000000e+00 : f32
    %170 = vector.broadcast %cst_90 : f32 to vector<8x256xf32>
    %c0_91 = arith.constant 0 : index
    %c111_92 = arith.constant 111 : index
    %171 = vector.load %arg12[%c0_91, %c111_92] : memref<16x512xf32, #tpu.memory_space<vmem>>, vector<16x256xf32>
    %c-1_i32_93 = arith.constant -1 : i32
    %172 = vector.broadcast %c-1_i32_93 : i32 to vector<1x256xi32>
    %173 = arith.addi %16, %172 : vector<1x256xi32>
    %c0_i32_94 = arith.constant 0 : i32
    %174 = vector.broadcast %c0_i32_94 : i32 to vector<1x256xi32>
    %175 = arith.cmpi sge, %173, %174 : vector<1x256xi32>
    %c-1_i32_95 = arith.constant -1 : i32
    %176 = vector.broadcast %c-1_i32_95 : i32 to vector<1x256xi32>
    %177 = arith.addi %16, %176 : vector<1x256xi32>
    %c16_i32_96 = arith.constant 16 : i32
    %178 = vector.broadcast %c16_i32_96 : i32 to vector<1x256xi32>
    %179 = arith.cmpi slt, %177, %178 : vector<1x256xi32>
    %180 = arith.andi %175, %179 : vector<1x256xi1>
    %cst_97 = arith.constant 0.000000e+00 : f32
    %181 = vector.shape_cast %180 : vector<1x256xi1> to vector<1x256xi1>
    %182 = vector.broadcast %181 : vector<1x256xi1> to vector<16x256xi1>
    %183 = vector.broadcast %cst_97 : f32 to vector<16x256xf32>
    %184 = arith.select %182, %171, %183 : vector<16x256xi1>, vector<16x256xf32>
    %c0_98 = arith.constant 0 : index
    %c0_99 = arith.constant 0 : index
    %c0_100 = arith.constant 0 : index
    %185 = vector.load %arg7[%c0_98, %c0_99, %c0_100] : memref<9x8x16xf32, #tpu.memory_space<vmem>>, vector<1x8x16xf32>
    %186 = vector.shape_cast %185 : vector<1x8x16xf32> to vector<8x16xf32>
    %cst_101 = arith.constant dense<0.000000e+00> : vector<8x256xf32>
    %187 = tpu.matmul %186, %184, %cst_101 {dimension_numbers = #tpu.dot_dimension_numbers<[1], [0], [0], [1], [0, 0, 1, 1], [], []>} : vector<8x16xf32>, vector<16x256xf32>, vector<8x256xf32> -> vector<8x256xf32>
    %188 = arith.addf %170, %187 : vector<8x256xf32>
    %c0_102 = arith.constant 0 : index
    %c112_103 = arith.constant 112 : index
    %189 = vector.load %arg12[%c0_102, %c112_103] : memref<16x512xf32, #tpu.memory_space<vmem>>, vector<16x256xf32>
    %c1_104 = arith.constant 1 : index
    %c0_105 = arith.constant 0 : index
    %c0_106 = arith.constant 0 : index
    %190 = vector.load %arg7[%c1_104, %c0_105, %c0_106] : memref<9x8x16xf32, #tpu.memory_space<vmem>>, vector<1x8x16xf32>
    %191 = vector.shape_cast %190 : vector<1x8x16xf32> to vector<8x16xf32>
    %cst_107 = arith.constant dense<0.000000e+00> : vector<8x256xf32>
    %192 = tpu.matmul %191, %189, %cst_107 {dimension_numbers = #tpu.dot_dimension_numbers<[1], [0], [0], [1], [0, 0, 1, 1], [], []>} : vector<8x16xf32>, vector<16x256xf32>, vector<8x256xf32> -> vector<8x256xf32>
    %193 = arith.addf %188, %192 : vector<8x256xf32>
    %c0_108 = arith.constant 0 : index
    %c113_109 = arith.constant 113 : index
    %194 = vector.load %arg12[%c0_108, %c113_109] : memref<16x512xf32, #tpu.memory_space<vmem>>, vector<16x256xf32>
    %c1_i32_110 = arith.constant 1 : i32
    %195 = vector.broadcast %c1_i32_110 : i32 to vector<1x256xi32>
    %196 = arith.addi %16, %195 : vector<1x256xi32>
    %c0_i32_111 = arith.constant 0 : i32
    %197 = vector.broadcast %c0_i32_111 : i32 to vector<1x256xi32>
    %198 = arith.cmpi sge, %196, %197 : vector<1x256xi32>
    %c1_i32_112 = arith.constant 1 : i32
    %199 = vector.broadcast %c1_i32_112 : i32 to vector<1x256xi32>
    %200 = arith.addi %16, %199 : vector<1x256xi32>
    %c16_i32_113 = arith.constant 16 : i32
    %201 = vector.broadcast %c16_i32_113 : i32 to vector<1x256xi32>
    %202 = arith.cmpi slt, %200, %201 : vector<1x256xi32>
    %203 = arith.andi %198, %202 : vector<1x256xi1>
    %cst_114 = arith.constant 0.000000e+00 : f32
    %204 = vector.shape_cast %203 : vector<1x256xi1> to vector<1x256xi1>
    %205 = vector.broadcast %204 : vector<1x256xi1> to vector<16x256xi1>
    %206 = vector.broadcast %cst_114 : f32 to vector<16x256xf32>
    %207 = arith.select %205, %194, %206 : vector<16x256xi1>, vector<16x256xf32>
    %c2_115 = arith.constant 2 : index
    %c0_116 = arith.constant 0 : index
    %c0_117 = arith.constant 0 : index
    %208 = vector.load %arg7[%c2_115, %c0_116, %c0_117] : memref<9x8x16xf32, #tpu.memory_space<vmem>>, vector<1x8x16xf32>
    %209 = vector.shape_cast %208 : vector<1x8x16xf32> to vector<8x16xf32>
    %cst_118 = arith.constant dense<0.000000e+00> : vector<8x256xf32>
    %210 = tpu.matmul %209, %207, %cst_118 {dimension_numbers = #tpu.dot_dimension_numbers<[1], [0], [0], [1], [0, 0, 1, 1], [], []>} : vector<8x16xf32>, vector<16x256xf32>, vector<8x256xf32> -> vector<8x256xf32>
    %211 = arith.addf %193, %210 : vector<8x256xf32>
    %c0_119 = arith.constant 0 : index
    %c127_120 = arith.constant 127 : index
    %212 = vector.load %arg12[%c0_119, %c127_120] : memref<16x512xf32, #tpu.memory_space<vmem>>, vector<16x256xf32>
    %c-1_i32_121 = arith.constant -1 : i32
    %213 = vector.broadcast %c-1_i32_121 : i32 to vector<1x256xi32>
    %214 = arith.addi %16, %213 : vector<1x256xi32>
    %c0_i32_122 = arith.constant 0 : i32
    %215 = vector.broadcast %c0_i32_122 : i32 to vector<1x256xi32>
    %216 = arith.cmpi sge, %214, %215 : vector<1x256xi32>
    %c-1_i32_123 = arith.constant -1 : i32
    %217 = vector.broadcast %c-1_i32_123 : i32 to vector<1x256xi32>
    %218 = arith.addi %16, %217 : vector<1x256xi32>
    %c16_i32_124 = arith.constant 16 : i32
    %219 = vector.broadcast %c16_i32_124 : i32 to vector<1x256xi32>
    %220 = arith.cmpi slt, %218, %219 : vector<1x256xi32>
    %221 = arith.andi %216, %220 : vector<1x256xi1>
    %cst_125 = arith.constant 0.000000e+00 : f32
    %222 = vector.shape_cast %221 : vector<1x256xi1> to vector<1x256xi1>
    %223 = vector.broadcast %222 : vector<1x256xi1> to vector<16x256xi1>
    %224 = vector.broadcast %cst_125 : f32 to vector<16x256xf32>
    %225 = arith.select %223, %212, %224 : vector<16x256xi1>, vector<16x256xf32>
    %c3_126 = arith.constant 3 : index
    %c0_127 = arith.constant 0 : index
    %c0_128 = arith.constant 0 : index
    %226 = vector.load %arg7[%c3_126, %c0_127, %c0_128] : memref<9x8x16xf32, #tpu.memory_space<vmem>>, vector<1x8x16xf32>
    %227 = vector.shape_cast %226 : vector<1x8x16xf32> to vector<8x16xf32>
    %cst_129 = arith.constant dense<0.000000e+00> : vector<8x256xf32>
    %228 = tpu.matmul %227, %225, %cst_129 {dimension_numbers = #tpu.dot_dimension_numbers<[1], [0], [0], [1], [0, 0, 1, 1], [], []>} : vector<8x16xf32>, vector<16x256xf32>, vector<8x256xf32> -> vector<8x256xf32>
    %229 = arith.addf %211, %228 : vector<8x256xf32>
    %c0_130 = arith.constant 0 : index
    %c128_131 = arith.constant 128 : index
    %230 = vector.load %arg12[%c0_130, %c128_131] : memref<16x512xf32, #tpu.memory_space<vmem>>, vector<16x256xf32>
    %c4_132 = arith.constant 4 : index
    %c0_133 = arith.constant 0 : index
    %c0_134 = arith.constant 0 : index
    %231 = vector.load %arg7[%c4_132, %c0_133, %c0_134] : memref<9x8x16xf32, #tpu.memory_space<vmem>>, vector<1x8x16xf32>
    %232 = vector.shape_cast %231 : vector<1x8x16xf32> to vector<8x16xf32>
    %cst_135 = arith.constant dense<0.000000e+00> : vector<8x256xf32>
    %233 = tpu.matmul %232, %230, %cst_135 {dimension_numbers = #tpu.dot_dimension_numbers<[1], [0], [0], [1], [0, 0, 1, 1], [], []>} : vector<8x16xf32>, vector<16x256xf32>, vector<8x256xf32> -> vector<8x256xf32>
    %234 = arith.addf %229, %233 : vector<8x256xf32>
    %c0_136 = arith.constant 0 : index
    %c129_137 = arith.constant 129 : index
    %235 = vector.load %arg12[%c0_136, %c129_137] : memref<16x512xf32, #tpu.memory_space<vmem>>, vector<16x256xf32>
    %c1_i32_138 = arith.constant 1 : i32
    %236 = vector.broadcast %c1_i32_138 : i32 to vector<1x256xi32>
    %237 = arith.addi %16, %236 : vector<1x256xi32>
    %c0_i32_139 = arith.constant 0 : i32
    %238 = vector.broadcast %c0_i32_139 : i32 to vector<1x256xi32>
    %239 = arith.cmpi sge, %237, %238 : vector<1x256xi32>
    %c1_i32_140 = arith.constant 1 : i32
    %240 = vector.broadcast %c1_i32_140 : i32 to vector<1x256xi32>
    %241 = arith.addi %16, %240 : vector<1x256xi32>
    %c16_i32_141 = arith.constant 16 : i32
    %242 = vector.broadcast %c16_i32_141 : i32 to vector<1x256xi32>
    %243 = arith.cmpi slt, %241, %242 : vector<1x256xi32>
    %244 = arith.andi %239, %243 : vector<1x256xi1>
    %cst_142 = arith.constant 0.000000e+00 : f32
    %245 = vector.shape_cast %244 : vector<1x256xi1> to vector<1x256xi1>
    %246 = vector.broadcast %245 : vector<1x256xi1> to vector<16x256xi1>
    %247 = vector.broadcast %cst_142 : f32 to vector<16x256xf32>
    %248 = arith.select %246, %235, %247 : vector<16x256xi1>, vector<16x256xf32>
    %c5_143 = arith.constant 5 : index
    %c0_144 = arith.constant 0 : index
    %c0_145 = arith.constant 0 : index
    %249 = vector.load %arg7[%c5_143, %c0_144, %c0_145] : memref<9x8x16xf32, #tpu.memory_space<vmem>>, vector<1x8x16xf32>
    %250 = vector.shape_cast %249 : vector<1x8x16xf32> to vector<8x16xf32>
    %cst_146 = arith.constant dense<0.000000e+00> : vector<8x256xf32>
    %251 = tpu.matmul %250, %248, %cst_146 {dimension_numbers = #tpu.dot_dimension_numbers<[1], [0], [0], [1], [0, 0, 1, 1], [], []>} : vector<8x16xf32>, vector<16x256xf32>, vector<8x256xf32> -> vector<8x256xf32>
    %252 = arith.addf %234, %251 : vector<8x256xf32>
    %c0_147 = arith.constant 0 : index
    %c143_148 = arith.constant 143 : index
    %253 = vector.load %arg12[%c0_147, %c143_148] : memref<16x512xf32, #tpu.memory_space<vmem>>, vector<16x256xf32>
    %c-1_i32_149 = arith.constant -1 : i32
    %254 = vector.broadcast %c-1_i32_149 : i32 to vector<1x256xi32>
    %255 = arith.addi %16, %254 : vector<1x256xi32>
    %c0_i32_150 = arith.constant 0 : i32
    %256 = vector.broadcast %c0_i32_150 : i32 to vector<1x256xi32>
    %257 = arith.cmpi sge, %255, %256 : vector<1x256xi32>
    %c-1_i32_151 = arith.constant -1 : i32
    %258 = vector.broadcast %c-1_i32_151 : i32 to vector<1x256xi32>
    %259 = arith.addi %16, %258 : vector<1x256xi32>
    %c16_i32_152 = arith.constant 16 : i32
    %260 = vector.broadcast %c16_i32_152 : i32 to vector<1x256xi32>
    %261 = arith.cmpi slt, %259, %260 : vector<1x256xi32>
    %262 = arith.andi %257, %261 : vector<1x256xi1>
    %cst_153 = arith.constant 0.000000e+00 : f32
    %263 = vector.shape_cast %262 : vector<1x256xi1> to vector<1x256xi1>
    %264 = vector.broadcast %263 : vector<1x256xi1> to vector<16x256xi1>
    %265 = vector.broadcast %cst_153 : f32 to vector<16x256xf32>
    %266 = arith.select %264, %253, %265 : vector<16x256xi1>, vector<16x256xf32>
    %c6_154 = arith.constant 6 : index
    %c0_155 = arith.constant 0 : index
    %c0_156 = arith.constant 0 : index
    %267 = vector.load %arg7[%c6_154, %c0_155, %c0_156] : memref<9x8x16xf32, #tpu.memory_space<vmem>>, vector<1x8x16xf32>
    %268 = vector.shape_cast %267 : vector<1x8x16xf32> to vector<8x16xf32>
    %cst_157 = arith.constant dense<0.000000e+00> : vector<8x256xf32>
    %269 = tpu.matmul %268, %266, %cst_157 {dimension_numbers = #tpu.dot_dimension_numbers<[1], [0], [0], [1], [0, 0, 1, 1], [], []>} : vector<8x16xf32>, vector<16x256xf32>, vector<8x256xf32> -> vector<8x256xf32>
    %270 = arith.addf %252, %269 : vector<8x256xf32>
    %c0_158 = arith.constant 0 : index
    %c144_159 = arith.constant 144 : index
    %271 = vector.load %arg12[%c0_158, %c144_159] : memref<16x512xf32, #tpu.memory_space<vmem>>, vector<16x256xf32>
    %c7_160 = arith.constant 7 : index
    %c0_161 = arith.constant 0 : index
    %c0_162 = arith.constant 0 : index
    %272 = vector.load %arg7[%c7_160, %c0_161, %c0_162] : memref<9x8x16xf32, #tpu.memory_space<vmem>>, vector<1x8x16xf32>
    %273 = vector.shape_cast %272 : vector<1x8x16xf32> to vector<8x16xf32>
    %cst_163 = arith.constant dense<0.000000e+00> : vector<8x256xf32>
    %274 = tpu.matmul %273, %271, %cst_163 {dimension_numbers = #tpu.dot_dimension_numbers<[1], [0], [0], [1], [0, 0, 1, 1], [], []>} : vector<8x16xf32>, vector<16x256xf32>, vector<8x256xf32> -> vector<8x256xf32>
    %275 = arith.addf %270, %274 : vector<8x256xf32>
    %c0_164 = arith.constant 0 : index
    %c145_165 = arith.constant 145 : index
    %276 = vector.load %arg12[%c0_164, %c145_165] : memref<16x512xf32, #tpu.memory_space<vmem>>, vector<16x256xf32>
    %c1_i32_166 = arith.constant 1 : i32
    %277 = vector.broadcast %c1_i32_166 : i32 to vector<1x256xi32>
    %278 = arith.addi %16, %277 : vector<1x256xi32>
    %c0_i32_167 = arith.constant 0 : i32
    %279 = vector.broadcast %c0_i32_167 : i32 to vector<1x256xi32>
    %280 = arith.cmpi sge, %278, %279 : vector<1x256xi32>
    %c1_i32_168 = arith.constant 1 : i32
    %281 = vector.broadcast %c1_i32_168 : i32 to vector<1x256xi32>
    %282 = arith.addi %16, %281 : vector<1x256xi32>
    %c16_i32_169 = arith.constant 16 : i32
    %283 = vector.broadcast %c16_i32_169 : i32 to vector<1x256xi32>
    %284 = arith.cmpi slt, %282, %283 : vector<1x256xi32>
    %285 = arith.andi %280, %284 : vector<1x256xi1>
    %cst_170 = arith.constant 0.000000e+00 : f32
    %286 = vector.shape_cast %285 : vector<1x256xi1> to vector<1x256xi1>
    %287 = vector.broadcast %286 : vector<1x256xi1> to vector<16x256xi1>
    %288 = vector.broadcast %cst_170 : f32 to vector<16x256xf32>
    %289 = arith.select %287, %276, %288 : vector<16x256xi1>, vector<16x256xf32>
    %c8_171 = arith.constant 8 : index
    %c0_172 = arith.constant 0 : index
    %c0_173 = arith.constant 0 : index
    %290 = vector.load %arg7[%c8_171, %c0_172, %c0_173] : memref<9x8x16xf32, #tpu.memory_space<vmem>>, vector<1x8x16xf32>
    %291 = vector.shape_cast %290 : vector<1x8x16xf32> to vector<8x16xf32>
    %cst_174 = arith.constant dense<0.000000e+00> : vector<8x256xf32>
    %292 = tpu.matmul %291, %289, %cst_174 {dimension_numbers = #tpu.dot_dimension_numbers<[1], [0], [0], [1], [0, 0, 1, 1], [], []>} : vector<8x16xf32>, vector<16x256xf32>, vector<8x256xf32> -> vector<8x256xf32>
    %293 = arith.addf %275, %292 : vector<8x256xf32>
    %c0_175 = arith.constant 0 : index
    %c0_176 = arith.constant 0 : index
    %294 = vector.load %arg8[%c0_175, %c0_176] : memref<8x1xf32, #tpu.memory_space<vmem>>, vector<8x1xf32>
    %295 = vector.broadcast %294 : vector<8x1xf32> to vector<8x256xf32>
    %296 = arith.addf %293, %295 : vector<8x256xf32>
    %297 = vector.extract_strided_slice %296 {offsets = [0, 0], sizes = [3, 256], strides = [1, 1]} : vector<8x256xf32> to vector<3x256xf32>
    %cst_177 = arith.constant 0.000000e+00 : f32
    %298 = vector.broadcast %cst_177 : f32 to vector<3x256xf32>
    %299 = arith.maximumf %297, %298 : vector<3x256xf32>
    %c0_178 = arith.constant 0 : index
    %c0_179 = arith.constant 0 : index
    %300 = vector.load %arg4[%c0_178, %c0_179] : memref<3x256xf32, #tpu.memory_space<vmem>>, vector<3x256xf32>
    %301 = arith.subf %300, %299 : vector<3x256xf32>
    %cst_180 = arith.constant 0.000000e+00 : f32
    %302 = vector.broadcast %cst_180 : f32 to vector<3x256xf32>
    %303 = arith.maximumf %301, %302 : vector<3x256xf32>
    %c0_181 = arith.constant 0 : index
    %c0_182 = arith.constant 0 : index
    %304 = vector.load %arg9[%c0_181, %c0_182] : memref<6x256xf32, #tpu.memory_space<vmem>>, vector<3x256xf32>
    tpu.vector_store %arg9[%c0_181, %c0_182], %303 {strides = array<i32>} : memref<6x256xf32, #tpu.memory_space<vmem>>, vector<3x256xf32>,
    %305 = arith.subf %299, %300 : vector<3x256xf32>
    %cst_183 = arith.constant 0.000000e+00 : f32
    %306 = vector.broadcast %cst_183 : f32 to vector<3x256xf32>
    %307 = arith.maximumf %305, %306 : vector<3x256xf32>
    %c3_184 = arith.constant 3 : index
    %c0_185 = arith.constant 0 : index
    %308 = vector.load %arg9[%c3_184, %c0_185] : memref<6x256xf32, #tpu.memory_space<vmem>>, vector<3x256xf32>
    tpu.vector_store %arg9[%c3_184, %c0_185], %307 {strides = array<i32>} : memref<6x256xf32, #tpu.memory_space<vmem>>, vector<3x256xf32>,
    return
  }
  func.func @transform_0(%arg0: i32) -> (i32, i32) {
    %c0_i32 = arith.constant 0 : i32
    %c0_i32_0 = arith.constant 0 : i32
    return %c0_i32, %arg0 : i32, i32
  }
  func.func @transform_1(%arg0: i32) -> (i32, i32) {
    %c0_i32 = arith.constant 0 : i32
    %c0_i32_0 = arith.constant 0 : i32
    return %c0_i32, %arg0 : i32, i32
  }
  func.func @transform_2(%arg0: i32) -> (i32, i32) {
    %c0_i32 = arith.constant 0 : i32
    %c0_i32_0 = arith.constant 0 : i32
    return %c0_i32, %arg0 : i32, i32
  }
  func.func @transform_3(%arg0: i32) -> (i32, i32) {
    %c0_i32 = arith.constant 0 : i32
    %c0_i32_0 = arith.constant 0 : i32
    return %c0_i32, %arg0 : i32, i32
  }
  func.func @transform_4(%arg0: i32) -> (i32, i32, i32) {
    %c0_i32 = arith.constant 0 : i32
    %c0_i32_0 = arith.constant 0 : i32
    %c0_i32_1 = arith.constant 0 : i32
    %c0_i32_2 = arith.constant 0 : i32
    return %c0_i32, %c0_i32_0, %c0_i32_1 : i32, i32, i32
  }
  func.func @transform_5(%arg0: i32) -> (i32, i32) {
    %c0_i32 = arith.constant 0 : i32
    %c0_i32_0 = arith.constant 0 : i32
    %c0_i32_1 = arith.constant 0 : i32
    return %c0_i32, %c0_i32_0 : i32, i32
  }
  func.func @transform_6(%arg0: i32) -> (i32, i32, i32) {
    %c0_i32 = arith.constant 0 : i32
    %c0_i32_0 = arith.constant 0 : i32
    %c0_i32_1 = arith.constant 0 : i32
    %c0_i32_2 = arith.constant 0 : i32
    return %c0_i32, %c0_i32_0, %c0_i32_1 : i32, i32, i32
  }
  func.func @transform_7(%arg0: i32) -> (i32, i32) {
    %c0_i32 = arith.constant 0 : i32
    %c0_i32_0 = arith.constant 0 : i32
    %c0_i32_1 = arith.constant 0 : i32
    return %c0_i32, %c0_i32_0 : i32, i32
  }
  func.func @transform_8(%arg0: i32) -> (i32, i32) {
    %c0_i32 = arith.constant 0 : i32
    %c0_i32_0 = arith.constant 0 : i32
    return %c0_i32, %arg0 : i32, i32
  }
  func.func @transform_9(%arg0: i32) -> (i32, i32) {
    %c0_i32 = arith.constant 0 : i32
    %c0_i32_0 = arith.constant 0 : i32
    return %c0_i32, %arg0 : i32, i32
  }
  func.func @transform_10(%arg0: i32) -> (i32, i32) {
    %c0_i32 = arith.constant 0 : i32
    %c0_i32_0 = arith.constant 0 : i32
    return %c0_i32, %arg0 : i32, i32
  }
}

</mosaic_0001>

<llo_original>
// kernel: build_one_layer_forward.1
$region0: #{build_one_layer_forward.1}
  #allocation0 [shape = 'u32[]', space=smem, size = 0x4, offset = 0x4, fixed_abs, tag = 'smem constant byte address 0x4 - core index']
  #allocation1 [shape = 'u32[144,128]{1,0:T(1,128)}', space=vmem, size = 0x12000, scoped, tag = 'internal scratch']
  #allocation2 [shape = 'f32[16,512]{1,0:T(8,128)}', space=vmem, size = 0x8000, scoped, tag = 'scratch operand']
  %s0 = inlined_call_operand.vmem [shape: f32[6,512], index: 0, kind: input, shape index: {}]
  %s1 = inlined_call_operand.vmem [shape: f32[3,512], index: 1, kind: input, shape index: {}]
  %s2 = inlined_call_operand.vmem [shape: f32[3,512], index: 2, kind: input, shape index: {}]
  %s3 = inlined_call_operand.vmem [shape: f32[3,512], index: 3, kind: input, shape index: {}]
  %s4 = inlined_call_operand.vmem [shape: f32[9,16,16], index: 4, kind: input, shape index: {}]
  %s5 = inlined_call_operand.vmem [shape: f32[16,1], index: 5, kind: input, shape index: {}]
  %s6 = inlined_call_operand.vmem [shape: f32[9,8,16], index: 6, kind: input, shape index: {}]
  %s7 = inlined_call_operand.vmem [shape: f32[8,1], index: 7, kind: input, shape index: {}]
  %s8 = inlined_call_operand.vmem [shape: f32[6,512], index: 8, kind: output, shape index: {0}]
  %s9 = inlined_call_operand.vmem [shape: f32[3,512], index: 9, kind: output, shape index: {1}]
  %s10 = inlined_call_operand.vmem [shape: f32[3,512], index: 10, kind: output, shape index: {2}]
  %11 = xla_tuple %s8, %s9, %s10
  %s12 = sld [smem:[#allocation0]]
  $region81: #{build_one_layer_forward.1} parent=0
    _
  %s14 = ssub.s32 1, %s12
  %s15 = scalar_select 0, %s14, %s12
  loop: start=0, step=1, limit=4
  $region2: #{build_one_layer_forward.1} parent=0 // loop_pre_header
    _
  $region3: #{build_one_layer_forward.1} parent=0 // loop_header
    %s17 = sphi 0, %s21
    %p18 = scmp.ge.s32.totalorder %s17, 4
    %s27 = sphi 0, %s29
    %s30 = sphi 0, %s27
    %s31 = sphi 0, %s30
    %s47 = sphi 0, %s31
    %s53 = sphi 0, %s55
    %s56 = sphi 0, %s53
    %s57 = sphi 0, %s56
    %s73 = sphi 0, %s57
    %s79 = sphi 0, %s81
    %s82 = sphi 0, %s79
    %s83 = sphi 0, %s82
    %s99 = sphi 0, %s83
    %s105 = sphi 0, %s107
    %s108 = sphi 0, %s105
    %s109 = sphi 0, %s108
    %s125 = sphi 0, %s109
    %s129 = sphi 0, %s129
    %s131 = sphi 0, %s129
    %s132 = sphi 0, %s131
    %s146 = sphi 0, %s132
    %s150 = sphi 0, %s150
    %s152 = sphi 0, %s150
    %s153 = sphi 0, %s152
    %s167 = sphi 0, %s153
    %s171 = sphi 0, %s171
    %s173 = sphi 0, %s171
    %s174 = sphi 0, %s173
    %s188 = sphi 0, %s174
    %s192 = sphi 0, %s192
    %s194 = sphi 0, %s192
    %s195 = sphi 0, %s194
    %s209 = sphi 0, %s195
    %s215 = sphi 0, %s217
    %s218 = sphi 0, %s215
    %s219 = sphi 0, %s218
    %s235 = sphi 0, %s219
    %s241 = sphi 0, %s243
    %s244 = sphi 0, %s241
    %s245 = sphi 0, %s244
    %s261 = sphi 0, %s245
    %s267 = sphi 0, %s269
    %s270 = sphi 0, %s267
    %s271 = sphi 0, %s270
    %s287 = sphi 0, %s271
  $region4: #{build_one_layer_forward.1} parent=0 // loop_header_branch
    %20 = sbr.rel (%p18) target = $region8
  $region5: #{build_one_layer_forward.1} parent=0 // loop_body
    %s22 = ssub.s32 %s17, 1
    %s23 = ssub.s32 %s17, 2
    %s24 = sadd.s32 %s17, 1
    %s25 = ssub.s32 %s17, %s24
    %p26 = scmp.eq.s32.totalorder %s25, 0
    %s28 = sadd.s32 %s27, 1
    %s29 = scalar_select %p26, %s27, %s28
    %p32 = pneg %p26
    %p33 = scmp.eq.s32.totalorder %s17, 1
    %p34 = por %p32, %p33
    %p35 = scmp.ne.s32.totalorder %s27, %s30
    %p36 = scmp.eq.s32.totalorder %s17, 0
    %p37 = por %p35, %p36
    %p38 = scmp.ne.s32.totalorder %s27, %s30
    %p39 = scmp.eq.s32.totalorder %s22, 1
    %p40 = por %p38, %p39
    %p41 = scmp.ne.s32.totalorder %s30, %s31
    %p42 = scmp.eq.s32.totalorder %s22, 0
    %p43 = por %p41, %p42
    %p44 = scmp.ne.s32.totalorder %s30, %s31
    %p45 = scmp.eq.s32.totalorder %s23, 1
    %p46 = por %p44, %p45
    %p48 = scmp.ne.s32.totalorder %s31, %s47
    %p49 = scmp.eq.s32.totalorder %s23, 0
    %p50 = por %p48, %p49
    %s51 = ssub.s32 %s17, %s24
    %p52 = scmp.eq.s32.totalorder %s51, 0
    %s54 = sadd.s32 %s53, 1
    %s55 = scalar_select %p52, %s53, %s54
    %p58 = pneg %p52
    %p59 = scmp.eq.s32.totalorder %s17, 1
    %p60 = por %p58, %p59
    %p61 = scmp.ne.s32.totalorder %s53, %s56
    %p62 = scmp.eq.s32.totalorder %s17, 0
    %p63 = por %p61, %p62
    %p64 = scmp.ne.s32.totalorder %s53, %s56
    %p65 = scmp.eq.s32.totalorder %s22, 1
    %p66 = por %p64, %p65
    %p67 = scmp.ne.s32.totalorder %s56, %s57
    %p68 = scmp.eq.s32.totalorder %s22, 0
    %p69 = por %p67, %p68
    %p70 = scmp.ne.s32.totalorder %s56, %s57
    %p71 = scmp.eq.s32.totalorder %s23, 1
    %p72 = por %p70, %p71
    %p74 = scmp.ne.s32.totalorder %s57, %s73
    %p75 = scmp.eq.s32.totalorder %s23, 0
    %p76 = por %p74, %p75
    %s77 = ssub.s32 %s17, %s24
    %p78 = scmp.eq.s32.totalorder %s77, 0
    %s80 = sadd.s32 %s79, 1
    %s81 = scalar_select %p78, %s79, %s80
    %p84 = pneg %p78
    %p85 = scmp.eq.s32.totalorder %s17, 1
    %p86 = por %p84, %p85
    %p87 = scmp.ne.s32.totalorder %s79, %s82
    %p88 = scmp.eq.s32.totalorder %s17, 0
    %p89 = por %p87, %p88
    %p90 = scmp.ne.s32.totalorder %s79, %s82
    %p91 = scmp.eq.s32.totalorder %s22, 1
    %p92 = por %p90, %p91
    %p93 = scmp.ne.s32.totalorder %s82, %s83
    %p94 = scmp.eq.s32.totalorder %s22, 0
    %p95 = por %p93, %p94
    %p96 = scmp.ne.s32.totalorder %s82, %s83
    %p97 = scmp.eq.s32.totalorder %s23, 1
    %p98 = por %p96, %p97
    %p100 = scmp.ne.s32.totalorder %s83, %s99
    %p101 = scmp.eq.s32.totalorder %s23, 0
    %p102 = por %p100, %p101
    %s103 = ssub.s32 %s17, %s24
    %p104 = scmp.eq.s32.totalorder %s103, 0
    %s106 = sadd.s32 %s105, 1
    %s107 = scalar_select %p104, %s105, %s106
    %p110 = pneg %p104
    %p111 = scmp.eq.s32.totalorder %s17, 1
    %p112 = por %p110, %p111
    %p113 = scmp.ne.s32.totalorder %s105, %s108
    %p114 = scmp.eq.s32.totalorder %s17, 0
    %p115 = por %p113, %p114
    %p116 = scmp.ne.s32.totalorder %s105, %s108
    %p117 = scmp.eq.s32.totalorder %s22, 1
    %p118 = por %p116, %p117
    %p119 = scmp.ne.s32.totalorder %s108, %s109
    %p120 = scmp.eq.s32.totalorder %s22, 0
    %p121 = por %p119, %p120
    %p122 = scmp.ne.s32.totalorder %s108, %s109
    %p123 = scmp.eq.s32.totalorder %s23, 1
    %p124 = por %p122, %p123
    %p126 = scmp.ne.s32.totalorder %s109, %s125
    %p127 = scmp.eq.s32.totalorder %s23, 0
    %p128 = por %p126, %p127
    %s130 = sadd.s32 %s129, 1
    %p133 = scmp.eq.s32.totalorder %s17, 1
    %p134 = scmp.ne.s32.totalorder %s129, %s131
    %p135 = scmp.eq.s32.totalorder %s17, 0
    %p136 = por %p134, %p135
    %p137 = scmp.ne.s32.totalorder %s129, %s131
    %p138 = scmp.eq.s32.totalorder %s22, 1
    %p139 = por %p137, %p138
    %p140 = scmp.ne.s32.totalorder %s131, %s132
    %p141 = scmp.eq.s32.totalorder %s22, 0
    %p142 = por %p140, %p141
    %p143 = scmp.ne.s32.totalorder %s131, %s132
    %p144 = scmp.eq.s32.totalorder %s23, 1
    %p145 = por %p143, %p144
    %p147 = scmp.ne.s32.totalorder %s132, %s146
    %p148 = scmp.eq.s32.totalorder %s23, 0
    %p149 = por %p147, %p148
    %s151 = sadd.s32 %s150, 1
    %p154 = scmp.eq.s32.totalorder %s17, 1
    %p155 = scmp.ne.s32.totalorder %s150, %s152
    %p156 = scmp.eq.s32.totalorder %s17, 0
    %p157 = por %p155, %p156
    %p158 = scmp.ne.s32.totalorder %s150, %s152
    %p159 = scmp.eq.s32.totalorder %s22, 1
    %p160 = por %p158, %p159
    %p161 = scmp.ne.s32.totalorder %s152, %s153
    %p162 = scmp.eq.s32.totalorder %s22, 0
    %p163 = por %p161, %p162
    %p164 = scmp.ne.s32.totalorder %s152, %s153
    %p165 = scmp.eq.s32.totalorder %s23, 1
    %p166 = por %p164, %p165
    %p168 = scmp.ne.s32.totalorder %s153, %s167
    %p169 = scmp.eq.s32.totalorder %s23, 0
    %p170 = por %p168, %p169
    %s172 = sadd.s32 %s171, 1
    %p175 = scmp.eq.s32.totalorder %s17, 1
    %p176 = scmp.ne.s32.totalorder %s171, %s173
    %p177 = scmp.eq.s32.totalorder %s17, 0
    %p178 = por %p176, %p177
    %p179 = scmp.ne.s32.totalorder %s171, %s173
    %p180 = scmp.eq.s32.totalorder %s22, 1
    %p181 = por %p179, %p180
    %p182 = scmp.ne.s32.totalorder %s173, %s174
    %p183 = scmp.eq.s32.totalorder %s22, 0
    %p184 = por %p182, %p183
    %p185 = scmp.ne.s32.totalorder %s173, %s174
    %p186 = scmp.eq.s32.totalorder %s23, 1
    %p187 = por %p185, %p186
    %p189 = scmp.ne.s32.totalorder %s174, %s188
    %p190 = scmp.eq.s32.totalorder %s23, 0
    %p191 = por %p189, %p190
    %s193 = sadd.s32 %s192, 1
    %p196 = scmp.eq.s32.totalorder %s17, 1
    %p197 = scmp.ne.s32.totalorder %s192, %s194
    %p198 = scmp.eq.s32.totalorder %s17, 0
    %p199 = por %p197, %p198
    %p200 = scmp.ne.s32.totalorder %s192, %s194
    %p201 = scmp.eq.s32.totalorder %s22, 1
    %p202 = por %p200, %p201
    %p203 = scmp.ne.s32.totalorder %s194, %s195
    %p204 = scmp.eq.s32.totalorder %s22, 0
    %p205 = por %p203, %p204
    %p206 = scmp.ne.s32.totalorder %s194, %s195
    %p207 = scmp.eq.s32.totalorder %s23, 1
    %p208 = por %p206, %p207
    %p210 = scmp.ne.s32.totalorder %s195, %s209
    %p211 = scmp.eq.s32.totalorder %s23, 0
    %p212 = por %p210, %p211
    %s213 = ssub.s32 %s17, %s24
    %p214 = scmp.eq.s32.totalorder %s213, 0
    %s216 = sadd.s32 %s215, 1
    %s217 = scalar_select %p214, %s215, %s216
    %p220 = pneg %p214
    %p221 = scmp.eq.s32.totalorder %s17, 1
    %p222 = por %p220, %p221
    %p223 = scmp.ne.s32.totalorder %s215, %s218
    %p224 = scmp.eq.s32.totalorder %s17, 0
    %p225 = por %p223, %p224
    %p226 = scmp.ne.s32.totalorder %s215, %s218
    %p227 = scmp.eq.s32.totalorder %s22, 1
    %p228 = por %p226, %p227
    %p229 = scmp.ne.s32.totalorder %s218, %s219
    %p230 = scmp.eq.s32.totalorder %s22, 0
    %p231 = por %p229, %p230
    %p232 = scmp.ne.s32.totalorder %s218, %s219
    %p233 = scmp.eq.s32.totalorder %s23, 1
    %p234 = por %p232, %p233
    %p236 = scmp.ne.s32.totalorder %s219, %s235
    %p237 = scmp.eq.s32.totalorder %s23, 0
    %p238 = por %p236, %p237
    %s239 = ssub.s32 %s17, %s24
    %p240 = scmp.eq.s32.totalorder %s239, 0
    %s242 = sadd.s32 %s241, 1
    %s243 = scalar_select %p240, %s241, %s242
    %p246 = pneg %p240
    %p247 = scmp.eq.s32.totalorder %s17, 1
    %p248 = por %p246, %p247
    %p249 = scmp.ne.s32.totalorder %s241, %s244
    %p250 = scmp.eq.s32.totalorder %s17, 0
    %p251 = por %p249, %p250
    %p252 = scmp.ne.s32.totalorder %s241, %s244
    %p253 = scmp.eq.s32.totalorder %s22, 1
    %p254 = por %p252, %p253
    %p255 = scmp.ne.s32.totalorder %s244, %s245
    %p256 = scmp.eq.s32.totalorder %s22, 0
    %p257 = por %p255, %p256
    %p258 = scmp.ne.s32.totalorder %s244, %s245
    %p259 = scmp.eq.s32.totalorder %s23, 1
    %p260 = por %p258, %p259
    %p262 = scmp.ne.s32.totalorder %s245, %s261
    %p263 = scmp.eq.s32.totalorder %s23, 0
    %p264 = por %p262, %p263
    %s265 = ssub.s32 %s17, %s24
    %p266 = scmp.eq.s32.totalorder %s265, 0
    %s268 = sadd.s32 %s267, 1
    %s269 = scalar_select %p266, %s267, %s268
    %p272 = pneg %p266
    %p273 = scmp.eq.s32.totalorder %s17, 1
    %p274 = por %p272, %p273
    %p275 = scmp.ne.s32.totalorder %s267, %s270
    %p276 = scmp.eq.s32.totalorder %s17, 0
    %p277 = por %p275, %p276
    %p278 = scmp.ne.s32.totalorder %s267, %s270
    %p279 = scmp.eq.s32.totalorder %s22, 1
    %p280 = por %p278, %p279
    %p281 = scmp.ne.s32.totalorder %s270, %s271
    %p282 = scmp.eq.s32.totalorder %s22, 0
    %p283 = por %p281, %p282
    %p284 = scmp.ne.s32.totalorder %s270, %s271
    %p285 = scmp.eq.s32.totalorder %s23, 1
    %p286 = por %p284, %p285
    %p288 = scmp.ne.s32.totalorder %s271, %s287
    %p289 = scmp.eq.s32.totalorder %s23, 0
    %p290 = por %p288, %p289
    %p291 = scmp.le.s32.totalorder 1, %s17
    %p292 = scmp.lt.s32.totalorder %s17, 3
    %p293 = pnand %p291, %p292
    %p294 = pneg %p293
    // Predicated region
    $region9: #{build_one_layer_forward.1} parent=5 // pred_check
      _
    $region10: #{build_one_layer_forward.1} parent=5 // pred_check_branch
      %296 = sbr.rel (%p293) target = $region12
    $region11: #{build_one_layer_forward.1} parent=5 // pred_region
      %s297 = ssub.s32 %s17, 1
      // Predicated region
      $region13: #{build_one_layer_forward.1} parent=11 // pred_check
        %p298 = pneg %p142
      $region14: #{build_one_layer_forward.1} parent=11 // pred_check_branch
        %300 = sbr.rel (%p298) target = $region16
      $region15: #{build_one_layer_forward.1} parent=11 // pred_region
        _
      $region16: #{build_one_layer_forward.1} parent=11 // pred_fallthru
        _
      // Predicated region
      $region17: #{build_one_layer_forward.1} parent=11 // pred_check
        %p301 = pneg %p163
      $region18: #{build_one_layer_forward.1} parent=11 // pred_check_branch
        %303 = sbr.rel (%p301) target = $region20
      $region19: #{build_one_layer_forward.1} parent=11 // pred_region
        _
      $region20: #{build_one_layer_forward.1} parent=11 // pred_fallthru
        _
      // Predicated region
      $region21: #{build_one_layer_forward.1} parent=11 // pred_check
        %p304 = pneg %p184
      $region22: #{build_one_layer_forward.1} parent=11 // pred_check_branch
        %306 = sbr.rel (%p304) target = $region24
      $region23: #{build_one_layer_forward.1} parent=11 // pred_region
        _
      $region24: #{build_one_layer_forward.1} parent=11 // pred_fallthru
        _
      // Predicated region
      $region25: #{build_one_layer_forward.1} parent=11 // pred_check
        %p307 = pneg %p205
      $region26: #{build_one_layer_forward.1} parent=11 // pred_check_branch
        %309 = sbr.rel (%p307) target = $region28
      $region27: #{build_one_layer_forward.1} parent=11 // pred_region
        _
      $region28: #{build_one_layer_forward.1} parent=11 // pred_fallthru
        _
    $region12: #{build_one_layer_forward.1} parent=5 // pred_fallthru
      _
    %p310 = scmp.lt.s32.totalorder %s17, 2
    // Predicated region
    $region29: #{build_one_layer_forward.1} parent=5 // pred_check
      %p311 = pneg %p310
    $region30: #{build_one_layer_forward.1} parent=5 // pred_check_branch
      %313 = sbr.rel (%p311) target = $region32
    $region31: #{build_one_layer_forward.1} parent=5 // pred_region
      // Predicated region
      $region33: #{build_one_layer_forward.1} parent=31 // pred_check
        %p314 = pneg %p37
      $region34: #{build_one_layer_forward.1} parent=31 // pred_check_branch
        %316 = sbr.rel (%p314) target = $region36
      $region35: #{build_one_layer_forward.1} parent=31 // pred_region
        %s317 = smul.u32 2, %s17
        %p318 = scmp.lt.s32.totalorder %s317, 3
        %s319 = scalar_select %p318, %s317, 3
        %s320 = smul.addr %s319, 8
        %s321 = scalar_lea.vmem %s0, %s320
        %s322 = smul.u32 2, %s17
      $region36: #{build_one_layer_forward.1} parent=31 // pred_fallthru
        _
      // Predicated region
      $region37: #{build_one_layer_forward.1} parent=31 // pred_check
        %p323 = pneg %p63
      $region38: #{build_one_layer_forward.1} parent=31 // pred_check_branch
        %325 = sbr.rel (%p323) target = $region40
      $region39: #{build_one_layer_forward.1} parent=31 // pred_region
        %s326 = smul.u32 2, %s17
        %p327 = scmp.lt.s32.totalorder %s326, 3
        %s328 = scalar_select %p327, %s326, 3
        %s329 = smul.addr %s328, 4
        %s330 = scalar_lea.vmem %s1, %s329
        %s331 = smul.u32 2, %s17
      $region40: #{build_one_layer_forward.1} parent=31 // pred_fallthru
        _
      // Predicated region
      $region41: #{build_one_layer_forward.1} parent=31 // pred_check
        %p332 = pneg %p89
      $region42: #{build_one_layer_forward.1} parent=31 // pred_check_branch
        %334 = sbr.rel (%p332) target = $region44
      $region43: #{build_one_layer_forward.1} parent=31 // pred_region
        %s335 = smul.u32 2, %s17
        %p336 = scmp.lt.s32.totalorder %s335, 3
        %s337 = scalar_select %p336, %s335, 3
        %s338 = smul.addr %s337, 4
        %s339 = scalar_lea.vmem %s2, %s338
        %s340 = smul.u32 2, %s17
      $region44: #{build_one_layer_forward.1} parent=31 // pred_fallthru
        _
      // Predicated region
      $region45: #{build_one_layer_forward.1} parent=31 // pred_check
        %p341 = pneg %p115
      $region46: #{build_one_layer_forward.1} parent=31 // pred_check_branch
        %343 = sbr.rel (%p341) target = $region48
      $region47: #{build_one_layer_forward.1} parent=31 // pred_region
        %s344 = smul.u32 2, %s17
        %p345 = scmp.lt.s32.totalorder %s344, 3
        %s346 = scalar_select %p345, %s344, 3
        %s347 = smul.addr %s346, 4
        %s348 = scalar_lea.vmem %s3, %s347
        %s349 = smul.u32 2, %s17
      $region48: #{build_one_layer_forward.1} parent=31 // pred_fallthru
        _
    $region32: #{build_one_layer_forward.1} parent=5 // pred_fallthru
      _
    %p350 = scmp.le.s32.totalorder 1, %s17
    %p351 = scmp.lt.s32.totalorder %s17, 3
    %p352 = pnand %p350, %p351
    %p353 = pneg %p352
    // Predicated region
    $region49: #{build_one_layer_forward.1} parent=5 // pred_check
      _
    $region50: #{build_one_layer_forward.1} parent=5 // pred_check_branch
      %355 = sbr.rel (%p352) target = $region52
    $region51: #{build_one_layer_forward.1} parent=5 // pred_region
      %s356 = ssub.s32 %s17, 1
      %s357 = smul.u32 2, %s22
      %p358 = scmp.lt.s32.totalorder %s357, 3
      %s359 = scalar_select %p358, %s357, 3
      %s360 = smul.addr %s359, 8
      %s361 = scalar_lea.vmem %s0, %s360
      %p362 = pneg %p43
      %p363 = pneg %p40
      %s364 = smul.u32 2, %s22
      %p365 = scmp.lt.s32.totalorder %s364, 3
      %s366 = scalar_select %p365, %s364, 3
      %s367 = smul.addr %s366, 4
      %s368 = scalar_lea.vmem %s1, %s367
      %p369 = pneg %p69
      %p370 = pneg %p66
      %s371 = smul.u32 2, %s22
      %p372 = scmp.lt.s32.totalorder %s371, 3
      %s373 = scalar_select %p372, %s371, 3
      %s374 = smul.addr %s373, 4
      %s375 = scalar_lea.vmem %s2, %s374
      %p376 = pneg %p95
      %p377 = pneg %p92
      %s378 = smul.u32 2, %s22
      %p379 = scmp.lt.s32.totalorder %s378, 3
      %s380 = scalar_select %p379, %s378, 3
      %s381 = smul.addr %s380, 4
      %s382 = scalar_lea.vmem %s3, %s381
      %p383 = pneg %p121
      %p384 = pneg %p118
      %p385 = pneg %p142
      %p386 = pneg %p139
      %p387 = pneg %p163
      %p388 = pneg %p160
      %p389 = pneg %p184
      %p390 = pneg %p181
      %p391 = pneg %p205
      %p392 = pneg %p202
      %p393 = pneg %p231
      %p394 = pneg %p228
      %s395 = smul.u32 2, %s22
      %p396 = scmp.lt.s32.totalorder %s395, 3
      %s397 = scalar_select %p396, %s395, 3
      %s398 = smul.addr %s397, 8
      %s399 = scalar_lea.vmem %s8, %s398
      %p400 = pneg %p257
      %p401 = pneg %p254
      %s402 = smul.u32 2, %s22
      %p403 = scmp.lt.s32.totalorder %s402, 3
      %s404 = scalar_select %p403, %s402, 3
      %s405 = smul.addr %s404, 4
      %s406 = scalar_lea.vmem %s9, %s405
      %p407 = pneg %p283
      %p408 = pneg %p280
      %s409 = smul.u32 2, %s22
      %p410 = scmp.lt.s32.totalorder %s409, 3
      %s411 = scalar_select %p410, %s409, 3
      %s412 = smul.addr %s411, 4
      %s413 = scalar_lea.vmem %s10, %s412
      %s414 = smul.u32 2, %s22
      %p415 = scmp.lt.s32.totalorder %s414, 3
      %s416 = scalar_select %p415, %s414, 3
      %s417 = smul.addr %s416, 8
      %s418 = scalar_lea.vmem %s0, %s417
      %s419 = smul.u32 2, %s22
      %s420 = smul.u32 2, %s22
      %p421 = scmp.lt.s32.totalorder %s420, 3
      %s422 = scalar_select %p421, %s420, 3
      %s423 = smul.addr %s422, 4
      %s424 = scalar_lea.vmem %s1, %s423
      %s425 = smul.u32 2, %s22
      %s426 = smul.u32 2, %s22
      %p427 = scmp.lt.s32.totalorder %s426, 3
      %s428 = scalar_select %p427, %s426, 3
      %s429 = smul.addr %s428, 4
      %s430 = scalar_lea.vmem %s2, %s429
      %s431 = smul.u32 2, %s22
      %s432 = smul.u32 2, %s22
      %p433 = scmp.lt.s32.totalorder %s432, 3
      %s434 = scalar_select %p433, %s432, 3
      %s435 = smul.addr %s434, 4
      %s436 = scalar_lea.vmem %s3, %s435
      %s437 = smul.u32 2, %s22
      %s438 = smul.u32 2, %s22
      %p439 = scmp.lt.s32.totalorder %s438, 3
      %s440 = scalar_select %p439, %s438, 3
      %s441 = smul.addr %s440, 8
      %s442 = scalar_lea.vmem %s8, %s441
      %s443 = smul.u32 2, %s22
      %s444 = smul.u32 2, %s22
      %p445 = scmp.lt.s32.totalorder %s444, 3
      %s446 = scalar_select %p445, %s444, 3
      %s447 = smul.addr %s446, 4
      %s448 = scalar_lea.vmem %s9, %s447
      %s449 = smul.u32 2, %s22
      %s450 = smul.u32 2, %s22
      %p451 = scmp.lt.s32.totalorder %s450, 3
      %s452 = scalar_select %p451, %s450, 3
      %s453 = smul.addr %s452, 4
      %s454 = scalar_lea.vmem %s10, %s453
      %s455 = smul.u32 2, %s22
      %v456 = vlaneseq
      %v457 = vand.u32 %v456, 127
      %v458 = vadd.s32 %v457, 128
      %vm459 = vcmp.lt.s32.totalorder %v457, 0
      %v460 = vsub.s32 0, %v457
      %v461 = vsel %vm459, %v460, %v457
      %v462 = vshrl.u32 %v461, 4
      %v463 = vand.u32 %v461, 15
      %v464 = vsub.s32 0, %v463
      %v465 = vsel %vm459, %v464, %v463
      %vm466 = vcmp.lt.s32.totalorder %v458, 0
      %v467 = vsub.s32 0, %v458
      %v468 = vsel %vm466, %v467, %v458
      %v469 = vshrl.u32 %v468, 4
      %v470 = vand.u32 %v468, 15
      %v471 = vsub.s32 0, %v470
      %v472 = vsel %vm466, %v471, %v470
      %vm473 = vcmp.ne.s32.totalorder %v465, 0
      %vm474 = vcmp.ne.s32.totalorder %v472, 0
      %vm475 = vcmp.lt.s32.totalorder %v465, 0
      %vm476 = vcmp.lt.s32.totalorder %v472, 0
      %vm477 = vmand %vm475, %vm473
      %vm478 = vmand %vm476, %vm474
      %v479 = vadd.s32 %v465, 16
      %v480 = vadd.s32 %v472, 16
      %v481 = vsel %vm477, %v479, %v465
      %v482 = vsel %vm478, %v480, %v472
      %483 = vst [vmem:[#allocation2] sm:$0xff] 0.0
      %484 = vst [vmem:[#allocation2 + $0x8] sm:$0xff] 0.0
      %485 = vst [vmem:[#allocation2 + $0x10] sm:$0xff] 0.0
      %486 = vst [vmem:[#allocation2 + $0x18] sm:$0xff] 0.0
      %487 = vst [vmem:[#allocation2 + $0x20] sm:$0xff] 0.0
      %488 = vst [vmem:[#allocation2 + $0x28] sm:$0xff] 0.0
      %489 = vst [vmem:[#allocation2 + $0x30] sm:$0xff] 0.0
      %490 = vst [vmem:[#allocation2 + $0x38] sm:$0xff] 0.0
      %v491 = vld [vmem:[%s418] sm:$0x3f]
      %v492 = vld [vmem:[%s418 + $0x8] sm:$0x3f]
      %493 = vst [vmem:[#allocation2 + $0x8] sm:$0x3f] %v491
      %494 = vst [vmem:[#allocation2 + $0x10] sm:$0x3f] %v492
      %v495 = vld [vmem:[%s424] sm:$0x77]
      %v497 = vcombine.high %v495, %v495
      %v498 = vrot.slane %v495, 2
      %v499 = vrot.slane %v497, 2
      %502 = vst [vmem:[#allocation2 + $0x8] sm:$0xc0] %v498
      %503 = vst [vmem:[#allocation2 + $0x10] sm:$0xc0] %v499
      %504 = vst [vmem:[#allocation2 + $0x28] sm:$0x1] %v498
      %505 = vst [vmem:[#allocation2 + $0x30] sm:$0x1] %v499
      %v506 = vld [vmem:[#allocation2] sm:$0xff]
      %v507 = vld [vmem:[#allocation2 + $0x8] sm:$0xff]
      %v508 = vld [vmem:[#allocation2 + $0x10] sm:$0xff]
      %v509 = vld [vmem:[#allocation2 + $0x20] sm:$0xff]
      %v510 = vld [vmem:[#allocation2 + $0x28] sm:$0xff]
      %v511 = vld [vmem:[#allocation2 + $0x30] sm:$0xff]
      %v512 = vadd.s32 %v481, 4294967295
      %v513 = vadd.s32 %v482, 4294967295
      %vm514 = vcmp.ge.s32.totalorder %v512, 0
      %vm515 = vcmp.ge.s32.totalorder %v513, 0
      %vm516 = vcmp.lt.s32.totalorder %v512, 16
      %vm517 = vcmp.lt.s32.totalorder %v513, 16
      %vm518 = vmand %vm514, %vm516
      %vm519 = vmand %vm515, %vm517
      %v520 = vsel %vm518, 1, 0
      %v521 = vsel %vm519, 1, 0
      %vm522 = vcmp.eq.s32.totalorder %v520, 1
      %vm523 = vcmp.eq.s32.totalorder %v521, 1
      %530 = vrot.lane.b32.xlu0 %v506, 17
      %v531 = vpop.permute.xlu0 %530
      %532 = vrot.lane.b32.xlu0 %v507, 17
      %v533 = vpop.permute.xlu0 %532
      %534 = vrot.lane.b32.xlu0 %v508, 17
      %v535 = vpop.permute.xlu0 %534
      %536 = vrot.lane.b32.xlu0 %v509, 17
      %v537 = vpop.permute.xlu0 %536
      %538 = vrot.lane.b32.xlu0 %v510, 17
      %v539 = vpop.permute.xlu0 %538
      %540 = vrot.lane.b32.xlu0 %v511, 17
      %v541 = vpop.permute.xlu0 %540
      %vm542 = vcmask 138240
      %v543 = vsel %vm542, %v531, %v533
      %v544 = vsel %vm542, %v533, %v535
      %v545 = vsel %vm542, %v537, %v539
      %v546 = vsel %vm542, %v539, %v541
      %v551 = vsel %vm522, %v543, 0.0
      %v552 = vsel %vm523, %v544, 0.0
      %v553 = vsel %vm522, %v545, 0.0
      %v554 = vsel %vm523, %v546, 0.0
      %v555 = vld [vmem:[%s4] sm:$0xff]
      %v556 = vld [vmem:[%s4 + $0x8] sm:$0xff]
      %s557 = scalar_lea.vmem %s4, 16
      %v558 = vld [vmem:[%s557] sm:$0xff]
      %v559 = vld [vmem:[%s557 + $0x8] sm:$0xff]
      %560 = vrot.lane.b32.xlu0 %v506, 16
      %v561 = vpop.permute.xlu0 %560
      %562 = vrot.lane.b32.xlu0 %v507, 16
      %v563 = vpop.permute.xlu0 %562
      %564 = vrot.lane.b32.xlu0 %v508, 16
      %v565 = vpop.permute.xlu0 %564
      %566 = vrot.lane.b32.xlu0 %v509, 16
      %v567 = vpop.permute.xlu0 %566
      %568 = vrot.lane.b32.xlu0 %v510, 16
      %v569 = vpop.permute.xlu0 %568
      %570 = vrot.lane.b32.xlu0 %v511, 16
      %v571 = vpop.permute.xlu0 %570
      %vm572 = vcmask 130048
      %v573 = vsel %vm572, %v561, %v563
      %v574 = vsel %vm572, %v563, %v565
      %v575 = vsel %vm572, %v567, %v569
      %v576 = vsel %vm572, %v569, %v571
      %v582 = vsel %vm572, %v558, 0
      %v585 = vsel %vm572, %v559, 0
      %587 = vmatprep.subr.mxu0 0.0
      %588 = vmatpush1.msra.mxu0 0.0
      %589 = vmatprep.subr.mxu0 0.0
      %590 = vmatpush1.msra.mxu0 0.0
      %591 = vmatprep.subr.mxu0 0.0
      %592 = vmatpush1.msra.mxu0 0.0
      %593 = vmatprep.subr.mxu0 0.0
      %594 = vmatpush1.msra.mxu0 0.0
      %595 = vmatprep.subr.mxu0 0.0
      %596 = vmatpush1.msra.mxu0 0.0
      %597 = vmatprep.subr.mxu0 0.0
      %598 = vmatpush1.msra.mxu0 0.0
      %599 = vmatprep.subr.mxu0 0.0
      %600 = vmatpush1.msra.mxu0 0.0
      %601 = vmatprep.subr.mxu0 0.0
      %602 = vmatpush1.msra.mxu0 0.0
      %603 = vmatprep.subr.mxu0 0.0
      %604 = vmatpush1.msra.mxu0 0.0
      %605 = vmatprep.subr.mxu0 0.0
      %606 = vmatpush1.msra.mxu0 0.0
      %607 = vmatprep.subr.mxu0 0.0
      %608 = vmatpush1.msra.mxu0 0.0
      %609 = vmatprep.subr.mxu0 0.0
      %610 = vmatpush1.msra.mxu0 0.0
      %611 = vmatprep.subr.mxu0 0.0
      %612 = vmatpush1.msra.mxu0 0.0
      %613 = vmatprep.subr.mxu0 0.0
      %614 = vmatpush1.msra.mxu0 0.0
      %615 = vmatprep.subr.mxu0 %v576
      %616 = vmatpush1.msra.mxu0 %v575
      %617 = vmatprep.subr.mxu0 %v574
      %618 = vmatpush1.msra.mxu0 %v573
      %619 = vmatprep.subr.mxu0 0.0
      %620 = vmatpush2.msra.mxu0 0.0
      %621 = vmatprep.subr.mxu0 0.0
      %622 = vmatpush2.msra.mxu0 0.0
      %623 = vmatprep.subr.mxu0 0.0
      %624 = vmatpush2.msra.mxu0 0.0
      %625 = vmatprep.subr.mxu0 0.0
      %626 = vmatpush2.msra.mxu0 0.0
      %627 = vmatprep.subr.mxu0 0.0
      %628 = vmatpush2.msra.mxu0 0.0
      %629 = vmatprep.subr.mxu0 0.0
      %630 = vmatpush2.msra.mxu0 0.0
      %631 = vmatprep.subr.mxu0 0.0
      %632 = vmatpush2.msra.mxu0 0.0
      %633 = vmatprep.subr.mxu0 0.0
      %634 = vmatpush2.msra.mxu0 0.0
      %635 = vmatprep.subr.mxu0 0.0
      %636 = vmatpush2.msra.mxu0 0.0
      %637 = vmatprep.subr.mxu0 0.0
      %638 = vmatpush2.msra.mxu0 0.0
      %639 = vmatprep.subr.mxu0 0.0
      %640 = vmatpush2.msra.mxu0 0.0
      %641 = vmatprep.subr.mxu0 0.0
      %642 = vmatpush2.msra.mxu0 0.0
      %643 = vmatprep.subr.mxu0 0.0
      %644 = vmatpush2.msra.mxu0 0.0
      %645 = vmatprep.subr.mxu0 0.0
      %646 = vmatpush2.msra.mxu0 0.0
      %647 = vmatprep.subr.mxu0 0.0
      %648 = vmatpush2.msra.mxu0 0.0
      %649 = vmatprep.subr.mxu0 0.0
      %650 = vmatpush2.msra.mxu0 0.0
      %651 = vmatprep.mubr.f32.mxu0 0.0
      %652 = vmatmul.mubr.f32.gmra.mxu0 %v582
      %v653 = vpop.f32.mrf.mxu0
      %v654 = vadd.f32 0.0, %v653
      %v655 = vpop.f32.mrf.mxu0
      %v656 = vadd.f32 0.0, %v655
      %657 = vmatprep.mubr.f32.mxu0 0.0
      %658 = vmatmul.mubr.f32.gmra.mxu0 %v585
      %v659 = vpop.f32.mrf.mxu0
      %v660 = vadd.f32 0.0, %v659
      %v661 = vpop.f32.mrf.mxu0
      %v662 = vadd.f32 0.0, %v661
      %663 = vdwg.mxu0
      %v665 = vsel %vm572, %v555, 0
      %v668 = vsel %vm572, %v556, 0
      %670 = vmatprep.subr.mxu0 0.0
      %671 = vmatpush1.msra.mxu0 0.0
      %672 = vmatprep.subr.mxu0 0.0
      %673 = vmatpush1.msra.mxu0 0.0
      %674 = vmatprep.subr.mxu0 0.0
      %675 = vmatpush1.msra.mxu0 0.0
      %676 = vmatprep.subr.mxu0 0.0
      %677 = vmatpush1.msra.mxu0 0.0
      %678 = vmatprep.subr.mxu0 0.0
      %679 = vmatpush1.msra.mxu0 0.0
      %680 = vmatprep.subr.mxu0 0.0
      %681 = vmatpush1.msra.mxu0 0.0
      %682 = vmatprep.subr.mxu0 0.0
      %683 = vmatpush1.msra.mxu0 0.0
      %684 = vmatprep.subr.mxu0 0.0
      %685 = vmatpush1.msra.mxu0 0.0
      %686 = vmatprep.subr.mxu0 0.0
      %687 = vmatpush1.msra.mxu0 0.0
      %688 = vmatprep.subr.mxu0 0.0
      %689 = vmatpush1.msra.mxu0 0.0
      %690 = vmatprep.subr.mxu0 0.0
      %691 = vmatpush1.msra.mxu0 0.0
      %692 = vmatprep.subr.mxu0 0.0
      %693 = vmatpush1.msra.mxu0 0.0
      %694 = vmatprep.subr.mxu0 0.0
      %695 = vmatpush1.msra.mxu0 0.0
      %696 = vmatprep.subr.mxu0 0.0
      %697 = vmatpush1.msra.mxu0 0.0
      %698 = vmatprep.subr.mxu0 %v554
      %699 = vmatpush1.msra.mxu0 %v553
      %700 = vmatprep.subr.mxu0 %v552
      %701 = vmatpush1.msra.mxu0 %v551
      %702 = vmatprep.subr.mxu0 0.0
      %703 = vmatpush2.msra.mxu0 0.0
      %704 = vmatprep.subr.mxu0 0.0
      %705 = vmatpush2.msra.mxu0 0.0
      %706 = vmatprep.subr.mxu0 0.0
      %707 = vmatpush2.msra.mxu0 0.0
      %708 = vmatprep.subr.mxu0 0.0
      %709 = vmatpush2.msra.mxu0 0.0
      %710 = vmatprep.subr.mxu0 0.0
      %711 = vmatpush2.msra.mxu0 0.0
      %712 = vmatprep.subr.mxu0 0.0
      %713 = vmatpush2.msra.mxu0 0.0
      %714 = vmatprep.subr.mxu0 0.0
      %715 = vmatpush2.msra.mxu0 0.0
      %716 = vmatprep.subr.mxu0 0.0
      %717 = vmatpush2.msra.mxu0 0.0
      %718 = vmatprep.subr.mxu0 0.0
      %719 = vmatpush2.msra.mxu0 0.0
      %720 = vmatprep.subr.mxu0 0.0
      %721 = vmatpush2.msra.mxu0 0.0
      %722 = vmatprep.subr.mxu0 0.0
      %723 = vmatpush2.msra.mxu0 0.0
      %724 = vmatprep.subr.mxu0 0.0
      %725 = vmatpush2.msra.mxu0 0.0
      %726 = vmatprep.subr.mxu0 0.0
      %727 = vmatpush2.msra.mxu0 0.0
      %728 = vmatprep.subr.mxu0 0.0
      %729 = vmatpush2.msra.mxu0 0.0
      %730 = vmatprep.subr.mxu0 0.0
      %731 = vmatpush2.msra.mxu0 0.0
      %732 = vmatprep.subr.mxu0 0.0
      %733 = vmatpush2.msra.mxu0 0.0
      %734 = vmatprep.mubr.f32.mxu0 0.0
      %735 = vmatmul.mubr.f32.gmra.mxu0 %v665
      %v736 = vpop.f32.mrf.mxu0
      %v737 = vadd.f32 %v654, %v736
      %v738 = vpop.f32.mrf.mxu0
      %v739 = vadd.f32 %v656, %v738
      %740 = vmatprep.mubr.f32.mxu0 0.0
      %741 = vmatmul.mubr.f32.gmra.mxu0 %v668
      %v742 = vpop.f32.mrf.mxu0
      %v743 = vadd.f32 %v660, %v742
      %v744 = vpop.f32.mrf.mxu0
      %v745 = vadd.f32 %v662, %v744
      %746 = vdwg.mxu0
      %v747 = vadd.s32 %v481, 1
      %v748 = vadd.s32 %v482, 1
      %vm749 = vcmp.ge.s32.totalorder %v747, 0
      %vm750 = vcmp.ge.s32.totalorder %v748, 0
      %vm751 = vcmp.lt.s32.totalorder %v747, 16
      %vm752 = vcmp.lt.s32.totalorder %v748, 16
      %vm753 = vmand %vm749, %vm751
      %vm754 = vmand %vm750, %vm752
      %v755 = vsel %vm753, 1, 0
      %v756 = vsel %vm754, 1, 0
      %vm757 = vcmp.eq.s32.totalorder %v755, 1
      %vm758 = vcmp.eq.s32.totalorder %v756, 1
      %759 = vrot.lane.b32.xlu0 %v506, 15
      %v760 = vpop.permute.xlu0 %759
      %761 = vrot.lane.b32.xlu0 %v507, 15
      %v762 = vpop.permute.xlu0 %761
      %763 = vrot.lane.b32.xlu0 %v508, 15
      %v764 = vpop.permute.xlu0 %763
      %765 = vrot.lane.b32.xlu0 %v509, 15
      %v766 = vpop.permute.xlu0 %765
      %767 = vrot.lane.b32.xlu0 %v510, 15
      %v768 = vpop.permute.xlu0 %767
      %769 = vrot.lane.b32.xlu0 %v511, 15
      %v770 = vpop.permute.xlu0 %769
      %vm771 = vcmask 121856
      %v772 = vsel %vm771, %v760, %v762
      %v773 = vsel %vm771, %v762, %v764
      %v774 = vsel %vm771, %v766, %v768
      %v775 = vsel %vm771, %v768, %v770
      %v780 = vsel %vm757, %v772, 0.0
      %v781 = vsel %vm758, %v773, 0.0
      %v782 = vsel %vm757, %v774, 0.0
      %v783 = vsel %vm758, %v775, 0.0
      %s784 = scalar_lea.vmem %s4, 32
      %v785 = vld [vmem:[%s784] sm:$0xff]
      %v786 = vld [vmem:[%s784 + $0x8] sm:$0xff]
      %v788 = vsel %vm572, %v785, 0
      %v791 = vsel %vm572, %v786, 0
      %793 = vmatprep.subr.mxu0 0.0
      %794 = vmatpush1.msra.mxu0 0.0
      %795 = vmatprep.subr.mxu0 0.0
      %796 = vmatpush1.msra.mxu0 0.0
      %797 = vmatprep.subr.mxu0 0.0
      %798 = vmatpush1.msra.mxu0 0.0
      %799 = vmatprep.subr.mxu0 0.0
      %800 = vmatpush1.msra.mxu0 0.0
      %801 = vmatprep.subr.mxu0 0.0
      %802 = vmatpush1.msra.mxu0 0.0
      %803 = vmatprep.subr.mxu0 0.0
      %804 = vmatpush1.msra.mxu0 0.0
      %805 = vmatprep.subr.mxu0 0.0
      %806 = vmatpush1.msra.mxu0 0.0
      %807 = vmatprep.subr.mxu0 0.0
      %808 = vmatpush1.msra.mxu0 0.0
      %809 = vmatprep.subr.mxu0 0.0
      %810 = vmatpush1.msra.mxu0 0.0
      %811 = vmatprep.subr.mxu0 0.0
      %812 = vmatpush1.msra.mxu0 0.0
      %813 = vmatprep.subr.mxu0 0.0
      %814 = vmatpush1.msra.mxu0 0.0
      %815 = vmatprep.subr.mxu0 0.0
      %816 = vmatpush1.msra.mxu0 0.0
      %817 = vmatprep.subr.mxu0 0.0
      %818 = vmatpush1.msra.mxu0 0.0
      %819 = vmatprep.subr.mxu0 0.0
      %820 = vmatpush1.msra.mxu0 0.0
      %821 = vmatprep.subr.mxu0 %v783
      %822 = vmatpush1.msra.mxu0 %v782
      %823 = vmatprep.subr.mxu0 %v781
      %824 = vmatpush1.msra.mxu0 %v780
      %825 = vmatprep.subr.mxu0 0.0
      %826 = vmatpush2.msra.mxu0 0.0
      %827 = vmatprep.subr.mxu0 0.0
      %828 = vmatpush2.msra.mxu0 0.0
      %829 = vmatprep.subr.mxu0 0.0
      %830 = vmatpush2.msra.mxu0 0.0
      %831 = vmatprep.subr.mxu0 0.0
      %832 = vmatpush2.msra.mxu0 0.0
      %833 = vmatprep.subr.mxu0 0.0
      %834 = vmatpush2.msra.mxu0 0.0
      %835 = vmatprep.subr.mxu0 0.0
      %836 = vmatpush2.msra.mxu0 0.0
      %837 = vmatprep.subr.mxu0 0.0
      %838 = vmatpush2.msra.mxu0 0.0
      %839 = vmatprep.subr.mxu0 0.0
      %840 = vmatpush2.msra.mxu0 0.0
      %841 = vmatprep.subr.mxu0 0.0
      %842 = vmatpush2.msra.mxu0 0.0
      %843 = vmatprep.subr.mxu0 0.0
      %844 = vmatpush2.msra.mxu0 0.0
      %845 = vmatprep.subr.mxu0 0.0
      %846 = vmatpush2.msra.mxu0 0.0
      %847 = vmatprep.subr.mxu0 0.0
      %848 = vmatpush2.msra.mxu0 0.0
      %849 = vmatprep.subr.mxu0 0.0
      %850 = vmatpush2.msra.mxu0 0.0
      %851 = vmatprep.subr.mxu0 0.0
      %852 = vmatpush2.msra.mxu0 0.0
      %853 = vmatprep.subr.mxu0 0.0
      %854 = vmatpush2.msra.mxu0 0.0
      %855 = vmatprep.subr.mxu0 0.0
      %856 = vmatpush2.msra.mxu0 0.0
      %857 = vmatprep.mubr.f32.mxu0 0.0
      %858 = vmatmul.mubr.f32.gmra.mxu0 %v788
      %v859 = vpop.f32.mrf.mxu0
      %v860 = vadd.f32 0.0, %v859
      %v861 = vpop.f32.mrf.mxu0
      %v862 = vadd.f32 0.0, %v861
      %863 = vmatprep.mubr.f32.mxu0 0.0
      %864 = vmatmul.mubr.f32.gmra.mxu0 %v791
      %v865 = vpop.f32.mrf.mxu0
      %v866 = vadd.f32 0.0, %v865
      %v867 = vpop.f32.mrf.mxu0
      %v868 = vadd.f32 0.0, %v867
      %869 = vdwg.mxu0
      %v870 = vadd.f32 %v737, %v860
      %v871 = vadd.f32 %v739, %v862
      %v872 = vadd.f32 %v743, %v866
      %v873 = vadd.f32 %v745, %v868
      %874 = vrot.lane.b32.xlu0 %v506, 1
      %v875 = vpop.permute.xlu0 %874
      %876 = vrot.lane.b32.xlu0 %v507, 1
      %v877 = vpop.permute.xlu0 %876
      %878 = vrot.lane.b32.xlu0 %v508, 1
      %v879 = vpop.permute.xlu0 %878
      %880 = vrot.lane.b32.xlu0 %v509, 1
      %v881 = vpop.permute.xlu0 %880
      %882 = vrot.lane.b32.xlu0 %v510, 1
      %v883 = vpop.permute.xlu0 %882
      %884 = vrot.lane.b32.xlu0 %v511, 1
      %v885 = vpop.permute.xlu0 %884
      %vm886 = vcmask 7168
      %v887 = vsel %vm886, %v875, %v877
      %v888 = vsel %vm886, %v877, %v879
      %v889 = vsel %vm886, %v881, %v883
      %v890 = vsel %vm886, %v883, %v885
      %v895 = vsel %vm522, %v887, 0.0
      %v896 = vsel %vm523, %v888, 0.0
      %v897 = vsel %vm522, %v889, 0.0
      %v898 = vsel %vm523, %v890, 0.0
      %s899 = scalar_lea.vmem %s4, 48
      %v900 = vld [vmem:[%s899] sm:$0xff]
      %v901 = vld [vmem:[%s899 + $0x8] sm:$0xff]
      %v903 = vsel %vm572, %v900, 0
      %v906 = vsel %vm572, %v901, 0
      %908 = vmatprep.subr.mxu0 0.0
      %909 = vmatpush1.msra.mxu0 0.0
      %910 = vmatprep.subr.mxu0 0.0
      %911 = vmatpush1.msra.mxu0 0.0
      %912 = vmatprep.subr.mxu0 0.0
      %913 = vmatpush1.msra.mxu0 0.0
      %914 = vmatprep.subr.mxu0 0.0
      %915 = vmatpush1.msra.mxu0 0.0
      %916 = vmatprep.subr.mxu0 0.0
      %917 = vmatpush1.msra.mxu0 0.0
      %918 = vmatprep.subr.mxu0 0.0
      %919 = vmatpush1.msra.mxu0 0.0
      %920 = vmatprep.subr.mxu0 0.0
      %921 = vmatpush1.msra.mxu0 0.0
      %922 = vmatprep.subr.mxu0 0.0
      %923 = vmatpush1.msra.mxu0 0.0
      %924 = vmatprep.subr.mxu0 0.0
      %925 = vmatpush1.msra.mxu0 0.0
      %926 = vmatprep.subr.mxu0 0.0
      %927 = vmatpush1.msra.mxu0 0.0
      %928 = vmatprep.subr.mxu0 0.0
      %929 = vmatpush1.msra.mxu0 0.0
      %930 = vmatprep.subr.mxu0 0.0
      %931 = vmatpush1.msra.mxu0 0.0
      %932 = vmatprep.subr.mxu0 0.0
      %933 = vmatpush1.msra.mxu0 0.0
      %934 = vmatprep.subr.mxu0 0.0
      %935 = vmatpush1.msra.mxu0 0.0
      %936 = vmatprep.subr.mxu0 %v898
      %937 = vmatpush1.msra.mxu0 %v897
      %938 = vmatprep.subr.mxu0 %v896
      %939 = vmatpush1.msra.mxu0 %v895
      %940 = vmatprep.subr.mxu0 0.0
      %941 = vmatpush2.msra.mxu0 0.0
      %942 = vmatprep.subr.mxu0 0.0
      %943 = vmatpush2.msra.mxu0 0.0
      %944 = vmatprep.subr.mxu0 0.0
      %945 = vmatpush2.msra.mxu0 0.0
      %946 = vmatprep.subr.mxu0 0.0
      %947 = vmatpush2.msra.mxu0 0.0
      %948 = vmatprep.subr.mxu0 0.0
      %949 = vmatpush2.msra.mxu0 0.0
      %950 = vmatprep.subr.mxu0 0.0
      %951 = vmatpush2.msra.mxu0 0.0
      %952 = vmatprep.subr.mxu0 0.0
      %953 = vmatpush2.msra.mxu0 0.0
      %954 = vmatprep.subr.mxu0 0.0
      %955 = vmatpush2.msra.mxu0 0.0
      %956 = vmatprep.subr.mxu0 0.0
      %957 = vmatpush2.msra.mxu0 0.0
      %958 = vmatprep.subr.mxu0 0.0
      %959 = vmatpush2.msra.mxu0 0.0
      %960 = vmatprep.subr.mxu0 0.0
      %961 = vmatpush2.msra.mxu0 0.0
      %962 = vmatprep.subr.mxu0 0.0
      %963 = vmatpush2.msra.mxu0 0.0
      %964 = vmatprep.subr.mxu0 0.0
      %965 = vmatpush2.msra.mxu0 0.0
      %966 = vmatprep.subr.mxu0 0.0
      %967 = vmatpush2.msra.mxu0 0.0
      %968 = vmatprep.subr.mxu0 0.0
      %969 = vmatpush2.msra.mxu0 0.0
      %970 = vmatprep.subr.mxu0 0.0
      %971 = vmatpush2.msra.mxu0 0.0
      %972 = vmatprep.mubr.f32.mxu0 0.0
      %973 = vmatmul.mubr.f32.gmra.mxu0 %v903
      %v974 = vpop.f32.mrf.mxu0
      %v975 = vadd.f32 0.0, %v974
      %v976 = vpop.f32.mrf.mxu0
      %v977 = vadd.f32 0.0, %v976
      %978 = vmatprep.mubr.f32.mxu0 0.0
      %979 = vmatmul.mubr.f32.gmra.mxu0 %v906
      %v980 = vpop.f32.mrf.mxu0
      %v981 = vadd.f32 0.0, %v980
      %v982 = vpop.f32.mrf.mxu0
      %v983 = vadd.f32 0.0, %v982
      %984 = vdwg.mxu0
      %v985 = vadd.f32 %v870, %v975
      %v986 = vadd.f32 %v871, %v977
      %v987 = vadd.f32 %v872, %v981
      %v988 = vadd.f32 %v873, %v983
      %s989 = scalar_lea.vmem %s4, 64
      %v990 = vld [vmem:[%s989] sm:$0xff]
      %v991 = vld [vmem:[%s989 + $0x8] sm:$0xff]
      %v993 = vsel %vm572, %v990, 0
      %v996 = vsel %vm572, %v991, 0
      %998 = vmatprep.subr.mxu0 0.0
      %999 = vmatpush1.msra.mxu0 0.0
      %1000 = vmatprep.subr.mxu0 0.0
      %1001 = vmatpush1.msra.mxu0 0.0
      %1002 = vmatprep.subr.mxu0 0.0
      %1003 = vmatpush1.msra.mxu0 0.0
      %1004 = vmatprep.subr.mxu0 0.0
      %1005 = vmatpush1.msra.mxu0 0.0
      %1006 = vmatprep.subr.mxu0 0.0
      %1007 = vmatpush1.msra.mxu0 0.0
      %1008 = vmatprep.subr.mxu0 0.0
      %1009 = vmatpush1.msra.mxu0 0.0
      %1010 = vmatprep.subr.mxu0 0.0
      %1011 = vmatpush1.msra.mxu0 0.0
      %1012 = vmatprep.subr.mxu0 0.0
      %1013 = vmatpush1.msra.mxu0 0.0
      %1014 = vmatprep.subr.mxu0 0.0
      %1015 = vmatpush1.msra.mxu0 0.0
      %1016 = vmatprep.subr.mxu0 0.0
      %1017 = vmatpush1.msra.mxu0 0.0
      %1018 = vmatprep.subr.mxu0 0.0
      %1019 = vmatpush1.msra.mxu0 0.0
      %1020 = vmatprep.subr.mxu0 0.0
      %1021 = vmatpush1.msra.mxu0 0.0
      %1022 = vmatprep.subr.mxu0 0.0
      %1023 = vmatpush1.msra.mxu0 0.0
      %1024 = vmatprep.subr.mxu0 0.0
      %1025 = vmatpush1.msra.mxu0 0.0
      %1026 = vmatprep.subr.mxu0 %v511
      %1027 = vmatpush1.msra.mxu0 %v510
      %1028 = vmatprep.subr.mxu0 %v508
      %1029 = vmatpush1.msra.mxu0 %v507
      %1030 = vmatprep.subr.mxu0 0.0
      %1031 = vmatpush2.msra.mxu0 0.0
      %1032 = vmatprep.subr.mxu0 0.0
      %1033 = vmatpush2.msra.mxu0 0.0
      %1034 = vmatprep.subr.mxu0 0.0
      %1035 = vmatpush2.msra.mxu0 0.0
      %1036 = vmatprep.subr.mxu0 0.0
      %1037 = vmatpush2.msra.mxu0 0.0
      %1038 = vmatprep.subr.mxu0 0.0
      %1039 = vmatpush2.msra.mxu0 0.0
      %1040 = vmatprep.subr.mxu0 0.0
      %1041 = vmatpush2.msra.mxu0 0.0
      %1042 = vmatprep.subr.mxu0 0.0
      %1043 = vmatpush2.msra.mxu0 0.0
      %1044 = vmatprep.subr.mxu0 0.0
      %1045 = vmatpush2.msra.mxu0 0.0
      %1046 = vmatprep.subr.mxu0 0.0
      %1047 = vmatpush2.msra.mxu0 0.0
      %1048 = vmatprep.subr.mxu0 0.0
      %1049 = vmatpush2.msra.mxu0 0.0
      %1050 = vmatprep.subr.mxu0 0.0
      %1051 = vmatpush2.msra.mxu0 0.0
      %1052 = vmatprep.subr.mxu0 0.0
      %1053 = vmatpush2.msra.mxu0 0.0
      %1054 = vmatprep.subr.mxu0 0.0
      %1055 = vmatpush2.msra.mxu0 0.0
      %1056 = vmatprep.subr.mxu0 0.0
      %1057 = vmatpush2.msra.mxu0 0.0
      %1058 = vmatprep.subr.mxu0 0.0
      %1059 = vmatpush2.msra.mxu0 0.0
      %1060 = vmatprep.subr.mxu0 0.0
      %1061 = vmatpush2.msra.mxu0 0.0
      %1062 = vmatprep.mubr.f32.mxu0 0.0
      %1063 = vmatmul.mubr.f32.gmra.mxu0 %v993
      %v1064 = vpop.f32.mrf.mxu0
      %v1065 = vadd.f32 0.0, %v1064
      %v1066 = vpop.f32.mrf.mxu0
      %v1067 = vadd.f32 0.0, %v1066
      %1068 = vmatprep.mubr.f32.mxu0 0.0
      %1069 = vmatmul.mubr.f32.gmra.mxu0 %v996
      %v1070 = vpop.f32.mrf.mxu0
      %v1071 = vadd.f32 0.0, %v1070
      %v1072 = vpop.f32.mrf.mxu0
      %v1073 = vadd.f32 0.0, %v1072
      %1074 = vdwg.mxu0
      %v1075 = vadd.f32 %v985, %v1065
      %v1076 = vadd.f32 %v986, %v1067
      %v1077 = vadd.f32 %v987, %v1071
      %v1078 = vadd.f32 %v988, %v1073
      %v1079 = vld [vmem:[#allocation2 + $0x8] sm:$0xff]
      %v1080 = vld [vmem:[#allocation2 + $0x10] sm:$0xff]
      %v1081 = vld [vmem:[#allocation2 + $0x18] sm:$0xff]
      %v1082 = vld [vmem:[#allocation2 + $0x28] sm:$0xff]
      %v1083 = vld [vmem:[#allocation2 + $0x30] sm:$0xff]
      %v1084 = vld [vmem:[#allocation2 + $0x38] sm:$0xff]
      %1091 = vrot.lane.b32.xlu0 %v1079, 127
      %v1092 = vpop.permute.xlu0 %1091
      %1093 = vrot.lane.b32.xlu0 %v1080, 127
      %v1094 = vpop.permute.xlu0 %1093
      %1095 = vrot.lane.b32.xlu0 %v1081, 127
      %v1096 = vpop.permute.xlu0 %1095
      %1097 = vrot.lane.b32.xlu0 %v1082, 127
      %v1098 = vpop.permute.xlu0 %1097
      %1099 = vrot.lane.b32.xlu0 %v1083, 127
      %v1100 = vpop.permute.xlu0 %1099
      %1101 = vrot.lane.b32.xlu0 %v1084, 127
      %v1102 = vpop.permute.xlu0 %1101
      %vm1103 = vcmask 1039360
      %v1104 = vsel %vm1103, %v1092, %v1094
      %v1105 = vsel %vm1103, %v1094, %v1096
      %v1106 = vsel %vm1103, %v1098, %v1100
      %v1107 = vsel %vm1103, %v1100, %v1102
      %v1112 = vsel %vm757, %v1104, 0.0
      %v1113 = vsel %vm758, %v1105, 0.0
      %v1114 = vsel %vm757, %v1106, 0.0
      %v1115 = vsel %vm758, %v1107, 0.0
      %s1116 = scalar_lea.vmem %s4, 80
      %v1117 = vld [vmem:[%s1116] sm:$0xff]
      %v1118 = vld [vmem:[%s1116 + $0x8] sm:$0xff]
      %v1120 = vsel %vm572, %v1117, 0
      %v1123 = vsel %vm572, %v1118, 0
      %1125 = vmatprep.subr.mxu0 0.0
      %1126 = vmatpush1.msra.mxu0 0.0
      %1127 = vmatprep.subr.mxu0 0.0
      %1128 = vmatpush1.msra.mxu0 0.0
      %1129 = vmatprep.subr.mxu0 0.0
      %1130 = vmatpush1.msra.mxu0 0.0
      %1131 = vmatprep.subr.mxu0 0.0
      %1132 = vmatpush1.msra.mxu0 0.0
      %1133 = vmatprep.subr.mxu0 0.0
      %1134 = vmatpush1.msra.mxu0 0.0
      %1135 = vmatprep.subr.mxu0 0.0
      %1136 = vmatpush1.msra.mxu0 0.0
      %1137 = vmatprep.subr.mxu0 0.0
      %1138 = vmatpush1.msra.mxu0 0.0
      %1139 = vmatprep.subr.mxu0 0.0
      %1140 = vmatpush1.msra.mxu0 0.0
      %1141 = vmatprep.subr.mxu0 0.0
      %1142 = vmatpush1.msra.mxu0 0.0
      %1143 = vmatprep.subr.mxu0 0.0
      %1144 = vmatpush1.msra.mxu0 0.0
      %1145 = vmatprep.subr.mxu0 0.0
      %1146 = vmatpush1.msra.mxu0 0.0
      %1147 = vmatprep.subr.mxu0 0.0
      %1148 = vmatpush1.msra.mxu0 0.0
      %1149 = vmatprep.subr.mxu0 0.0
      %1150 = vmatpush1.msra.mxu0 0.0
      %1151 = vmatprep.subr.mxu0 0.0
      %1152 = vmatpush1.msra.mxu0 0.0
      %1153 = vmatprep.subr.mxu0 %v1115
      %1154 = vmatpush1.msra.mxu0 %v1114
      %1155 = vmatprep.subr.mxu0 %v1113
      %1156 = vmatpush1.msra.mxu0 %v1112
      %1157 = vmatprep.subr.mxu0 0.0
      %1158 = vmatpush2.msra.mxu0 0.0
      %1159 = vmatprep.subr.mxu0 0.0
      %1160 = vmatpush2.msra.mxu0 0.0
      %1161 = vmatprep.subr.mxu0 0.0
      %1162 = vmatpush2.msra.mxu0 0.0
      %1163 = vmatprep.subr.mxu0 0.0
      %1164 = vmatpush2.msra.mxu0 0.0
      %1165 = vmatprep.subr.mxu0 0.0
      %1166 = vmatpush2.msra.mxu0 0.0
      %1167 = vmatprep.subr.mxu0 0.0
      %1168 = vmatpush2.msra.mxu0 0.0
      %1169 = vmatprep.subr.mxu0 0.0
      %1170 = vmatpush2.msra.mxu0 0.0
      %1171 = vmatprep.subr.mxu0 0.0
      %1172 = vmatpush2.msra.mxu0 0.0
      %1173 = vmatprep.subr.mxu0 0.0
      %1174 = vmatpush2.msra.mxu0 0.0
      %1175 = vmatprep.subr.mxu0 0.0
      %1176 = vmatpush2.msra.mxu0 0.0
      %1177 = vmatprep.subr.mxu0 0.0
      %1178 = vmatpush2.msra.mxu0 0.0
      %1179 = vmatprep.subr.mxu0 0.0
      %1180 = vmatpush2.msra.mxu0 0.0
      %1181 = vmatprep.subr.mxu0 0.0
      %1182 = vmatpush2.msra.mxu0 0.0
      %1183 = vmatprep.subr.mxu0 0.0
      %1184 = vmatpush2.msra.mxu0 0.0
      %1185 = vmatprep.subr.mxu0 0.0
      %1186 = vmatpush2.msra.mxu0 0.0
      %1187 = vmatprep.subr.mxu0 0.0
      %1188 = vmatpush2.msra.mxu0 0.0
      %1189 = vmatprep.mubr.f32.mxu0 0.0
      %1190 = vmatmul.mubr.f32.gmra.mxu0 %v1120
      %v1191 = vpop.f32.mrf.mxu0
      %v1192 = vadd.f32 0.0, %v1191
      %v1193 = vpop.f32.mrf.mxu0
      %v1194 = vadd.f32 0.0, %v1193
      %1195 = vmatprep.mubr.f32.mxu0 0.0
      %1196 = vmatmul.mubr.f32.gmra.mxu0 %v1123
      %v1197 = vpop.f32.mrf.mxu0
      %v1198 = vadd.f32 0.0, %v1197
      %v1199 = vpop.f32.mrf.mxu0
      %v1200 = vadd.f32 0.0, %v1199
      %1201 = vdwg.mxu0
      %v1202 = vadd.f32 %v1075, %v1192
      %v1203 = vadd.f32 %v1076, %v1194
      %v1204 = vadd.f32 %v1077, %v1198
      %v1205 = vadd.f32 %v1078, %v1200
      %1206 = vrot.lane.b32.xlu0 %v1079, 113
      %v1207 = vpop.permute.xlu0 %1206
      %1208 = vrot.lane.b32.xlu0 %v1080, 113
      %v1209 = vpop.permute.xlu0 %1208
      %1210 = vrot.lane.b32.xlu0 %v1081, 113
      %v1211 = vpop.permute.xlu0 %1210
      %1212 = vrot.lane.b32.xlu0 %v1082, 113
      %v1213 = vpop.permute.xlu0 %1212
      %1214 = vrot.lane.b32.xlu0 %v1083, 113
      %v1215 = vpop.permute.xlu0 %1214
      %1216 = vrot.lane.b32.xlu0 %v1084, 113
      %v1217 = vpop.permute.xlu0 %1216
      %vm1218 = vcmask 924672
      %v1219 = vsel %vm1218, %v1207, %v1209
      %v1220 = vsel %vm1218, %v1209, %v1211
      %v1221 = vsel %vm1218, %v1213, %v1215
      %v1222 = vsel %vm1218, %v1215, %v1217
      %v1227 = vsel %vm522, %v1219, 0.0
      %v1228 = vsel %vm523, %v1220, 0.0
      %v1229 = vsel %vm522, %v1221, 0.0
      %v1230 = vsel %vm523, %v1222, 0.0
      %s1231 = scalar_lea.vmem %s4, 96
      %v1232 = vld [vmem:[%s1231] sm:$0xff]
      %v1233 = vld [vmem:[%s1231 + $0x8] sm:$0xff]
      %v1235 = vsel %vm572, %v1232, 0
      %v1238 = vsel %vm572, %v1233, 0
      %1240 = vmatprep.subr.mxu0 0.0
      %1241 = vmatpush1.msra.mxu0 0.0
      %1242 = vmatprep.subr.mxu0 0.0
      %1243 = vmatpush1.msra.mxu0 0.0
      %1244 = vmatprep.subr.mxu0 0.0
      %1245 = vmatpush1.msra.mxu0 0.0
      %1246 = vmatprep.subr.mxu0 0.0
      %1247 = vmatpush1.msra.mxu0 0.0
      %1248 = vmatprep.subr.mxu0 0.0
      %1249 = vmatpush1.msra.mxu0 0.0
      %1250 = vmatprep.subr.mxu0 0.0
      %1251 = vmatpush1.msra.mxu0 0.0
      %1252 = vmatprep.subr.mxu0 0.0
      %1253 = vmatpush1.msra.mxu0 0.0
      %1254 = vmatprep.subr.mxu0 0.0
      %1255 = vmatpush1.msra.mxu0 0.0
      %1256 = vmatprep.subr.mxu0 0.0
      %1257 = vmatpush1.msra.mxu0 0.0
      %1258 = vmatprep.subr.mxu0 0.0
      %1259 = vmatpush1.msra.mxu0 0.0
      %1260 = vmatprep.subr.mxu0 0.0
      %1261 = vmatpush1.msra.mxu0 0.0
      %1262 = vmatprep.subr.mxu0 0.0
      %1263 = vmatpush1.msra.mxu0 0.0
      %1264 = vmatprep.subr.mxu0 0.0
      %1265 = vmatpush1.msra.mxu0 0.0
      %1266 = vmatprep.subr.mxu0 0.0
      %1267 = vmatpush1.msra.mxu0 0.0
      %1268 = vmatprep.subr.mxu0 %v1230
      %1269 = vmatpush1.msra.mxu0 %v1229
      %1270 = vmatprep.subr.mxu0 %v1228
      %1271 = vmatpush1.msra.mxu0 %v1227
      %1272 = vmatprep.subr.mxu0 0.0
      %1273 = vmatpush2.msra.mxu0 0.0
      %1274 = vmatprep.subr.mxu0 0.0
      %1275 = vmatpush2.msra.mxu0 0.0
      %1276 = vmatprep.subr.mxu0 0.0
      %1277 = vmatpush2.msra.mxu0 0.0
      %1278 = vmatprep.subr.mxu0 0.0
      %1279 = vmatpush2.msra.mxu0 0.0
      %1280 = vmatprep.subr.mxu0 0.0
      %1281 = vmatpush2.msra.mxu0 0.0
      %1282 = vmatprep.subr.mxu0 0.0
      %1283 = vmatpush2.msra.mxu0 0.0
      %1284 = vmatprep.subr.mxu0 0.0
      %1285 = vmatpush2.msra.mxu0 0.0
      %1286 = vmatprep.subr.mxu0 0.0
      %1287 = vmatpush2.msra.mxu0 0.0
      %1288 = vmatprep.subr.mxu0 0.0
      %1289 = vmatpush2.msra.mxu0 0.0
      %1290 = vmatprep.subr.mxu0 0.0
      %1291 = vmatpush2.msra.mxu0 0.0
      %1292 = vmatprep.subr.mxu0 0.0
      %1293 = vmatpush2.msra.mxu0 0.0
      %1294 = vmatprep.subr.mxu0 0.0
      %1295 = vmatpush2.msra.mxu0 0.0
      %1296 = vmatprep.subr.mxu0 0.0
      %1297 = vmatpush2.msra.mxu0 0.0
      %1298 = vmatprep.subr.mxu0 0.0
      %1299 = vmatpush2.msra.mxu0 0.0
      %1300 = vmatprep.subr.mxu0 0.0
      %1301 = vmatpush2.msra.mxu0 0.0
      %1302 = vmatprep.subr.mxu0 0.0
      %1303 = vmatpush2.msra.mxu0 0.0
      %1304 = vmatprep.mubr.f32.mxu0 0.0
      %1305 = vmatmul.mubr.f32.gmra.mxu0 %v1235
      %v1306 = vpop.f32.mrf.mxu0
      %v1307 = vadd.f32 0.0, %v1306
      %v1308 = vpop.f32.mrf.mxu0
      %v1309 = vadd.f32 0.0, %v1308
      %1310 = vmatprep.mubr.f32.mxu0 0.0
      %1311 = vmatmul.mubr.f32.gmra.mxu0 %v1238
      %v1312 = vpop.f32.mrf.mxu0
      %v1313 = vadd.f32 0.0, %v1312
      %v1314 = vpop.f32.mrf.mxu0
      %v1315 = vadd.f32 0.0, %v1314
      %1316 = vdwg.mxu0
      %v1317 = vadd.f32 %v1202, %v1307
      %v1318 = vadd.f32 %v1203, %v1309
      %v1319 = vadd.f32 %v1204, %v1313
      %v1320 = vadd.f32 %v1205, %v1315
      %s1321 = scalar_lea.vmem %s4, 112
      %v1322 = vld [vmem:[%s1321] sm:$0xff]
      %v1323 = vld [vmem:[%s1321 + $0x8] sm:$0xff]
      %1324 = vrot.lane.b32.xlu0 %v1079, 112
      %v1325 = vpop.permute.xlu0 %1324
      %1326 = vrot.lane.b32.xlu0 %v1080, 112
      %v1327 = vpop.permute.xlu0 %1326
      %1328 = vrot.lane.b32.xlu0 %v1081, 112
      %v1329 = vpop.permute.xlu0 %1328
      %1330 = vrot.lane.b32.xlu0 %v1082, 112
      %v1331 = vpop.permute.xlu0 %1330
      %1332 = vrot.lane.b32.xlu0 %v1083, 112
      %v1333 = vpop.permute.xlu0 %1332
      %1334 = vrot.lane.b32.xlu0 %v1084, 112
      %v1335 = vpop.permute.xlu0 %1334
      %vm1336 = vcmask 916480
      %v1337 = vsel %vm1336, %v1325, %v1327
      %v1338 = vsel %vm1336, %v1327, %v1329
      %v1339 = vsel %vm1336, %v1331, %v1333
      %v1340 = vsel %vm1336, %v1333, %v1335
      %v1346 = vsel %vm572, %v1322, 0
      %v1349 = vsel %vm572, %v1323, 0
      %1351 = vmatprep.subr.mxu0 0.0
      %1352 = vmatpush1.msra.mxu0 0.0
      %1353 = vmatprep.subr.mxu0 0.0
      %1354 = vmatpush1.msra.mxu0 0.0
      %1355 = vmatprep.subr.mxu0 0.0
      %1356 = vmatpush1.msra.mxu0 0.0
      %1357 = vmatprep.subr.mxu0 0.0
      %1358 = vmatpush1.msra.mxu0 0.0
      %1359 = vmatprep.subr.mxu0 0.0
      %1360 = vmatpush1.msra.mxu0 0.0
      %1361 = vmatprep.subr.mxu0 0.0
      %1362 = vmatpush1.msra.mxu0 0.0
      %1363 = vmatprep.subr.mxu0 0.0
      %1364 = vmatpush1.msra.mxu0 0.0
      %1365 = vmatprep.subr.mxu0 0.0
      %1366 = vmatpush1.msra.mxu0 0.0
      %1367 = vmatprep.subr.mxu0 0.0
      %1368 = vmatpush1.msra.mxu0 0.0
      %1369 = vmatprep.subr.mxu0 0.0
      %1370 = vmatpush1.msra.mxu0 0.0
      %1371 = vmatprep.subr.mxu0 0.0
      %1372 = vmatpush1.msra.mxu0 0.0
      %1373 = vmatprep.subr.mxu0 0.0
      %1374 = vmatpush1.msra.mxu0 0.0
      %1375 = vmatprep.subr.mxu0 0.0
      %1376 = vmatpush1.msra.mxu0 0.0
      %1377 = vmatprep.subr.mxu0 0.0
      %1378 = vmatpush1.msra.mxu0 0.0
      %1379 = vmatprep.subr.mxu0 %v1340
      %1380 = vmatpush1.msra.mxu0 %v1339
      %1381 = vmatprep.subr.mxu0 %v1338
      %1382 = vmatpush1.msra.mxu0 %v1337
      %1383 = vmatprep.subr.mxu0 0.0
      %1384 = vmatpush2.msra.mxu0 0.0
      %1385 = vmatprep.subr.mxu0 0.0
      %1386 = vmatpush2.msra.mxu0 0.0
      %1387 = vmatprep.subr.mxu0 0.0
      %1388 = vmatpush2.msra.mxu0 0.0
      %1389 = vmatprep.subr.mxu0 0.0
      %1390 = vmatpush2.msra.mxu0 0.0
      %1391 = vmatprep.subr.mxu0 0.0
      %1392 = vmatpush2.msra.mxu0 0.0
      %1393 = vmatprep.subr.mxu0 0.0
      %1394 = vmatpush2.msra.mxu0 0.0
      %1395 = vmatprep.subr.mxu0 0.0
      %1396 = vmatpush2.msra.mxu0 0.0
      %1397 = vmatprep.subr.mxu0 0.0
      %1398 = vmatpush2.msra.mxu0 0.0
      %1399 = vmatprep.subr.mxu0 0.0
      %1400 = vmatpush2.msra.mxu0 0.0
      %1401 = vmatprep.subr.mxu0 0.0
      %1402 = vmatpush2.msra.mxu0 0.0
      %1403 = vmatprep.subr.mxu0 0.0
      %1404 = vmatpush2.msra.mxu0 0.0
      %1405 = vmatprep.subr.mxu0 0.0
      %1406 = vmatpush2.msra.mxu0 0.0
      %1407 = vmatprep.subr.mxu0 0.0
      %1408 = vmatpush2.msra.mxu0 0.0
      %1409 = vmatprep.subr.mxu0 0.0
      %1410 = vmatpush2.msra.mxu0 0.0
      %1411 = vmatprep.subr.mxu0 0.0
      %1412 = vmatpush2.msra.mxu0 0.0
      %1413 = vmatprep.subr.mxu0 0.0
      %1414 = vmatpush2.msra.mxu0 0.0
      %1415 = vmatprep.mubr.f32.mxu0 0.0
      %1416 = vmatmul.mubr.f32.gmra.mxu0 %v1346
      %v1417 = vpop.f32.mrf.mxu0
      %v1418 = vadd.f32 0.0, %v1417
      %v1419 = vpop.f32.mrf.mxu0
      %v1420 = vadd.f32 0.0, %v1419
      %1421 = vmatprep.mubr.f32.mxu0 0.0
      %1422 = vmatmul.mubr.f32.gmra.mxu0 %v1349
      %v1423 = vpop.f32.mrf.mxu0
      %v1424 = vadd.f32 0.0, %v1423
      %v1425 = vpop.f32.mrf.mxu0
      %v1426 = vadd.f32 0.0, %v1425
      %1427 = vdwg.mxu0
      %v1428 = vadd.f32 %v1317, %v1418
      %v1429 = vadd.f32 %v1318, %v1420
      %v1430 = vadd.f32 %v1319, %v1424
      %v1431 = vadd.f32 %v1320, %v1426
      %1432 = vrot.lane.b32.xlu0 %v1079, 111
      %v1433 = vpop.permute.xlu0 %1432
      %1434 = vrot.lane.b32.xlu0 %v1080, 111
      %v1435 = vpop.permute.xlu0 %1434
      %1436 = vrot.lane.b32.xlu0 %v1081, 111
      %v1437 = vpop.permute.xlu0 %1436
      %1438 = vrot.lane.b32.xlu0 %v1082, 111
      %v1439 = vpop.permute.xlu0 %1438
      %1440 = vrot.lane.b32.xlu0 %v1083, 111
      %v1441 = vpop.permute.xlu0 %1440
      %1442 = vrot.lane.b32.xlu0 %v1084, 111
      %v1443 = vpop.permute.xlu0 %1442
      %vm1444 = vcmask 908288
      %v1445 = vsel %vm1444, %v1433, %v1435
      %v1446 = vsel %vm1444, %v1435, %v1437
      %v1447 = vsel %vm1444, %v1439, %v1441
      %v1448 = vsel %vm1444, %v1441, %v1443
      %v1453 = vsel %vm757, %v1445, 0.0
      %v1454 = vsel %vm758, %v1446, 0.0
      %v1455 = vsel %vm757, %v1447, 0.0
      %v1456 = vsel %vm758, %v1448, 0.0
      %s1457 = scalar_lea.vmem %s4, 128
      %v1458 = vld [vmem:[%s1457] sm:$0xff]
      %v1459 = vld [vmem:[%s1457 + $0x8] sm:$0xff]
      %v1461 = vsel %vm572, %v1458, 0
      %v1464 = vsel %vm572, %v1459, 0
      %1466 = vmatprep.subr.mxu0 0.0
      %1467 = vmatpush1.msra.mxu0 0.0
      %1468 = vmatprep.subr.mxu0 0.0
      %1469 = vmatpush1.msra.mxu0 0.0
      %1470 = vmatprep.subr.mxu0 0.0
      %1471 = vmatpush1.msra.mxu0 0.0
      %1472 = vmatprep.subr.mxu0 0.0
      %1473 = vmatpush1.msra.mxu0 0.0
      %1474 = vmatprep.subr.mxu0 0.0
      %1475 = vmatpush1.msra.mxu0 0.0
      %1476 = vmatprep.subr.mxu0 0.0
      %1477 = vmatpush1.msra.mxu0 0.0
      %1478 = vmatprep.subr.mxu0 0.0
      %1479 = vmatpush1.msra.mxu0 0.0
      %1480 = vmatprep.subr.mxu0 0.0
      %1481 = vmatpush1.msra.mxu0 0.0
      %1482 = vmatprep.subr.mxu0 0.0
      %1483 = vmatpush1.msra.mxu0 0.0
      %1484 = vmatprep.subr.mxu0 0.0
      %1485 = vmatpush1.msra.mxu0 0.0
      %1486 = vmatprep.subr.mxu0 0.0
      %1487 = vmatpush1.msra.mxu0 0.0
      %1488 = vmatprep.subr.mxu0 0.0
      %1489 = vmatpush1.msra.mxu0 0.0
      %1490 = vmatprep.subr.mxu0 0.0
      %1491 = vmatpush1.msra.mxu0 0.0
      %1492 = vmatprep.subr.mxu0 0.0
      %1493 = vmatpush1.msra.mxu0 0.0
      %1494 = vmatprep.subr.mxu0 %v1456
      %1495 = vmatpush1.msra.mxu0 %v1455
      %1496 = vmatprep.subr.mxu0 %v1454
      %1497 = vmatpush1.msra.mxu0 %v1453
      %1498 = vmatprep.subr.mxu0 0.0
      %1499 = vmatpush2.msra.mxu0 0.0
      %1500 = vmatprep.subr.mxu0 0.0
      %1501 = vmatpush2.msra.mxu0 0.0
      %1502 = vmatprep.subr.mxu0 0.0
      %1503 = vmatpush2.msra.mxu0 0.0
      %1504 = vmatprep.subr.mxu0 0.0
      %1505 = vmatpush2.msra.mxu0 0.0
      %1506 = vmatprep.subr.mxu0 0.0
      %1507 = vmatpush2.msra.mxu0 0.0
      %1508 = vmatprep.subr.mxu0 0.0
      %1509 = vmatpush2.msra.mxu0 0.0
      %1510 = vmatprep.subr.mxu0 0.0
      %1511 = vmatpush2.msra.mxu0 0.0
      %1512 = vmatprep.subr.mxu0 0.0
      %1513 = vmatpush2.msra.mxu0 0.0
      %1514 = vmatprep.subr.mxu0 0.0
      %1515 = vmatpush2.msra.mxu0 0.0
      %1516 = vmatprep.subr.mxu0 0.0
      %1517 = vmatpush2.msra.mxu0 0.0
      %1518 = vmatprep.subr.mxu0 0.0
      %1519 = vmatpush2.msra.mxu0 0.0
      %1520 = vmatprep.subr.mxu0 0.0
      %1521 = vmatpush2.msra.mxu0 0.0
      %1522 = vmatprep.subr.mxu0 0.0
      %1523 = vmatpush2.msra.mxu0 0.0
      %1524 = vmatprep.subr.mxu0 0.0
      %1525 = vmatpush2.msra.mxu0 0.0
      %1526 = vmatprep.subr.mxu0 0.0
      %1527 = vmatpush2.msra.mxu0 0.0
      %1528 = vmatprep.subr.mxu0 0.0
      %1529 = vmatpush2.msra.mxu0 0.0
      %1530 = vmatprep.mubr.f32.mxu0 0.0
      %1531 = vmatmul.mubr.f32.gmra.mxu0 %v1461
      %v1532 = vpop.f32.mrf.mxu0
      %v1533 = vadd.f32 0.0, %v1532
      %v1534 = vpop.f32.mrf.mxu0
      %v1535 = vadd.f32 0.0, %v1534
      %1536 = vmatprep.mubr.f32.mxu0 0.0
      %1537 = vmatmul.mubr.f32.gmra.mxu0 %v1464
      %v1538 = vpop.f32.mrf.mxu0
      %v1539 = vadd.f32 0.0, %v1538
      %v1540 = vpop.f32.mrf.mxu0
      %v1541 = vadd.f32 0.0, %v1540
      %1542 = vdwg.mxu0
      %v1543 = vadd.f32 %v1428, %v1533
      %v1544 = vadd.f32 %v1429, %v1535
      %v1545 = vadd.f32 %v1430, %v1539
      %v1546 = vadd.f32 %v1431, %v1541
      %v1547 = vld [vmem:[%s5] sm:$0xff]
      %v1548 = vld [vmem:[%s5 + $0x8] sm:$0xff]
      %1550 = vset.pattern.permute.xlu0 0
      %1551 = vperm.xlu0 %1550, %v1547
      %v1552 = vpop.permute.xlu0 %1551
      %1555 = vset.pattern.permute.xlu0 0
      %1556 = vperm.xlu0 %1555, %v1548
      %v1557 = vpop.permute.xlu0 %1556
      %v1559 = vadd.f32 %v1543, %v1552
      %v1560 = vadd.f32 %v1544, %v1552
      %v1561 = vadd.f32 %v1545, %v1557
      %v1562 = vadd.f32 %v1546, %v1557
      %v1563 = vxor.u32 %v1559, 2147483648
      %v1564 = vxor.u32 %v1560, 2147483648
      %v1565 = vxor.u32 %v1561, 2147483648
      %v1566 = vxor.u32 %v1562, 2147483648
      %v1567 = vmul.f32 %v1563, 1.442695
      %v1568 = vpow.pop %v1567
      %v1569 = vmul.f32 %v1564, 1.442695
      %v1570 = vpow.pop %v1569
      %v1571 = vmul.f32 %v1565, 1.442695
      %v1572 = vpow.pop %v1571
      %v1573 = vmul.f32 %v1566, 1.442695
      %v1574 = vpow.pop %v1573
      %v1575 = vadd.f32 %v1568, 1.0
      %v1576 = vadd.f32 %v1570, 1.0
      %v1577 = vadd.f32 %v1572, 1.0
      %v1578 = vadd.f32 %v1574, 1.0
      %v1579 = vrcp.pop %v1575
      %v1580 = vmul.f32 1.0, %v1579
      %v1581 = vrcp.pop %v1576
      %v1582 = vmul.f32 1.0, %v1581
      %v1583 = vrcp.pop %v1577
      %v1584 = vmul.f32 1.0, %v1583
      %v1585 = vrcp.pop %v1578
      %v1586 = vmul.f32 1.0, %v1585
      %v1587 = vtanh.pop %v1561
      %v1588 = vtanh.pop %v1562
      %v1589 = vld [vmem:[%s430] sm:$0x77]
      %v1591 = vcombine.high %v1589, %v1589
      %v1592 = vrot.slane %v1589, 5
      %v1593 = vrot.slane %v1591, 5
      %v1596 = vmul.f32 %v1580, %v1592
      %v1597 = vmul.f32 %v1582, %v1593
      %v1600 = vrot.slane %v1587, 1
      %v1601 = vrot.slane %v1588, 1
      %v1604 = vmul.f32 %v1580, %v1600
      %v1605 = vmul.f32 %v1582, %v1601
      %v1608 = vrot.slane %v1604, 5
      %v1609 = vrot.slane %v1605, 5
      %v1612 = vadd.f32 %v1596, %v1608
      %v1613 = vadd.f32 %v1597, %v1609
      %v1614 = vtanh.pop %v1612
      %v1615 = vtanh.pop %v1613
      %v1618 = vrot.slane %v1614, 5
      %v1619 = vrot.slane %v1615, 5
      %v1622 = vmul.f32 %v1580, %v1618
      %v1623 = vmul.f32 %v1582, %v1619
      %v1624 = vmul.f32 %v1584, %v1618
      %v1625 = vmul.f32 %v1586, %v1619
      %v1628 = vcombine.low %v1612, %v1613
      %v1629 = vcombine.high %v1612, %v1613
      %vm1630 = vcmask 1040384
      %vm1631 = vcmask 1044484
      %vm1632 = vmor %vm1630, %vm1631
      %v1633 = vrot.slane %v1628, 7
      %v1634 = vrot.slane %v1633, 4
      %v1635 = vrot.slane %v1629, 7
      %v1636 = vsel %vm1632, %v1634, %v1635
      %1638 = vst [vmem:[%s454] sm:$0x77] %v1636
      %v1643 = vcombine.high %v1622, %v1623
      %v1644 = vcombine.low %v1624, %v1625
      %vm1645 = vcmask 1041408
      %vm1646 = vcmask 1045508
      %vm1647 = vmor %vm1645, %vm1646
      %v1648 = vrot.slane %v1643, 6
      %v1649 = vrot.slane %v1648, 4
      %v1650 = vrot.slane %v1644, 6
      %v1651 = vsel %vm1647, %v1649, %v1650
      %1653 = vst [vmem:[%s448] sm:$0x77] %v1651
      %v1654 = vrot.slane %v1622, 6
      %v1655 = vrot.slane %v1624, 6
      %v1656 = vsel %vm1645, %v1654, %v1655
      %v1657 = vrot.slane %v1623, 6
      %v1658 = vrot.slane %v1625, 6
      %v1659 = vsel %vm1645, %v1657, %v1658
      %1662 = vst [vmem:[#allocation2 + $0x8] sm:$0x7] %v1656
      %1663 = vst [vmem:[#allocation2 + $0x10] sm:$0x7] %v1659
      %v1664 = vld [vmem:[#allocation2] sm:$0xff]
      %v1665 = vld [vmem:[#allocation2 + $0x8] sm:$0xff]
      %v1666 = vld [vmem:[#allocation2 + $0x10] sm:$0xff]
      %v1667 = vld [vmem:[#allocation2 + $0x20] sm:$0xff]
      %v1668 = vld [vmem:[#allocation2 + $0x28] sm:$0xff]
      %v1669 = vld [vmem:[#allocation2 + $0x30] sm:$0xff]
      %1676 = vrot.lane.b32.xlu0 %v1664, 17
      %v1677 = vpop.permute.xlu0 %1676
      %1678 = vrot.lane.b32.xlu0 %v1665, 17
      %v1679 = vpop.permute.xlu0 %1678
      %1680 = vrot.lane.b32.xlu0 %v1666, 17
      %v1681 = vpop.permute.xlu0 %1680
      %1682 = vrot.lane.b32.xlu0 %v1667, 17
      %v1683 = vpop.permute.xlu0 %1682
      %1684 = vrot.lane.b32.xlu0 %v1668, 17
      %v1685 = vpop.permute.xlu0 %1684
      %1686 = vrot.lane.b32.xlu0 %v1669, 17
      %v1687 = vpop.permute.xlu0 %1686
      %v1688 = vsel %vm542, %v1677, %v1679
      %v1689 = vsel %vm542, %v1679, %v1681
      %v1690 = vsel %vm542, %v1683, %v1685
      %v1691 = vsel %vm542, %v1685, %v1687
      %v1696 = vsel %vm522, %v1688, 0.0
      %v1697 = vsel %vm523, %v1689, 0.0
      %v1698 = vsel %vm522, %v1690, 0.0
      %v1699 = vsel %vm523, %v1691, 0.0
      %v1700 = vld [vmem:[%s6] sm:$0xff]
      %s1701 = scalar_lea.vmem %s6, 8
      %v1702 = vld [vmem:[%s1701] sm:$0xff]
      %1703 = vrot.lane.b32.xlu0 %v1664, 16
      %v1704 = vpop.permute.xlu0 %1703
      %1705 = vrot.lane.b32.xlu0 %v1665, 16
      %v1706 = vpop.permute.xlu0 %1705
      %1707 = vrot.lane.b32.xlu0 %v1666, 16
      %v1708 = vpop.permute.xlu0 %1707
      %1709 = vrot.lane.b32.xlu0 %v1667, 16
      %v1710 = vpop.permute.xlu0 %1709
      %1711 = vrot.lane.b32.xlu0 %v1668, 16
      %v1712 = vpop.permute.xlu0 %1711
      %1713 = vrot.lane.b32.xlu0 %v1669, 16
      %v1714 = vpop.permute.xlu0 %1713
      %v1715 = vsel %vm572, %v1704, %v1706
      %v1716 = vsel %vm572, %v1706, %v1708
      %v1717 = vsel %vm572, %v1710, %v1712
      %v1718 = vsel %vm572, %v1712, %v1714
      %v1724 = vsel %vm572, %v1702, 0
      %1726 = vmatprep.subr.mxu0 0.0
      %1727 = vmatpush1.msra.mxu0 0.0
      %1728 = vmatprep.subr.mxu0 0.0
      %1729 = vmatpush1.msra.mxu0 0.0
      %1730 = vmatprep.subr.mxu0 0.0
      %1731 = vmatpush1.msra.mxu0 0.0
      %1732 = vmatprep.subr.mxu0 0.0
      %1733 = vmatpush1.msra.mxu0 0.0
      %1734 = vmatprep.subr.mxu0 0.0
      %1735 = vmatpush1.msra.mxu0 0.0
      %1736 = vmatprep.subr.mxu0 0.0
      %1737 = vmatpush1.msra.mxu0 0.0
      %1738 = vmatprep.subr.mxu0 0.0
      %1739 = vmatpush1.msra.mxu0 0.0
      %1740 = vmatprep.subr.mxu0 0.0
      %1741 = vmatpush1.msra.mxu0 0.0
      %1742 = vmatprep.subr.mxu0 0.0
      %1743 = vmatpush1.msra.mxu0 0.0
      %1744 = vmatprep.subr.mxu0 0.0
      %1745 = vmatpush1.msra.mxu0 0.0
      %1746 = vmatprep.subr.mxu0 0.0
      %1747 = vmatpush1.msra.mxu0 0.0
      %1748 = vmatprep.subr.mxu0 0.0
      %1749 = vmatpush1.msra.mxu0 0.0
      %1750 = vmatprep.subr.mxu0 0.0
      %1751 = vmatpush1.msra.mxu0 0.0
      %1752 = vmatprep.subr.mxu0 0.0
      %1753 = vmatpush1.msra.mxu0 0.0
      %1754 = vmatprep.subr.mxu0 %v1718
      %1755 = vmatpush1.msra.mxu0 %v1717
      %1756 = vmatprep.subr.mxu0 %v1716
      %1757 = vmatpush1.msra.mxu0 %v1715
      %1758 = vmatprep.subr.mxu0 0.0
      %1759 = vmatpush2.msra.mxu0 0.0
      %1760 = vmatprep.subr.mxu0 0.0
      %1761 = vmatpush2.msra.mxu0 0.0
      %1762 = vmatprep.subr.mxu0 0.0
      %1763 = vmatpush2.msra.mxu0 0.0
      %1764 = vmatprep.subr.mxu0 0.0
      %1765 = vmatpush2.msra.mxu0 0.0
      %1766 = vmatprep.subr.mxu0 0.0
      %1767 = vmatpush2.msra.mxu0 0.0
      %1768 = vmatprep.subr.mxu0 0.0
      %1769 = vmatpush2.msra.mxu0 0.0
      %1770 = vmatprep.subr.mxu0 0.0
      %1771 = vmatpush2.msra.mxu0 0.0
      %1772 = vmatprep.subr.mxu0 0.0
      %1773 = vmatpush2.msra.mxu0 0.0
      %1774 = vmatprep.subr.mxu0 0.0
      %1775 = vmatpush2.msra.mxu0 0.0
      %1776 = vmatprep.subr.mxu0 0.0
      %1777 = vmatpush2.msra.mxu0 0.0
      %1778 = vmatprep.subr.mxu0 0.0
      %1779 = vmatpush2.msra.mxu0 0.0
      %1780 = vmatprep.subr.mxu0 0.0
      %1781 = vmatpush2.msra.mxu0 0.0
      %1782 = vmatprep.subr.mxu0 0.0
      %1783 = vmatpush2.msra.mxu0 0.0
      %1784 = vmatprep.subr.mxu0 0.0
      %1785 = vmatpush2.msra.mxu0 0.0
      %1786 = vmatprep.subr.mxu0 0.0
      %1787 = vmatpush2.msra.mxu0 0.0
      %1788 = vmatprep.subr.mxu0 0.0
      %1789 = vmatpush2.msra.mxu0 0.0
      %1790 = vmatprep.mubr.f32.mxu0 0.0
      %1791 = vmatmul.mubr.f32.gmra.mxu0 %v1724
      %v1792 = vpop.f32.mrf.mxu0
      %v1793 = vadd.f32 0.0, %v1792
      %v1794 = vpop.f32.mrf.mxu0
      %v1795 = vadd.f32 0.0, %v1794
      %1796 = vdwg.mxu0
      %v1798 = vsel %vm572, %v1700, 0
      %1800 = vmatprep.subr.mxu0 0.0
      %1801 = vmatpush1.msra.mxu0 0.0
      %1802 = vmatprep.subr.mxu0 0.0
      %1803 = vmatpush1.msra.mxu0 0.0
      %1804 = vmatprep.subr.mxu0 0.0
      %1805 = vmatpush1.msra.mxu0 0.0
      %1806 = vmatprep.subr.mxu0 0.0
      %1807 = vmatpush1.msra.mxu0 0.0
      %1808 = vmatprep.subr.mxu0 0.0
      %1809 = vmatpush1.msra.mxu0 0.0
      %1810 = vmatprep.subr.mxu0 0.0
      %1811 = vmatpush1.msra.mxu0 0.0
      %1812 = vmatprep.subr.mxu0 0.0
      %1813 = vmatpush1.msra.mxu0 0.0
      %1814 = vmatprep.subr.mxu0 0.0
      %1815 = vmatpush1.msra.mxu0 0.0
      %1816 = vmatprep.subr.mxu0 0.0
      %1817 = vmatpush1.msra.mxu0 0.0
      %1818 = vmatprep.subr.mxu0 0.0
      %1819 = vmatpush1.msra.mxu0 0.0
      %1820 = vmatprep.subr.mxu0 0.0
      %1821 = vmatpush1.msra.mxu0 0.0
      %1822 = vmatprep.subr.mxu0 0.0
      %1823 = vmatpush1.msra.mxu0 0.0
      %1824 = vmatprep.subr.mxu0 0.0
      %1825 = vmatpush1.msra.mxu0 0.0
      %1826 = vmatprep.subr.mxu0 0.0
      %1827 = vmatpush1.msra.mxu0 0.0
      %1828 = vmatprep.subr.mxu0 %v1699
      %1829 = vmatpush1.msra.mxu0 %v1698
      %1830 = vmatprep.subr.mxu0 %v1697
      %1831 = vmatpush1.msra.mxu0 %v1696
      %1832 = vmatprep.subr.mxu0 0.0
      %1833 = vmatpush2.msra.mxu0 0.0
      %1834 = vmatprep.subr.mxu0 0.0
      %1835 = vmatpush2.msra.mxu0 0.0
      %1836 = vmatprep.subr.mxu0 0.0
      %1837 = vmatpush2.msra.mxu0 0.0
      %1838 = vmatprep.subr.mxu0 0.0
      %1839 = vmatpush2.msra.mxu0 0.0
      %1840 = vmatprep.subr.mxu0 0.0
      %1841 = vmatpush2.msra.mxu0 0.0
      %1842 = vmatprep.subr.mxu0 0.0
      %1843 = vmatpush2.msra.mxu0 0.0
      %1844 = vmatprep.subr.mxu0 0.0
      %1845 = vmatpush2.msra.mxu0 0.0
      %1846 = vmatprep.subr.mxu0 0.0
      %1847 = vmatpush2.msra.mxu0 0.0
      %1848 = vmatprep.subr.mxu0 0.0
      %1849 = vmatpush2.msra.mxu0 0.0
      %1850 = vmatprep.subr.mxu0 0.0
      %1851 = vmatpush2.msra.mxu0 0.0
      %1852 = vmatprep.subr.mxu0 0.0
      %1853 = vmatpush2.msra.mxu0 0.0
      %1854 = vmatprep.subr.mxu0 0.0
      %1855 = vmatpush2.msra.mxu0 0.0
      %1856 = vmatprep.subr.mxu0 0.0
      %1857 = vmatpush2.msra.mxu0 0.0
      %1858 = vmatprep.subr.mxu0 0.0
      %1859 = vmatpush2.msra.mxu0 0.0
      %1860 = vmatprep.subr.mxu0 0.0
      %1861 = vmatpush2.msra.mxu0 0.0
      %1862 = vmatprep.subr.mxu0 0.0
      %1863 = vmatpush2.msra.mxu0 0.0
      %1864 = vmatprep.mubr.f32.mxu0 0.0
      %1865 = vmatmul.mubr.f32.gmra.mxu0 %v1798
      %v1866 = vpop.f32.mrf.mxu0
      %v1867 = vadd.f32 %v1793, %v1866
      %v1868 = vpop.f32.mrf.mxu0
      %v1869 = vadd.f32 %v1795, %v1868
      %1870 = vdwg.mxu0
      %1871 = vrot.lane.b32.xlu0 %v1664, 15
      %v1872 = vpop.permute.xlu0 %1871
      %1873 = vrot.lane.b32.xlu0 %v1665, 15
      %v1874 = vpop.permute.xlu0 %1873
      %1875 = vrot.lane.b32.xlu0 %v1666, 15
      %v1876 = vpop.permute.xlu0 %1875
      %1877 = vrot.lane.b32.xlu0 %v1667, 15
      %v1878 = vpop.permute.xlu0 %1877
      %1879 = vrot.lane.b32.xlu0 %v1668, 15
      %v1880 = vpop.permute.xlu0 %1879
      %1881 = vrot.lane.b32.xlu0 %v1669, 15
      %v1882 = vpop.permute.xlu0 %1881
      %v1883 = vsel %vm771, %v1872, %v1874
      %v1884 = vsel %vm771, %v1874, %v1876
      %v1885 = vsel %vm771, %v1878, %v1880
      %v1886 = vsel %vm771, %v1880, %v1882
      %v1891 = vsel %vm757, %v1883, 0.0
      %v1892 = vsel %vm758, %v1884, 0.0
      %v1893 = vsel %vm757, %v1885, 0.0
      %v1894 = vsel %vm758, %v1886, 0.0
      %s1895 = scalar_lea.vmem %s6, 16
      %v1896 = vld [vmem:[%s1895] sm:$0xff]
      %v1898 = vsel %vm572, %v1896, 0
      %1900 = vmatprep.subr.mxu0 0.0
      %1901 = vmatpush1.msra.mxu0 0.0
      %1902 = vmatprep.subr.mxu0 0.0
      %1903 = vmatpush1.msra.mxu0 0.0
      %1904 = vmatprep.subr.mxu0 0.0
      %1905 = vmatpush1.msra.mxu0 0.0
      %1906 = vmatprep.subr.mxu0 0.0
      %1907 = vmatpush1.msra.mxu0 0.0
      %1908 = vmatprep.subr.mxu0 0.0
      %1909 = vmatpush1.msra.mxu0 0.0
      %1910 = vmatprep.subr.mxu0 0.0
      %1911 = vmatpush1.msra.mxu0 0.0
      %1912 = vmatprep.subr.mxu0 0.0
      %1913 = vmatpush1.msra.mxu0 0.0
      %1914 = vmatprep.subr.mxu0 0.0
      %1915 = vmatpush1.msra.mxu0 0.0
      %1916 = vmatprep.subr.mxu0 0.0
      %1917 = vmatpush1.msra.mxu0 0.0
      %1918 = vmatprep.subr.mxu0 0.0
      %1919 = vmatpush1.msra.mxu0 0.0
      %1920 = vmatprep.subr.mxu0 0.0
      %1921 = vmatpush1.msra.mxu0 0.0
      %1922 = vmatprep.subr.mxu0 0.0
      %1923 = vmatpush1.msra.mxu0 0.0
      %1924 = vmatprep.subr.mxu0 0.0
      %1925 = vmatpush1.msra.mxu0 0.0
      %1926 = vmatprep.subr.mxu0 0.0
      %1927 = vmatpush1.msra.mxu0 0.0
      %1928 = vmatprep.subr.mxu0 %v1894
      %1929 = vmatpush1.msra.mxu0 %v1893
      %1930 = vmatprep.subr.mxu0 %v1892
      %1931 = vmatpush1.msra.mxu0 %v1891
      %1932 = vmatprep.subr.mxu0 0.0
      %1933 = vmatpush2.msra.mxu0 0.0
      %1934 = vmatprep.subr.mxu0 0.0
      %1935 = vmatpush2.msra.mxu0 0.0
      %1936 = vmatprep.subr.mxu0 0.0
      %1937 = vmatpush2.msra.mxu0 0.0
      %1938 = vmatprep.subr.mxu0 0.0
      %1939 = vmatpush2.msra.mxu0 0.0
      %1940 = vmatprep.subr.mxu0 0.0
      %1941 = vmatpush2.msra.mxu0 0.0
      %1942 = vmatprep.subr.mxu0 0.0
      %1943 = vmatpush2.msra.mxu0 0.0
      %1944 = vmatprep.subr.mxu0 0.0
      %1945 = vmatpush2.msra.mxu0 0.0
      %1946 = vmatprep.subr.mxu0 0.0
      %1947 = vmatpush2.msra.mxu0 0.0
      %1948 = vmatprep.subr.mxu0 0.0
      %1949 = vmatpush2.msra.mxu0 0.0
      %1950 = vmatprep.subr.mxu0 0.0
      %1951 = vmatpush2.msra.mxu0 0.0
      %1952 = vmatprep.subr.mxu0 0.0
      %1953 = vmatpush2.msra.mxu0 0.0
      %1954 = vmatprep.subr.mxu0 0.0
      %1955 = vmatpush2.msra.mxu0 0.0
      %1956 = vmatprep.subr.mxu0 0.0
      %1957 = vmatpush2.msra.mxu0 0.0
      %1958 = vmatprep.subr.mxu0 0.0
      %1959 = vmatpush2.msra.mxu0 0.0
      %1960 = vmatprep.subr.mxu0 0.0
      %1961 = vmatpush2.msra.mxu0 0.0
      %1962 = vmatprep.subr.mxu0 0.0
      %1963 = vmatpush2.msra.mxu0 0.0
      %1964 = vmatprep.mubr.f32.mxu0 0.0
      %1965 = vmatmul.mubr.f32.gmra.mxu0 %v1898
      %v1966 = vpop.f32.mrf.mxu0
      %v1967 = vadd.f32 0.0, %v1966
      %v1968 = vpop.f32.mrf.mxu0
      %v1969 = vadd.f32 0.0, %v1968
      %1970 = vdwg.mxu0
      %v1971 = vadd.f32 %v1867, %v1967
      %v1972 = vadd.f32 %v1869, %v1969
      %1973 = vrot.lane.b32.xlu0 %v1664, 1
      %v1974 = vpop.permute.xlu0 %1973
      %1975 = vrot.lane.b32.xlu0 %v1665, 1
      %v1976 = vpop.permute.xlu0 %1975
      %1977 = vrot.lane.b32.xlu0 %v1666, 1
      %v1978 = vpop.permute.xlu0 %1977
      %1979 = vrot.lane.b32.xlu0 %v1667, 1
      %v1980 = vpop.permute.xlu0 %1979
      %1981 = vrot.lane.b32.xlu0 %v1668, 1
      %v1982 = vpop.permute.xlu0 %1981
      %1983 = vrot.lane.b32.xlu0 %v1669, 1
      %v1984 = vpop.permute.xlu0 %1983
      %v1985 = vsel %vm886, %v1974, %v1976
      %v1986 = vsel %vm886, %v1976, %v1978
      %v1987 = vsel %vm886, %v1980, %v1982
      %v1988 = vsel %vm886, %v1982, %v1984
      %v1993 = vsel %vm522, %v1985, 0.0
      %v1994 = vsel %vm523, %v1986, 0.0
      %v1995 = vsel %vm522, %v1987, 0.0
      %v1996 = vsel %vm523, %v1988, 0.0
      %s1997 = scalar_lea.vmem %s6, 24
      %v1998 = vld [vmem:[%s1997] sm:$0xff]
      %v2000 = vsel %vm572, %v1998, 0
      %2002 = vmatprep.subr.mxu0 0.0
      %2003 = vmatpush1.msra.mxu0 0.0
      %2004 = vmatprep.subr.mxu0 0.0
      %2005 = vmatpush1.msra.mxu0 0.0
      %2006 = vmatprep.subr.mxu0 0.0
      %2007 = vmatpush1.msra.mxu0 0.0
      %2008 = vmatprep.subr.mxu0 0.0
      %2009 = vmatpush1.msra.mxu0 0.0
      %2010 = vmatprep.subr.mxu0 0.0
      %2011 = vmatpush1.msra.mxu0 0.0
      %2012 = vmatprep.subr.mxu0 0.0
      %2013 = vmatpush1.msra.mxu0 0.0
      %2014 = vmatprep.subr.mxu0 0.0
      %2015 = vmatpush1.msra.mxu0 0.0
      %2016 = vmatprep.subr.mxu0 0.0
      %2017 = vmatpush1.msra.mxu0 0.0
      %2018 = vmatprep.subr.mxu0 0.0
      %2019 = vmatpush1.msra.mxu0 0.0
      %2020 = vmatprep.subr.mxu0 0.0
      %2021 = vmatpush1.msra.mxu0 0.0
      %2022 = vmatprep.subr.mxu0 0.0
      %2023 = vmatpush1.msra.mxu0 0.0
      %2024 = vmatprep.subr.mxu0 0.0
      %2025 = vmatpush1.msra.mxu0 0.0
      %2026 = vmatprep.subr.mxu0 0.0
      %2027 = vmatpush1.msra.mxu0 0.0
      %2028 = vmatprep.subr.mxu0 0.0
      %2029 = vmatpush1.msra.mxu0 0.0
      %2030 = vmatprep.subr.mxu0 %v1996
      %2031 = vmatpush1.msra.mxu0 %v1995
      %2032 = vmatprep.subr.mxu0 %v1994
      %2033 = vmatpush1.msra.mxu0 %v1993
      %2034 = vmatprep.subr.mxu0 0.0
      %2035 = vmatpush2.msra.mxu0 0.0
      %2036 = vmatprep.subr.mxu0 0.0
      %2037 = vmatpush2.msra.mxu0 0.0
      %2038 = vmatprep.subr.mxu0 0.0
      %2039 = vmatpush2.msra.mxu0 0.0
      %2040 = vmatprep.subr.mxu0 0.0
      %2041 = vmatpush2.msra.mxu0 0.0
      %2042 = vmatprep.subr.mxu0 0.0
      %2043 = vmatpush2.msra.mxu0 0.0
      %2044 = vmatprep.subr.mxu0 0.0
      %2045 = vmatpush2.msra.mxu0 0.0
      %2046 = vmatprep.subr.mxu0 0.0
      %2047 = vmatpush2.msra.mxu0 0.0
      %2048 = vmatprep.subr.mxu0 0.0
      %2049 = vmatpush2.msra.mxu0 0.0
      %2050 = vmatprep.subr.mxu0 0.0
      %2051 = vmatpush2.msra.mxu0 0.0
      %2052 = vmatprep.subr.mxu0 0.0
      %2053 = vmatpush2.msra.mxu0 0.0
      %2054 = vmatprep.subr.mxu0 0.0
      %2055 = vmatpush2.msra.mxu0 0.0
      %2056 = vmatprep.subr.mxu0 0.0
      %2057 = vmatpush2.msra.mxu0 0.0
      %2058 = vmatprep.subr.mxu0 0.0
      %2059 = vmatpush2.msra.mxu0 0.0
      %2060 = vmatprep.subr.mxu0 0.0
      %2061 = vmatpush2.msra.mxu0 0.0
      %2062 = vmatprep.subr.mxu0 0.0
      %2063 = vmatpush2.msra.mxu0 0.0
      %2064 = vmatprep.subr.mxu0 0.0
      %2065 = vmatpush2.msra.mxu0 0.0
      %2066 = vmatprep.mubr.f32.mxu0 0.0
      %2067 = vmatmul.mubr.f32.gmra.mxu0 %v2000
      %v2068 = vpop.f32.mrf.mxu0
      %v2069 = vadd.f32 0.0, %v2068
      %v2070 = vpop.f32.mrf.mxu0
      %v2071 = vadd.f32 0.0, %v2070
      %2072 = vdwg.mxu0
      %v2073 = vadd.f32 %v1971, %v2069
      %v2074 = vadd.f32 %v1972, %v2071
      %s2075 = scalar_lea.vmem %s6, 32
      %v2076 = vld [vmem:[%s2075] sm:$0xff]
      %v2078 = vsel %vm572, %v2076, 0
      %2080 = vmatprep.subr.mxu0 0.0
      %2081 = vmatpush1.msra.mxu0 0.0
      %2082 = vmatprep.subr.mxu0 0.0
      %2083 = vmatpush1.msra.mxu0 0.0
      %2084 = vmatprep.subr.mxu0 0.0
      %2085 = vmatpush1.msra.mxu0 0.0
      %2086 = vmatprep.subr.mxu0 0.0
      %2087 = vmatpush1.msra.mxu0 0.0
      %2088 = vmatprep.subr.mxu0 0.0
      %2089 = vmatpush1.msra.mxu0 0.0
      %2090 = vmatprep.subr.mxu0 0.0
      %2091 = vmatpush1.msra.mxu0 0.0
      %2092 = vmatprep.subr.mxu0 0.0
      %2093 = vmatpush1.msra.mxu0 0.0
      %2094 = vmatprep.subr.mxu0 0.0
      %2095 = vmatpush1.msra.mxu0 0.0
      %2096 = vmatprep.subr.mxu0 0.0
      %2097 = vmatpush1.msra.mxu0 0.0
      %2098 = vmatprep.subr.mxu0 0.0
      %2099 = vmatpush1.msra.mxu0 0.0
      %2100 = vmatprep.subr.mxu0 0.0
      %2101 = vmatpush1.msra.mxu0 0.0
      %2102 = vmatprep.subr.mxu0 0.0
      %2103 = vmatpush1.msra.mxu0 0.0
      %2104 = vmatprep.subr.mxu0 0.0
      %2105 = vmatpush1.msra.mxu0 0.0
      %2106 = vmatprep.subr.mxu0 0.0
      %2107 = vmatpush1.msra.mxu0 0.0
      %2108 = vmatprep.subr.mxu0 %v1669
      %2109 = vmatpush1.msra.mxu0 %v1668
      %2110 = vmatprep.subr.mxu0 %v1666
      %2111 = vmatpush1.msra.mxu0 %v1665
      %2112 = vmatprep.subr.mxu0 0.0
      %2113 = vmatpush2.msra.mxu0 0.0
      %2114 = vmatprep.subr.mxu0 0.0
      %2115 = vmatpush2.msra.mxu0 0.0
      %2116 = vmatprep.subr.mxu0 0.0
      %2117 = vmatpush2.msra.mxu0 0.0
      %2118 = vmatprep.subr.mxu0 0.0
      %2119 = vmatpush2.msra.mxu0 0.0
      %2120 = vmatprep.subr.mxu0 0.0
      %2121 = vmatpush2.msra.mxu0 0.0
      %2122 = vmatprep.subr.mxu0 0.0
      %2123 = vmatpush2.msra.mxu0 0.0
      %2124 = vmatprep.subr.mxu0 0.0
      %2125 = vmatpush2.msra.mxu0 0.0
      %2126 = vmatprep.subr.mxu0 0.0
      %2127 = vmatpush2.msra.mxu0 0.0
      %2128 = vmatprep.subr.mxu0 0.0
      %2129 = vmatpush2.msra.mxu0 0.0
      %2130 = vmatprep.subr.mxu0 0.0
      %2131 = vmatpush2.msra.mxu0 0.0
      %2132 = vmatprep.subr.mxu0 0.0
      %2133 = vmatpush2.msra.mxu0 0.0
      %2134 = vmatprep.subr.mxu0 0.0
      %2135 = vmatpush2.msra.mxu0 0.0
      %2136 = vmatprep.subr.mxu0 0.0
      %2137 = vmatpush2.msra.mxu0 0.0
      %2138 = vmatprep.subr.mxu0 0.0
      %2139 = vmatpush2.msra.mxu0 0.0
      %2140 = vmatprep.subr.mxu0 0.0
      %2141 = vmatpush2.msra.mxu0 0.0
      %2142 = vmatprep.subr.mxu0 0.0
      %2143 = vmatpush2.msra.mxu0 0.0
      %2144 = vmatprep.mubr.f32.mxu0 0.0
      %2145 = vmatmul.mubr.f32.gmra.mxu0 %v2078
      %v2146 = vpop.f32.mrf.mxu0
      %v2147 = vadd.f32 0.0, %v2146
      %v2148 = vpop.f32.mrf.mxu0
      %v2149 = vadd.f32 0.0, %v2148
      %2150 = vdwg.mxu0
      %v2151 = vadd.f32 %v2073, %v2147
      %v2152 = vadd.f32 %v2074, %v2149
      %v2153 = vld [vmem:[#allocation2 + $0x8] sm:$0xff]
      %v2154 = vld [vmem:[#allocation2 + $0x10] sm:$0xff]
      %v2155 = vld [vmem:[#allocation2 + $0x18] sm:$0xff]
      %v2156 = vld [vmem:[#allocation2 + $0x28] sm:$0xff]
      %v2157 = vld [vmem:[#allocation2 + $0x30] sm:$0xff]
      %v2158 = vld [vmem:[#allocation2 + $0x38] sm:$0xff]
      %2165 = vrot.lane.b32.xlu0 %v2153, 127
      %v2166 = vpop.permute.xlu0 %2165
      %2167 = vrot.lane.b32.xlu0 %v2154, 127
      %v2168 = vpop.permute.xlu0 %2167
      %2169 = vrot.lane.b32.xlu0 %v2155, 127
      %v2170 = vpop.permute.xlu0 %2169
      %2171 = vrot.lane.b32.xlu0 %v2156, 127
      %v2172 = vpop.permute.xlu0 %2171
      %2173 = vrot.lane.b32.xlu0 %v2157, 127
      %v2174 = vpop.permute.xlu0 %2173
      %2175 = vrot.lane.b32.xlu0 %v2158, 127
      %v2176 = vpop.permute.xlu0 %2175
      %v2177 = vsel %vm1103, %v2166, %v2168
      %v2178 = vsel %vm1103, %v2168, %v2170
      %v2179 = vsel %vm1103, %v2172, %v2174
      %v2180 = vsel %vm1103, %v2174, %v2176
      %v2185 = vsel %vm757, %v2177, 0.0
      %v2186 = vsel %vm758, %v2178, 0.0
      %v2187 = vsel %vm757, %v2179, 0.0
      %v2188 = vsel %vm758, %v2180, 0.0
      %s2189 = scalar_lea.vmem %s6, 40
      %v2190 = vld [vmem:[%s2189] sm:$0xff]
      %v2192 = vsel %vm572, %v2190, 0
      %2194 = vmatprep.subr.mxu0 0.0
      %2195 = vmatpush1.msra.mxu0 0.0
      %2196 = vmatprep.subr.mxu0 0.0
      %2197 = vmatpush1.msra.mxu0 0.0
      %2198 = vmatprep.subr.mxu0 0.0
      %2199 = vmatpush1.msra.mxu0 0.0
      %2200 = vmatprep.subr.mxu0 0.0
      %2201 = vmatpush1.msra.mxu0 0.0
      %2202 = vmatprep.subr.mxu0 0.0
      %2203 = vmatpush1.msra.mxu0 0.0
      %2204 = vmatprep.subr.mxu0 0.0
      %2205 = vmatpush1.msra.mxu0 0.0
      %2206 = vmatprep.subr.mxu0 0.0
      %2207 = vmatpush1.msra.mxu0 0.0
      %2208 = vmatprep.subr.mxu0 0.0
      %2209 = vmatpush1.msra.mxu0 0.0
      %2210 = vmatprep.subr.mxu0 0.0
      %2211 = vmatpush1.msra.mxu0 0.0
      %2212 = vmatprep.subr.mxu0 0.0
      %2213 = vmatpush1.msra.mxu0 0.0
      %2214 = vmatprep.subr.mxu0 0.0
      %2215 = vmatpush1.msra.mxu0 0.0
      %2216 = vmatprep.subr.mxu0 0.0
      %2217 = vmatpush1.msra.mxu0 0.0
      %2218 = vmatprep.subr.mxu0 0.0
      %2219 = vmatpush1.msra.mxu0 0.0
      %2220 = vmatprep.subr.mxu0 0.0
      %2221 = vmatpush1.msra.mxu0 0.0
      %2222 = vmatprep.subr.mxu0 %v2188
      %2223 = vmatpush1.msra.mxu0 %v2187
      %2224 = vmatprep.subr.mxu0 %v2186
      %2225 = vmatpush1.msra.mxu0 %v2185
      %2226 = vmatprep.subr.mxu0 0.0
      %2227 = vmatpush2.msra.mxu0 0.0
      %2228 = vmatprep.subr.mxu0 0.0
      %2229 = vmatpush2.msra.mxu0 0.0
      %2230 = vmatprep.subr.mxu0 0.0
      %2231 = vmatpush2.msra.mxu0 0.0
      %2232 = vmatprep.subr.mxu0 0.0
      %2233 = vmatpush2.msra.mxu0 0.0
      %2234 = vmatprep.subr.mxu0 0.0
      %2235 = vmatpush2.msra.mxu0 0.0
      %2236 = vmatprep.subr.mxu0 0.0
      %2237 = vmatpush2.msra.mxu0 0.0
      %2238 = vmatprep.subr.mxu0 0.0
      %2239 = vmatpush2.msra.mxu0 0.0
      %2240 = vmatprep.subr.mxu0 0.0
      %2241 = vmatpush2.msra.mxu0 0.0
      %2242 = vmatprep.subr.mxu0 0.0
      %2243 = vmatpush2.msra.mxu0 0.0
      %2244 = vmatprep.subr.mxu0 0.0
      %2245 = vmatpush2.msra.mxu0 0.0
      %2246 = vmatprep.subr.mxu0 0.0
      %2247 = vmatpush2.msra.mxu0 0.0
      %2248 = vmatprep.subr.mxu0 0.0
      %2249 = vmatpush2.msra.mxu0 0.0
      %2250 = vmatprep.subr.mxu0 0.0
      %2251 = vmatpush2.msra.mxu0 0.0
      %2252 = vmatprep.subr.mxu0 0.0
      %2253 = vmatpush2.msra.mxu0 0.0
      %2254 = vmatprep.subr.mxu0 0.0
      %2255 = vmatpush2.msra.mxu0 0.0
      %2256 = vmatprep.subr.mxu0 0.0
      %2257 = vmatpush2.msra.mxu0 0.0
      %2258 = vmatprep.mubr.f32.mxu0 0.0
      %2259 = vmatmul.mubr.f32.gmra.mxu0 %v2192
      %v2260 = vpop.f32.mrf.mxu0
      %v2261 = vadd.f32 0.0, %v2260
      %v2262 = vpop.f32.mrf.mxu0
      %v2263 = vadd.f32 0.0, %v2262
      %2264 = vdwg.mxu0
      %v2265 = vadd.f32 %v2151, %v2261
      %v2266 = vadd.f32 %v2152, %v2263
      %2267 = vrot.lane.b32.xlu0 %v2153, 113
      %v2268 = vpop.permute.xlu0 %2267
      %2269 = vrot.lane.b32.xlu0 %v2154, 113
      %v2270 = vpop.permute.xlu0 %2269
      %2271 = vrot.lane.b32.xlu0 %v2155, 113
      %v2272 = vpop.permute.xlu0 %2271
      %2273 = vrot.lane.b32.xlu0 %v2156, 113
      %v2274 = vpop.permute.xlu0 %2273
      %2275 = vrot.lane.b32.xlu0 %v2157, 113
      %v2276 = vpop.permute.xlu0 %2275
      %2277 = vrot.lane.b32.xlu0 %v2158, 113
      %v2278 = vpop.permute.xlu0 %2277
      %v2279 = vsel %vm1218, %v2268, %v2270
      %v2280 = vsel %vm1218, %v2270, %v2272
      %v2281 = vsel %vm1218, %v2274, %v2276
      %v2282 = vsel %vm1218, %v2276, %v2278
      %v2287 = vsel %vm522, %v2279, 0.0
      %v2288 = vsel %vm523, %v2280, 0.0
      %v2289 = vsel %vm522, %v2281, 0.0
      %v2290 = vsel %vm523, %v2282, 0.0
      %s2291 = scalar_lea.vmem %s6, 48
      %v2292 = vld [vmem:[%s2291] sm:$0xff]
      %v2294 = vsel %vm572, %v2292, 0
      %2296 = vmatprep.subr.mxu0 0.0
      %2297 = vmatpush1.msra.mxu0 0.0
      %2298 = vmatprep.subr.mxu0 0.0
      %2299 = vmatpush1.msra.mxu0 0.0
      %2300 = vmatprep.subr.mxu0 0.0
      %2301 = vmatpush1.msra.mxu0 0.0
      %2302 = vmatprep.subr.mxu0 0.0
      %2303 = vmatpush1.msra.mxu0 0.0
      %2304 = vmatprep.subr.mxu0 0.0
      %2305 = vmatpush1.msra.mxu0 0.0
      %2306 = vmatprep.subr.mxu0 0.0
      %2307 = vmatpush1.msra.mxu0 0.0
      %2308 = vmatprep.subr.mxu0 0.0
      %2309 = vmatpush1.msra.mxu0 0.0
      %2310 = vmatprep.subr.mxu0 0.0
      %2311 = vmatpush1.msra.mxu0 0.0
      %2312 = vmatprep.subr.mxu0 0.0
      %2313 = vmatpush1.msra.mxu0 0.0
      %2314 = vmatprep.subr.mxu0 0.0
      %2315 = vmatpush1.msra.mxu0 0.0
      %2316 = vmatprep.subr.mxu0 0.0
      %2317 = vmatpush1.msra.mxu0 0.0
      %2318 = vmatprep.subr.mxu0 0.0
      %2319 = vmatpush1.msra.mxu0 0.0
      %2320 = vmatprep.subr.mxu0 0.0
      %2321 = vmatpush1.msra.mxu0 0.0
      %2322 = vmatprep.subr.mxu0 0.0
      %2323 = vmatpush1.msra.mxu0 0.0
      %2324 = vmatprep.subr.mxu0 %v2290
      %2325 = vmatpush1.msra.mxu0 %v2289
      %2326 = vmatprep.subr.mxu0 %v2288
      %2327 = vmatpush1.msra.mxu0 %v2287
      %2328 = vmatprep.subr.mxu0 0.0
      %2329 = vmatpush2.msra.mxu0 0.0
      %2330 = vmatprep.subr.mxu0 0.0
      %2331 = vmatpush2.msra.mxu0 0.0
      %2332 = vmatprep.subr.mxu0 0.0
      %2333 = vmatpush2.msra.mxu0 0.0
      %2334 = vmatprep.subr.mxu0 0.0
      %2335 = vmatpush2.msra.mxu0 0.0
      %2336 = vmatprep.subr.mxu0 0.0
      %2337 = vmatpush2.msra.mxu0 0.0
      %2338 = vmatprep.subr.mxu0 0.0
      %2339 = vmatpush2.msra.mxu0 0.0
      %2340 = vmatprep.subr.mxu0 0.0
      %2341 = vmatpush2.msra.mxu0 0.0
      %2342 = vmatprep.subr.mxu0 0.0
      %2343 = vmatpush2.msra.mxu0 0.0
      %2344 = vmatprep.subr.mxu0 0.0
      %2345 = vmatpush2.msra.mxu0 0.0
      %2346 = vmatprep.subr.mxu0 0.0
      %2347 = vmatpush2.msra.mxu0 0.0
      %2348 = vmatprep.subr.mxu0 0.0
      %2349 = vmatpush2.msra.mxu0 0.0
      %2350 = vmatprep.subr.mxu0 0.0
      %2351 = vmatpush2.msra.mxu0 0.0
      %2352 = vmatprep.subr.mxu0 0.0
      %2353 = vmatpush2.msra.mxu0 0.0
      %2354 = vmatprep.subr.mxu0 0.0
      %2355 = vmatpush2.msra.mxu0 0.0
      %2356 = vmatprep.subr.mxu0 0.0
      %2357 = vmatpush2.msra.mxu0 0.0
      %2358 = vmatprep.subr.mxu0 0.0
      %2359 = vmatpush2.msra.mxu0 0.0
      %2360 = vmatprep.mubr.f32.mxu0 0.0
      %2361 = vmatmul.mubr.f32.gmra.mxu0 %v2294
      %v2362 = vpop.f32.mrf.mxu0
      %v2363 = vadd.f32 0.0, %v2362
      %v2364 = vpop.f32.mrf.mxu0
      %v2365 = vadd.f32 0.0, %v2364
      %2366 = vdwg.mxu0
      %v2367 = vadd.f32 %v2265, %v2363
      %v2368 = vadd.f32 %v2266, %v2365
      %s2369 = scalar_lea.vmem %s6, 56
      %v2370 = vld [vmem:[%s2369] sm:$0xff]
      %2371 = vrot.lane.b32.xlu0 %v2153, 112
      %v2372 = vpop.permute.xlu0 %2371
      %2373 = vrot.lane.b32.xlu0 %v2154, 112
      %v2374 = vpop.permute.xlu0 %2373
      %2375 = vrot.lane.b32.xlu0 %v2155, 112
      %v2376 = vpop.permute.xlu0 %2375
      %2377 = vrot.lane.b32.xlu0 %v2156, 112
      %v2378 = vpop.permute.xlu0 %2377
      %2379 = vrot.lane.b32.xlu0 %v2157, 112
      %v2380 = vpop.permute.xlu0 %2379
      %2381 = vrot.lane.b32.xlu0 %v2158, 112
      %v2382 = vpop.permute.xlu0 %2381
      %v2383 = vsel %vm1336, %v2372, %v2374
      %v2384 = vsel %vm1336, %v2374, %v2376
      %v2385 = vsel %vm1336, %v2378, %v2380
      %v2386 = vsel %vm1336, %v2380, %v2382
      %v2392 = vsel %vm572, %v2370, 0
      %2394 = vmatprep.subr.mxu0 0.0
      %2395 = vmatpush1.msra.mxu0 0.0
      %2396 = vmatprep.subr.mxu0 0.0
      %2397 = vmatpush1.msra.mxu0 0.0
      %2398 = vmatprep.subr.mxu0 0.0
      %2399 = vmatpush1.msra.mxu0 0.0
      %2400 = vmatprep.subr.mxu0 0.0
      %2401 = vmatpush1.msra.mxu0 0.0
      %2402 = vmatprep.subr.mxu0 0.0
      %2403 = vmatpush1.msra.mxu0 0.0
      %2404 = vmatprep.subr.mxu0 0.0
      %2405 = vmatpush1.msra.mxu0 0.0
      %2406 = vmatprep.subr.mxu0 0.0
      %2407 = vmatpush1.msra.mxu0 0.0
      %2408 = vmatprep.subr.mxu0 0.0
      %2409 = vmatpush1.msra.mxu0 0.0
      %2410 = vmatprep.subr.mxu0 0.0
      %2411 = vmatpush1.msra.mxu0 0.0
      %2412 = vmatprep.subr.mxu0 0.0
      %2413 = vmatpush1.msra.mxu0 0.0
      %2414 = vmatprep.subr.mxu0 0.0
      %2415 = vmatpush1.msra.mxu0 0.0
      %2416 = vmatprep.subr.mxu0 0.0
      %2417 = vmatpush1.msra.mxu0 0.0
      %2418 = vmatprep.subr.mxu0 0.0
      %2419 = vmatpush1.msra.mxu0 0.0
      %2420 = vmatprep.subr.mxu0 0.0
      %2421 = vmatpush1.msra.mxu0 0.0
      %2422 = vmatprep.subr.mxu0 %v2386
      %2423 = vmatpush1.msra.mxu0 %v2385
      %2424 = vmatprep.subr.mxu0 %v2384
      %2425 = vmatpush1.msra.mxu0 %v2383
      %2426 = vmatprep.subr.mxu0 0.0
      %2427 = vmatpush2.msra.mxu0 0.0
      %2428 = vmatprep.subr.mxu0 0.0
      %2429 = vmatpush2.msra.mxu0 0.0
      %2430 = vmatprep.subr.mxu0 0.0
      %2431 = vmatpush2.msra.mxu0 0.0
      %2432 = vmatprep.subr.mxu0 0.0
      %2433 = vmatpush2.msra.mxu0 0.0
      %2434 = vmatprep.subr.mxu0 0.0
      %2435 = vmatpush2.msra.mxu0 0.0
      %2436 = vmatprep.subr.mxu0 0.0
      %2437 = vmatpush2.msra.mxu0 0.0
      %2438 = vmatprep.subr.mxu0 0.0
      %2439 = vmatpush2.msra.mxu0 0.0
      %2440 = vmatprep.subr.mxu0 0.0
      %2441 = vmatpush2.msra.mxu0 0.0
      %2442 = vmatprep.subr.mxu0 0.0
      %2443 = vmatpush2.msra.mxu0 0.0
      %2444 = vmatprep.subr.mxu0 0.0
      %2445 = vmatpush2.msra.mxu0 0.0
      %2446 = vmatprep.subr.mxu0 0.0
      %2447 = vmatpush2.msra.mxu0 0.0
      %2448 = vmatprep.subr.mxu0 0.0
      %2449 = vmatpush2.msra.mxu0 0.0
      %2450 = vmatprep.subr.mxu0 0.0
      %2451 = vmatpush2.msra.mxu0 0.0
      %2452 = vmatprep.subr.mxu0 0.0
      %2453 = vmatpush2.msra.mxu0 0.0
      %2454 = vmatprep.subr.mxu0 0.0
      %2455 = vmatpush2.msra.mxu0 0.0
      %2456 = vmatprep.subr.mxu0 0.0
      %2457 = vmatpush2.msra.mxu0 0.0
      %2458 = vmatprep.mubr.f32.mxu0 0.0
      %2459 = vmatmul.mubr.f32.gmra.mxu0 %v2392
      %v2460 = vpop.f32.mrf.mxu0
      %v2461 = vadd.f32 0.0, %v2460
      %v2462 = vpop.f32.mrf.mxu0
      %v2463 = vadd.f32 0.0, %v2462
      %2464 = vdwg.mxu0
      %v2465 = vadd.f32 %v2367, %v2461
      %v2466 = vadd.f32 %v2368, %v2463
      %2467 = vrot.lane.b32.xlu0 %v2153, 111
      %v2468 = vpop.permute.xlu0 %2467
      %2469 = vrot.lane.b32.xlu0 %v2154, 111
      %v2470 = vpop.permute.xlu0 %2469
      %2471 = vrot.lane.b32.xlu0 %v2155, 111
      %v2472 = vpop.permute.xlu0 %2471
      %2473 = vrot.lane.b32.xlu0 %v2156, 111
      %v2474 = vpop.permute.xlu0 %2473
      %2475 = vrot.lane.b32.xlu0 %v2157, 111
      %v2476 = vpop.permute.xlu0 %2475
      %2477 = vrot.lane.b32.xlu0 %v2158, 111
      %v2478 = vpop.permute.xlu0 %2477
      %v2479 = vsel %vm1444, %v2468, %v2470
      %v2480 = vsel %vm1444, %v2470, %v2472
      %v2481 = vsel %vm1444, %v2474, %v2476
      %v2482 = vsel %vm1444, %v2476, %v2478
      %v2487 = vsel %vm757, %v2479, 0.0
      %v2488 = vsel %vm758, %v2480, 0.0
      %v2489 = vsel %vm757, %v2481, 0.0
      %v2490 = vsel %vm758, %v2482, 0.0
      %s2491 = scalar_lea.vmem %s6, 64
      %v2492 = vld [vmem:[%s2491] sm:$0xff]
      %v2494 = vsel %vm572, %v2492, 0
      %2496 = vmatprep.subr.mxu0 0.0
      %2497 = vmatpush1.msra.mxu0 0.0
      %2498 = vmatprep.subr.mxu0 0.0
      %2499 = vmatpush1.msra.mxu0 0.0
      %2500 = vmatprep.subr.mxu0 0.0
      %2501 = vmatpush1.msra.mxu0 0.0
      %2502 = vmatprep.subr.mxu0 0.0
      %2503 = vmatpush1.msra.mxu0 0.0
      %2504 = vmatprep.subr.mxu0 0.0
      %2505 = vmatpush1.msra.mxu0 0.0
      %2506 = vmatprep.subr.mxu0 0.0
      %2507 = vmatpush1.msra.mxu0 0.0
      %2508 = vmatprep.subr.mxu0 0.0
      %2509 = vmatpush1.msra.mxu0 0.0
      %2510 = vmatprep.subr.mxu0 0.0
      %2511 = vmatpush1.msra.mxu0 0.0
      %2512 = vmatprep.subr.mxu0 0.0
      %2513 = vmatpush1.msra.mxu0 0.0
      %2514 = vmatprep.subr.mxu0 0.0
      %2515 = vmatpush1.msra.mxu0 0.0
      %2516 = vmatprep.subr.mxu0 0.0
      %2517 = vmatpush1.msra.mxu0 0.0
      %2518 = vmatprep.subr.mxu0 0.0
      %2519 = vmatpush1.msra.mxu0 0.0
      %2520 = vmatprep.subr.mxu0 0.0
      %2521 = vmatpush1.msra.mxu0 0.0
      %2522 = vmatprep.subr.mxu0 0.0
      %2523 = vmatpush1.msra.mxu0 0.0
      %2524 = vmatprep.subr.mxu0 %v2490
      %2525 = vmatpush1.msra.mxu0 %v2489
      %2526 = vmatprep.subr.mxu0 %v2488
      %2527 = vmatpush1.msra.mxu0 %v2487
      %2528 = vmatprep.subr.mxu0 0.0
      %2529 = vmatpush2.msra.mxu0 0.0
      %2530 = vmatprep.subr.mxu0 0.0
      %2531 = vmatpush2.msra.mxu0 0.0
      %2532 = vmatprep.subr.mxu0 0.0
      %2533 = vmatpush2.msra.mxu0 0.0
      %2534 = vmatprep.subr.mxu0 0.0
      %2535 = vmatpush2.msra.mxu0 0.0
      %2536 = vmatprep.subr.mxu0 0.0
      %2537 = vmatpush2.msra.mxu0 0.0
      %2538 = vmatprep.subr.mxu0 0.0
      %2539 = vmatpush2.msra.mxu0 0.0
      %2540 = vmatprep.subr.mxu0 0.0
      %2541 = vmatpush2.msra.mxu0 0.0
      %2542 = vmatprep.subr.mxu0 0.0
      %2543 = vmatpush2.msra.mxu0 0.0
      %2544 = vmatprep.subr.mxu0 0.0
      %2545 = vmatpush2.msra.mxu0 0.0
      %2546 = vmatprep.subr.mxu0 0.0
      %2547 = vmatpush2.msra.mxu0 0.0
      %2548 = vmatprep.subr.mxu0 0.0
      %2549 = vmatpush2.msra.mxu0 0.0
      %2550 = vmatprep.subr.mxu0 0.0
      %2551 = vmatpush2.msra.mxu0 0.0
      %2552 = vmatprep.subr.mxu0 0.0
      %2553 = vmatpush2.msra.mxu0 0.0
      %2554 = vmatprep.subr.mxu0 0.0
      %2555 = vmatpush2.msra.mxu0 0.0
      %2556 = vmatprep.subr.mxu0 0.0
      %2557 = vmatpush2.msra.mxu0 0.0
      %2558 = vmatprep.subr.mxu0 0.0
      %2559 = vmatpush2.msra.mxu0 0.0
      %2560 = vmatprep.mubr.f32.mxu0 0.0
      %2561 = vmatmul.mubr.f32.gmra.mxu0 %v2494
      %v2562 = vpop.f32.mrf.mxu0
      %v2563 = vadd.f32 0.0, %v2562
      %v2564 = vpop.f32.mrf.mxu0
      %v2565 = vadd.f32 0.0, %v2564
      %2566 = vdwg.mxu0
      %v2567 = vadd.f32 %v2465, %v2563
      %v2568 = vadd.f32 %v2466, %v2565
      %v2569 = vld [vmem:[%s7] sm:$0xff]
      %2571 = vset.pattern.permute.xlu0 0
      %2572 = vperm.xlu0 %2571, %v2569
      %v2573 = vpop.permute.xlu0 %2572
      %v2575 = vadd.f32 %v2567, %v2573
      %v2576 = vadd.f32 %v2568, %v2573
      %v2577 = vmax.f32 %v2575, 0.0
      %v2578 = vmax.f32 %v2576, 0.0
      %v2579 = vld [vmem:[%s436] sm:$0x77]
      %v2582 = vcombine.low %v2577, %v2578
      %v2584 = vsub.f32 %v2579, %v2582
      %v2585 = vmax.f32 %v2584, 0.0
      %v2587 = vcombine.high %v2585, %v2585
      %2589 = vst [vmem:[%s442] sm:$0x7] %v2585
      %2590 = vst [vmem:[%s442 + $0x8] sm:$0x7] %v2587
      %v2592 = vcombine.high %v2579, %v2579
      %v2594 = vsub.f32 %v2577, %v2579
      %v2595 = vsub.f32 %v2578, %v2592
      %v2596 = vmax.f32 %v2594, 0.0
      %v2597 = vmax.f32 %v2595, 0.0
      %v2600 = vrot.slane %v2596, 5
      %v2601 = vrot.slane %v2597, 5
      %2604 = vst [vmem:[%s442] sm:$0x38] %v2600
      %2605 = vst [vmem:[%s442 + $0x8] sm:$0x38] %v2601
      %s2606 = smul.u32 2, %s22
      %p2607 = scmp.lt.s32.totalorder %s2606, 3
      %s2608 = scalar_select %p2607, %s2606, 3
      %s2609 = smul.addr %s2608, 8
      %s2610 = scalar_lea.vmem %s8, %s2609
      %s2611 = smul.u32 2, %s22
      %p2612 = scmp.lt.s32.totalorder %s2611, 3
      %s2613 = scalar_select %p2612, %s2611, 3
      %s2614 = smul.addr %s2613, 4
      %s2615 = scalar_lea.vmem %s9, %s2614
      %s2616 = smul.u32 2, %s22
      %p2617 = scmp.lt.s32.totalorder %s2616, 3
      %s2618 = scalar_select %p2617, %s2616, 3
      %s2619 = smul.addr %s2618, 4
      %s2620 = scalar_lea.vmem %s10, %s2619
      // Predicated region
      $region53: #{build_one_layer_forward.1} parent=51 // pred_check
        %p2621 = pneg %p228
      $region54: #{build_one_layer_forward.1} parent=51 // pred_check_branch
        %2623 = sbr.rel (%p2621) target = $region56
      $region55: #{build_one_layer_forward.1} parent=51 // pred_region
        %s2624 = smul.u32 2, %s22
      $region56: #{build_one_layer_forward.1} parent=51 // pred_fallthru
        _
      // Predicated region
      $region57: #{build_one_layer_forward.1} parent=51 // pred_check
        %p2625 = pneg %p254
      $region58: #{build_one_layer_forward.1} parent=51 // pred_check_branch
        %2627 = sbr.rel (%p2625) target = $region60
      $region59: #{build_one_layer_forward.1} parent=51 // pred_region
        %s2628 = smul.u32 2, %s22
      $region60: #{build_one_layer_forward.1} parent=51 // pred_fallthru
        _
      // Predicated region
      $region61: #{build_one_layer_forward.1} parent=51 // pred_check
        %p2629 = pneg %p280
      $region62: #{build_one_layer_forward.1} parent=51 // pred_check_branch
        %2631 = sbr.rel (%p2629) target = $region64
      $region63: #{build_one_layer_forward.1} parent=51 // pred_region
        %s2632 = smul.u32 2, %s22
      $region64: #{build_one_layer_forward.1} parent=51 // pred_fallthru
        _
    $region52: #{build_one_layer_forward.1} parent=5 // pred_fallthru
      _
    %p2633 = scmp.le.s32.totalorder 2, %s17
    // Predicated region
    $region65: #{build_one_layer_forward.1} parent=5 // pred_check
      %p2634 = pneg %p2633
    $region66: #{build_one_layer_forward.1} parent=5 // pred_check_branch
      %2636 = sbr.rel (%p2634) target = $region68
    $region67: #{build_one_layer_forward.1} parent=5 // pred_region
      %s2637 = ssub.s32 %s17, 2
      // Predicated region
      $region69: #{build_one_layer_forward.1} parent=67 // pred_check
        %p2638 = pneg %p234
      $region70: #{build_one_layer_forward.1} parent=67 // pred_check_branch
        %2640 = sbr.rel (%p2638) target = $region72
      $region71: #{build_one_layer_forward.1} parent=67 // pred_region
        %s2641 = smul.u32 2, %s23
        %p2642 = scmp.lt.s32.totalorder %s2641, 3
        %s2643 = scalar_select %p2642, %s2641, 3
        %s2644 = smul.addr %s2643, 8
        %s2645 = scalar_lea.vmem %s8, %s2644
      $region72: #{build_one_layer_forward.1} parent=67 // pred_fallthru
        _
      // Predicated region
      $region73: #{build_one_layer_forward.1} parent=67 // pred_check
        %p2646 = pneg %p260
      $region74: #{build_one_layer_forward.1} parent=67 // pred_check_branch
        %2648 = sbr.rel (%p2646) target = $region76
      $region75: #{build_one_layer_forward.1} parent=67 // pred_region
        %s2649 = smul.u32 2, %s23
        %p2650 = scmp.lt.s32.totalorder %s2649, 3
        %s2651 = scalar_select %p2650, %s2649, 3
        %s2652 = smul.addr %s2651, 4
        %s2653 = scalar_lea.vmem %s9, %s2652
      $region76: #{build_one_layer_forward.1} parent=67 // pred_fallthru
        _
      // Predicated region
      $region77: #{build_one_layer_forward.1} parent=67 // pred_check
        %p2654 = pneg %p286
      $region78: #{build_one_layer_forward.1} parent=67 // pred_check_branch
        %2656 = sbr.rel (%p2654) target = $region80
      $region79: #{build_one_layer_forward.1} parent=67 // pred_region
        %s2657 = smul.u32 2, %s23
        %p2658 = scmp.lt.s32.totalorder %s2657, 3
        %s2659 = scalar_select %p2658, %s2657, 3
        %s2660 = smul.addr %s2659, 4
        %s2661 = scalar_lea.vmem %s10, %s2660
      $region80: #{build_one_layer_forward.1} parent=67 // pred_fallthru
        _
    $region68: #{build_one_layer_forward.1} parent=5 // pred_fallthru
      _
  $region6: #{build_one_layer_forward.1} parent=0 // loop_footer
    %s21 = sadd.s32 1, %s17
  $region7: #{build_one_layer_forward.1} parent=0 // loop_footer_branch
    %16 = sbr.rel target = $region3
  $region8: #{build_one_layer_forward.1} parent=0 // loop_exit
    _

</llo_original>
